<compile_context>
chip_gen: v6e
topology: v6e:2x2x1
jax: 0.10.0
libtpu: 0.0.40
codegen_flags: <defaults>
</compile_context>

<pallas_src>
import jax
import jax.numpy as jnp
from jax.experimental import pallas as pl
from jax.experimental.pallas import tpu as pltpu


# ----------------------------------------------------------------------------
# Static configuration.
# ----------------------------------------------------------------------------
H_IN = 128                 # conv input spatial (forced by fc1 = 8*64*64)
HO = H_IN // 2             # pooled spatial = 64
CIN, COUT, H1 = 3, 8, 16
R_POOLED_ROWS = 32         # pooled rows per grid step  (review item 1: coarse grid)
K_TAPS = 9 * CIN           # 27 conv taps
K_PAD = 32                 # taps padded to 32 so the GEMM K dim is tile-friendly


# ----------------------------------------------------------------------------
# Fused kernel: conv1(3x3) + bias + ReLU + maxpool(2x2) + fc1 (+ReLU) + fc2 +
# sigmoid.  Grid = (B, G); the g axis is a reduction over pooled-row blocks.
#
#   p_ref  : (1, 32, 8192)  bf16  im2col patches, taps on sublanes, spatial on
#                                 lanes ordered (row-parity, col-parity, r, w)
#   w1_ref : (16, 8, 2048)  bf16  fc1 rows for this g block: (n, cout, r*64+w)
#   wc_ref : (8, 32)        bf16  conv weights (cout, kh*9+kw*3+cin), zero padded
#   bc_ref : (8, 1) f32, b1_ref: (16, 1) f32, w2_ref: (16, 1) f32, b2_ref: (1, 1) f32
#   o_ref  : (1, 1, 1) f32  sigmoid output for this image
#   acc_ref: (16, 1) f32    fc1 pre-activation accumulator (persists across g)
# ----------------------------------------------------------------------------
def _sorting_net_kernel(p_ref, w1_ref, wc_ref, bc_ref, b1_ref, w2_ref, b2_ref,
                        o_ref, acc_ref):
    g = pl.program_id(1)

    @pl.when(g == 0)
    def _init():
        acc_ref[...] = jnp.zeros_like(acc_ref)

    # conv1 as a transposed GEMM on the MXU: (8, 32) @ (32, 8192) -> (8, 8192).
    # Result is lane-dense (spatial on lanes), bf16 operands, f32 accumulation.
    y = jnp.dot(wc_ref[...], p_ref[0], preferred_element_type=jnp.float32)
    y = jnp.maximum(y + bc_ref[...], 0.0)                     # conv bias + ReLU

    # 2x2 max-pool.  Lanes are ordered (row_parity, col_parity, r, w), so the
    # four pool taps are vreg-aligned 2048-lane quarters: 3 elementwise maxes.
    q = y.shape[1] // 4                                       # 2048
    pooled = jnp.maximum(jnp.maximum(y[:, 0:q],         y[:, q:2 * q]),
                         jnp.maximum(y[:, 2 * q:3 * q], y[:, 3 * q:4 * q]))

    # fc1 partial: acc[n] += sum_{c, l} pooled[c, l] * w1_blk[n, c, l].
    # w1 has n on the leading dim, so this is a lane-dense VPU multiply + two
    # standard (sublane, then lane) reductions — ~0.5 MFLOP per step.
    w1b = w1_ref[...].astype(jnp.float32)                     # (16, 8, 2048)
    prod = pooled[None, :, :] * w1b                           # (16, 8, 2048)
    s1 = jnp.sum(prod, axis=1)                                # (16, 2048)
    acc_ref[...] += jnp.sum(s1, axis=1, keepdims=True)        # (16, 1)

    @pl.when(g == pl.num_programs(1) - 1)
    def _finalize():
        h1 = jnp.maximum(acc_ref[...] + b1_ref[...], 0.0)     # fc1 bias + ReLU
        logit = jnp.sum(h1 * w2_ref[...], axis=0, keepdims=True) + b2_ref[...]
        o_ref[...] = (1.0 / (1.0 + jnp.exp(-logit))).reshape(1, 1, 1)


# ----------------------------------------------------------------------------
# Host-side (XLA) one-time im2col in bf16, in the transposed MXU-RHS layout.
# Output: (B, 32, 16384), taps on sublanes, spatial on lanes ordered
#   m = g*8192 + row_parity*4096 + col_parity*2048 + r*64 + w
# so each grid step g reads one contiguous 8192-lane block and the 2x2 pool is
# parity-slab aligned.  This is a single fused XLA permutation (~1.9 MB bf16).
# ----------------------------------------------------------------------------
def _build_patches(x_nchw, g_blocks, r_rows):
    B = x_nchw.shape[0]
    xpad = jnp.pad(x_nchw.astype(jnp.bfloat16),
                   ((0, 0), (0, 0), (1, 1), (1, 1)))                  # (B,3,130,130)
    taps = [xpad[:, :, kh:kh + H_IN, kw:kw + H_IN]
            for kh in range(3) for kw in range(3)]                    # 9 x (B,3,128,128)
    p = jnp.stack(taps, axis=1)                                       # (B,9,3,128,128)
    # k = kh*9 + kw*3 + cin ; h = g*2R + 2r + pv ; w_conv = 2w + ph
    p = p.reshape(B, K_TAPS, g_blocks, r_rows, 2, HO, 2)              # (b,k,g,r,pv,w,ph)
    p = p.transpose(0, 1, 2, 4, 6, 3, 5)                              # (b,k,g,pv,ph,r,w)
    p = p.reshape(B, K_TAPS, g_blocks * 4 * r_rows * HO)
    return jnp.pad(p, ((0, 0), (0, K_PAD - K_TAPS), (0, 0)))          # zero taps 27..31


# ----------------------------------------------------------------------------
# Parameters (deterministic, synthetic).  Real PyTorch weights drop in as:
#   conv1_w = conv1.weight.permute(2,3,1,0)            (HWIO)
#   fc1_w   = fc1.weight.reshape(16, 8, 64, 64)        (n, c, h, w) NCHW flatten
#   fc2_w   = fc2.weight.T                              (16, 1)
# ----------------------------------------------------------------------------
def init_params(key):
    ks = jax.random.split(key, 6)
    return {
        "conv1_w": 0.05 * jax.random.normal(ks[0], (3, 3, CIN, COUT), jnp.float32),
        "conv1_b": 0.02 * jax.random.normal(ks[1], (COUT,), jnp.float32),
        "fc1_w": (0.01 * jax.random.normal(ks[2], (H1, COUT, HO, HO), jnp.float32)
                  ).astype(jnp.bfloat16),
        "fc1_b": 0.02 * jax.random.normal(ks[3], (H1,), jnp.float32),
        "fc2_w": 0.1 * jax.random.normal(ks[4], (H1, 1), jnp.float32),
        "fc2_b": 0.02 * jax.random.normal(ks[5], (1,), jnp.float32),
    }


# ----------------------------------------------------------------------------
# Full forward (single fused pallas_call) and a pure-JAX reference.
# ----------------------------------------------------------------------------
@jax.jit
def forward_pallas(x_nchw, params):
    B = x_nchw.shape[0]
    R = R_POOLED_ROWS
    assert HO % R == 0
    G = HO // R                                    # pooled-row blocks per image (2)
    M_STEP = 4 * R * HO                            # conv elements per step (8192)

    patches = _build_patches(x_nchw, G, R)                              # (B,32,16384) bf16
    wc = params["conv1_w"].transpose(3, 0, 1, 2).reshape(COUT, K_TAPS)  # (8, 27)
    wc = jnp.pad(wc, ((0, 0), (0, K_PAD - K_TAPS))).astype(jnp.bfloat16)
    bc = params["conv1_b"].reshape(COUT, 1)
    w1 = params["fc1_w"].reshape(H1, COUT, HO * HO)                     # (16,8,4096) bf16
    b1 = params["fc1_b"].reshape(H1, 1)
    w2 = params["fc2_w"]                                                # (16, 1)
    b2 = params["fc2_b"].reshape(1, 1)

    out = pl.pallas_call(
        _sorting_net_kernel,
        out_shape=jax.ShapeDtypeStruct((B, 1, 1), jnp.float32),
        grid_spec=pltpu.PrefetchScalarGridSpec(
            num_scalar_prefetch=0,
            grid=(B, G),
            in_specs=[
                pl.BlockSpec((1, K_PAD, M_STEP), lambda b, g: (b, 0, g)),
                pl.BlockSpec((H1, COUT, R * HO), lambda b, g: (0, 0, g)),
                pl.BlockSpec((COUT, K_PAD), lambda b, g: (0, 0)),
                pl.BlockSpec((COUT, 1), lambda b, g: (0, 0)),
                pl.BlockSpec((H1, 1), lambda b, g: (0, 0)),
                pl.BlockSpec((H1, 1), lambda b, g: (0, 0)),
                pl.BlockSpec((1, 1), lambda b, g: (0, 0)),
            ],
            out_specs=pl.BlockSpec((1, 1, 1), lambda b, g: (b, 0, 0)),
            scratch_shapes=[pltpu.VMEM((H1, 1), jnp.float32)],
        ),
        compiler_params=pltpu.CompilerParams(
            dimension_semantics=("parallel", "arbitrary"),
            # Padded-tile budget: patches 0.5 MB + w1 1 MB (x2 buffers each)
            # + ~2.5 MB intermediates ~= 7 MB; 32 MiB fits every generation.
            vmem_limit_bytes=32 * 1024 * 1024),
    )(patches, w1, wc, bc, b1, w2, b2)
    return out.reshape(B, 1)


@jax.jit
def forward_reference(x_nchw, params):
    B = x_nchw.shape[0]
    x = jnp.transpose(x_nchw, (0, 2, 3, 1)).astype(jnp.bfloat16)        # NHWC bf16
    w = params["conv1_w"].astype(jnp.bfloat16)
    y = jax.lax.conv_general_dilated(
        x, w, window_strides=(1, 1), padding="SAME",
        dimension_numbers=("NHWC", "HWIO", "NHWC"),
        preferred_element_type=jnp.float32)
    y = jnp.maximum(y + params["conv1_b"], 0.0)
    y = jax.lax.reduce_window(y, -jnp.inf, jax.lax.max,
                              (1, 2, 2, 1), (1, 2, 2, 1), "VALID")
    feat = jnp.transpose(y, (0, 3, 1, 2)).reshape(B, -1)                 # NCHW flatten
    w1 = params["fc1_w"].astype(jnp.float32).reshape(H1, -1)             # (16, 32768)
    h1 = jnp.maximum(feat @ w1.T + params["fc1_b"], 0.0)
    logit = h1 @ params["fc2_w"] + params["fc2_b"]
    return 1.0 / (1.0 + jnp.exp(-logit))


if __name__ == "__main__":
    key = jax.random.PRNGKey(0)
    k_x, k_p = jax.random.split(key)
    # fc1 expects 8*64*64 features -> input spatial must be 128x128 (NCHW).
    x = jax.random.normal(k_x, (2, 3, H_IN, H_IN), jnp.float32)
    params = init_params(k_p)

    out = jax.block_until_ready(forward_pallas(x, params))
    ref = jax.block_until_ready(forward_reference(x, params))

    assert out.shape == (2, 1)
    assert bool(jnp.all(jnp.isfinite(out)))
    assert jnp.allclose(out, ref, rtol=1e-3, atol=1e-4), (out, ref)
    assert bool(jnp.all((out > 0.0) & (out < 1.0)))

    print("KERNEL_OK")
</pallas_src>

<mosaic_0001>
module attributes {stable_mosaic.version = 11 : i64} {
  func.func @_sorting_net_kernel(%arg0: i32, %arg1: i32, %arg2: memref<1x32x8192xbf16, #tpu.memory_space<vmem>>, %arg3: memref<16x8x2048xbf16, #tpu.memory_space<vmem>>, %arg4: memref<8x32xbf16, #tpu.memory_space<vmem>>, %arg5: memref<8x1xf32, #tpu.memory_space<vmem>>, %arg6: memref<16x1xf32, #tpu.memory_space<vmem>>, %arg7: memref<16x1xf32, #tpu.memory_space<vmem>>, %arg8: memref<1x1xf32, #tpu.memory_space<vmem>>, %arg9: memref<1x1x1xf32, #tpu.memory_space<vmem>>, %arg10: memref<16x1xf32, #tpu.memory_space<vmem>>) attributes {dimension_semantics = [#tpu.dimension_semantics<parallel>, #tpu.dimension_semantics<arbitrary>], iteration_bounds = array<i64: 2, 2>, scalar_prefetch = 0 : i64, scratch_operands = 1 : i64, tpu.core_type = #tpu.core_type<tc>, window_params = [{transform_indices = @transform_0, window_bounds = array<i64: 1, 32, 8192>}, {transform_indices = @transform_1, window_bounds = array<i64: 16, 8, 2048>}, {pipeline_mode = #tpu.pipeline_mode<synchronous>, transform_indices = @transform_2, window_bounds = array<i64: 8, 32>}, {pipeline_mode = #tpu.pipeline_mode<synchronous>, transform_indices = @transform_3, window_bounds = array<i64: 8, 1>}, {pipeline_mode = #tpu.pipeline_mode<synchronous>, transform_indices = @transform_4, window_bounds = array<i64: 16, 1>}, {pipeline_mode = #tpu.pipeline_mode<synchronous>, transform_indices = @transform_5, window_bounds = array<i64: 16, 1>}, {pipeline_mode = #tpu.pipeline_mode<synchronous>, transform_indices = @transform_6, window_bounds = array<i64: 1, 1>}, {transform_indices = @transform_7, window_bounds = array<i64: 1, 1, 1>}]} {
    %c0_i32 = arith.constant 0 : i32
    %0 = arith.cmpi eq, %arg1, %c0_i32 : i32
    %1 = arith.extui %0 : i1 to i32
    %c0_i32_0 = arith.constant 0 : i32
    %2 = arith.cmpi ne, %1, %c0_i32_0 : i32
    scf.if %2 {
      %cst_18 = arith.constant 0.000000e+00 : f32
      %33 = vector.broadcast %cst_18 : f32 to vector<16x1xf32>
      %c0_19 = arith.constant 0 : index
      %c0_20 = arith.constant 0 : index
      %34 = vector.load %arg10[%c0_19, %c0_20] : memref<16x1xf32, #tpu.memory_space<vmem>>, vector<16x1xf32>
      tpu.vector_store %arg10[%c0_19, %c0_20], %33 {strides = array<i32>} : memref<16x1xf32, #tpu.memory_space<vmem>>, vector<16x1xf32>,
    } else {
    }
    %c0 = arith.constant 0 : index
    %c0_1 = arith.constant 0 : index
    %3 = vector.load %arg4[%c0, %c0_1] : memref<8x32xbf16, #tpu.memory_space<vmem>>, vector<8x32xbf16>
    %c0_2 = arith.constant 0 : index
    %c0_3 = arith.constant 0 : index
    %c0_4 = arith.constant 0 : index
    %4 = vector.load %arg2[%c0_2, %c0_3, %c0_4] : memref<1x32x8192xbf16, #tpu.memory_space<vmem>>, vector<1x32x8192xbf16>
    %5 = vector.shape_cast %4 : vector<1x32x8192xbf16> to vector<32x8192xbf16>
    %cst = arith.constant dense<0.000000e+00> : vector<8x8192xf32>
    %6 = tpu.matmul %3, %5, %cst {dimension_numbers = #tpu.dot_dimension_numbers<[1], [0], [0], [1], [0, 0, 1, 1], [], []>} : vector<8x32xbf16>, vector<32x8192xbf16>, vector<8x8192xf32> -> vector<8x8192xf32>
    %c0_5 = arith.constant 0 : index
    %c0_6 = arith.constant 0 : index
    %7 = vector.load %arg5[%c0_5, %c0_6] : memref<8x1xf32, #tpu.memory_space<vmem>>, vector<8x1xf32>
    %8 = vector.broadcast %7 : vector<8x1xf32> to vector<8x8192xf32>
    %9 = arith.addf %6, %8 : vector<8x8192xf32>
    %cst_7 = arith.constant 0.000000e+00 : f32
    %10 = vector.broadcast %cst_7 : f32 to vector<8x8192xf32>
    %11 = arith.maximumf %9, %10 : vector<8x8192xf32>
    %12 = vector.extract_strided_slice %11 {offsets = [0, 0], sizes = [8, 2048], strides = [1, 1]} : vector<8x8192xf32> to vector<8x2048xf32>
    %13 = vector.extract_strided_slice %11 {offsets = [0, 2048], sizes = [8, 2048], strides = [1, 1]} : vector<8x8192xf32> to vector<8x2048xf32>
    %14 = arith.maximumf %12, %13 : vector<8x2048xf32>
    %15 = vector.extract_strided_slice %11 {offsets = [0, 4096], sizes = [8, 2048], strides = [1, 1]} : vector<8x8192xf32> to vector<8x2048xf32>
    %16 = vector.extract_strided_slice %11 {offsets = [0, 6144], sizes = [8, 2048], strides = [1, 1]} : vector<8x8192xf32> to vector<8x2048xf32>
    %17 = arith.maximumf %15, %16 : vector<8x2048xf32>
    %18 = arith.maximumf %14, %17 : vector<8x2048xf32>
    %c0_8 = arith.constant 0 : index
    %c0_9 = arith.constant 0 : index
    %c0_10 = arith.constant 0 : index
    %19 = vector.load %arg3[%c0_8, %c0_9, %c0_10] : memref<16x8x2048xbf16, #tpu.memory_space<vmem>>, vector<16x8x2048xbf16>
    %20 = arith.extf %19 : vector<16x8x2048xbf16> to vector<16x8x2048xf32>
    %21 = vector.shape_cast %18 : vector<8x2048xf32> to vector<1x8x2048xf32>
    %22 = vector.broadcast %21 : vector<1x8x2048xf32> to vector<16x8x2048xf32>
    %23 = arith.mulf %22, %20 : vector<16x8x2048xf32>
    %cst_11 = arith.constant dense<0.000000e+00> : vector<16x2048xf32>
    %24 = vector.multi_reduction <add>, %23, %cst_11 [1] : vector<16x8x2048xf32> to vector<16x2048xf32>
    %c0_12 = arith.constant 0 : index
    %c0_13 = arith.constant 0 : index
    %25 = vector.load %arg10[%c0_12, %c0_13] : memref<16x1xf32, #tpu.memory_space<vmem>>, vector<16x1xf32>
    %cst_14 = arith.constant dense<0.000000e+00> : vector<16xf32>
    %26 = vector.multi_reduction <add>, %24, %cst_14 [1] : vector<16x2048xf32> to vector<16xf32>
    %27 = vector.shape_cast %26 : vector<16xf32> to vector<16x1xf32>
    %28 = arith.addf %25, %27 : vector<16x1xf32>
    %c0_15 = arith.constant 0 : index
    %c0_16 = arith.constant 0 : index
    %29 = vector.load %arg10[%c0_15, %c0_16] : memref<16x1xf32, #tpu.memory_space<vmem>>, vector<16x1xf32>
    tpu.vector_store %arg10[%c0_15, %c0_16], %28 {strides = array<i32>} : memref<16x1xf32, #tpu.memory_space<vmem>>, vector<16x1xf32>,
    %c1_i32 = arith.constant 1 : i32
    %30 = arith.cmpi eq, %arg1, %c1_i32 : i32
    %31 = arith.extui %30 : i1 to i32
    %c0_i32_17 = arith.constant 0 : i32
    %32 = arith.cmpi ne, %31, %c0_i32_17 : i32
    scf.if %32 {
      %c0_18 = arith.constant 0 : index
      %c0_19 = arith.constant 0 : index
      %33 = vector.load %arg10[%c0_18, %c0_19] : memref<16x1xf32, #tpu.memory_space<vmem>>, vector<16x1xf32>
      %c0_20 = arith.constant 0 : index
      %c0_21 = arith.constant 0 : index
      %34 = vector.load %arg6[%c0_20, %c0_21] : memref<16x1xf32, #tpu.memory_space<vmem>>, vector<16x1xf32>
      %35 = arith.addf %33, %34 : vector<16x1xf32>
      %cst_22 = arith.constant 0.000000e+00 : f32
      %36 = vector.broadcast %cst_22 : f32 to vector<16x1xf32>
      %37 = arith.maximumf %35, %36 : vector<16x1xf32>
      %c0_23 = arith.constant 0 : index
      %c0_24 = arith.constant 0 : index
      %38 = vector.load %arg7[%c0_23, %c0_24] : memref<16x1xf32, #tpu.memory_space<vmem>>, vector<16x1xf32>
      %39 = arith.mulf %37, %38 : vector<16x1xf32>
      %cst_25 = arith.constant dense<0.000000e+00> : vector<1xf32>
      %40 = vector.multi_reduction <add>, %39, %cst_25 [0] : vector<16x1xf32> to vector<1xf32>
      %41 = vector.shape_cast %40 : vector<1xf32> to vector<1x1xf32>
      %c0_26 = arith.constant 0 : index
      %c0_27 = arith.constant 0 : index
      %42 = vector.load %arg8[%c0_26, %c0_27] : memref<1x1xf32, #tpu.memory_space<vmem>>, vector<1x1xf32>
      %43 = arith.addf %41, %42 : vector<1x1xf32>
      %cst_28 = arith.constant 0.000000e+00 : f32
      %44 = vector.broadcast %cst_28 : f32 to vector<1x1xf32>
      %45 = arith.subf %44, %43 : vector<1x1xf32>
      %46 = math.exp %45 : vector<1x1xf32>
      %cst_29 = arith.constant 1.000000e+00 : f32
      %47 = vector.broadcast %cst_29 : f32 to vector<1x1xf32>
      %48 = arith.addf %47, %46 : vector<1x1xf32>
      %cst_30 = arith.constant 1.000000e+00 : f32
      %49 = vector.broadcast %cst_30 : f32 to vector<1x1xf32>
      %50 = arith.divf %49, %48 : vector<1x1xf32>
      %51 = vector.shape_cast %50 : vector<1x1xf32> to vector<1x1x1xf32>
      %c0_31 = arith.constant 0 : index
      %c0_32 = arith.constant 0 : index
      %c0_33 = arith.constant 0 : index
      %52 = vector.load %arg9[%c0_31, %c0_32, %c0_33] : memref<1x1x1xf32, #tpu.memory_space<vmem>>, vector<1x1x1xf32>
      tpu.vector_store %arg9[%c0_31, %c0_32, %c0_33], %51 {strides = array<i32>} : memref<1x1x1xf32, #tpu.memory_space<vmem>>, vector<1x1x1xf32>,
    } else {
    }
    return
  }
  func.func @transform_0(%arg0: i32, %arg1: i32) -> (i32, i32, i32) {
    %c0_i32 = arith.constant 0 : i32
    %c0_i32_0 = arith.constant 0 : i32
    return %arg0, %c0_i32, %arg1 : i32, i32, i32
  }
  func.func @transform_1(%arg0: i32, %arg1: i32) -> (i32, i32, i32) {
    %c0_i32 = arith.constant 0 : i32
    %c0_i32_0 = arith.constant 0 : i32
    %c0_i32_1 = arith.constant 0 : i32
    return %c0_i32, %c0_i32_0, %arg1 : i32, i32, i32
  }
  func.func @transform_2(%arg0: i32, %arg1: i32) -> (i32, i32) {
    %c0_i32 = arith.constant 0 : i32
    %c0_i32_0 = arith.constant 0 : i32
    %c0_i32_1 = arith.constant 0 : i32
    return %c0_i32, %c0_i32_0 : i32, i32
  }
  func.func @transform_3(%arg0: i32, %arg1: i32) -> (i32, i32) {
    %c0_i32 = arith.constant 0 : i32
    %c0_i32_0 = arith.constant 0 : i32
    %c0_i32_1 = arith.constant 0 : i32
    return %c0_i32, %c0_i32_0 : i32, i32
  }
  func.func @transform_4(%arg0: i32, %arg1: i32) -> (i32, i32) {
    %c0_i32 = arith.constant 0 : i32
    %c0_i32_0 = arith.constant 0 : i32
    %c0_i32_1 = arith.constant 0 : i32
    return %c0_i32, %c0_i32_0 : i32, i32
  }
  func.func @transform_5(%arg0: i32, %arg1: i32) -> (i32, i32) {
    %c0_i32 = arith.constant 0 : i32
    %c0_i32_0 = arith.constant 0 : i32
    %c0_i32_1 = arith.constant 0 : i32
    return %c0_i32, %c0_i32_0 : i32, i32
  }
  func.func @transform_6(%arg0: i32, %arg1: i32) -> (i32, i32) {
    %c0_i32 = arith.constant 0 : i32
    %c0_i32_0 = arith.constant 0 : i32
    %c0_i32_1 = arith.constant 0 : i32
    return %c0_i32, %c0_i32_0 : i32, i32
  }
  func.func @transform_7(%arg0: i32, %arg1: i32) -> (i32, i32, i32) {
    %c0_i32 = arith.constant 0 : i32
    %c0_i32_0 = arith.constant 0 : i32
    %c0_i32_1 = arith.constant 0 : i32
    return %arg0, %c0_i32, %c0_i32_0 : i32, i32, i32
  }
}

</mosaic_0001>

<llo_original>
// kernel: forward_pallas.1
$region0: #{forward_pallas.1}
  #allocation0 [shape = 'u32[]', space=smem, size = 0x4, offset = 0x4, fixed_abs, tag = 'smem constant byte address 0x4 - core index']
  #allocation1 [shape = 'u32[144,128]{1,0:T(1,128)}', space=vmem, size = 0x12000, scoped, tag = 'internal scratch']
  #allocation2 [shape = 'f32[16,1]{1,0:T(8,128)}', space=vmem, size = 0x2000, scoped, tag = 'scratch operand']
  #allocation3 [shape = 'f32[1,1]{1,0:T(1,128)S(1)}', space=vmem, size = 0x200, scoped, tag = 'scoped memory for forward_pallas.1']
  %s0 = inlined_call_operand.vmem [shape: bf16[2,32,16384], index: 0, kind: input, shape index: {}]
  %s1 = inlined_call_operand.vmem [shape: bf16[16,8,4096], index: 1, kind: input, shape index: {}]
  %s2 = inlined_call_operand.vmem [shape: bf16[8,32], index: 2, kind: input, shape index: {}]
  %s3 = inlined_call_operand.vmem [shape: f32[8,1], index: 3, kind: input, shape index: {}]
  %s4 = inlined_call_operand.vmem [shape: f32[16,1], index: 4, kind: input, shape index: {}]
  %s5 = inlined_call_operand.vmem [shape: f32[16,1], index: 5, kind: input, shape index: {}]
  %s6 = inlined_call_operand.<no memory space> [shape: f32[1,1], index: 6, kind: input, shape index: {}]
  %s7 = inlined_call_operand.vmem [shape: f32[2,1,1], index: 7, kind: output, shape index: {}]
  %s8 = sld [smem:[#allocation0]]
  $region115: #{forward_pallas.1} parent=0
    _
  %s10 = ssub.s32 1, %s8
  %s11 = scalar_select 0, %s10, %s8
  %v12 = vstv %s6
  %13 = vst [vmem:[#allocation3] sm:$0x1] %v12
  $region1: #{forward_pallas.1} parent=0
    #allocation4 [shape = 'u8[1048576]{0}', space=vmem, size = 0x100000, scoped, tag = 'input window, operand 0']
    #allocation5 [shape = 'u8[1048576]{0}', space=vmem, size = 0x100000, scoped, tag = 'input window, operand 1']
    loop: start=0, step=1, limit=6
    $region2: #{forward_pallas.1} parent=1 // loop_pre_header
      _
    $region3: #{forward_pallas.1} parent=1 // loop_header
      %s15 = sphi 0, %s19
      %p16 = scmp.ge.s32.totalorder %s15, 6
      %s22 = sphi 0, %s34
      %s23 = sphi 0, %s30
      %s24 = sphi 0, %s22
      %s25 = sphi 0, %s23
      %s26 = sphi 0, %s24
      %s27 = sphi 0, %s25
      %s39 = sphi 0, %s41
      %s42 = sphi 0, %s39
      %s43 = sphi 0, %s42
      %s59 = sphi 0, %s43
      %s65 = sphi 0, %s67
      %s68 = sphi 0, %s65
      %s69 = sphi 0, %s68
      %s85 = sphi 0, %s69
      %s89 = sphi 0, %s89
      %s91 = sphi 0, %s89
      %s92 = sphi 0, %s91
      %s106 = sphi 0, %s92
      %s110 = sphi 0, %s110
      %s112 = sphi 0, %s110
      %s113 = sphi 0, %s112
      %s127 = sphi 0, %s113
      %s131 = sphi 0, %s131
      %s133 = sphi 0, %s131
      %s134 = sphi 0, %s133
      %s148 = sphi 0, %s134
      %s152 = sphi 0, %s152
      %s154 = sphi 0, %s152
      %s155 = sphi 0, %s154
      %s169 = sphi 0, %s155
      %s173 = sphi 0, %s173
      %s175 = sphi 0, %s173
      %s176 = sphi 0, %s175
      %s190 = sphi 0, %s176
      %s196 = sphi 0, %s198
      %s199 = sphi 0, %s196
      %s200 = sphi 0, %s199
      %s216 = sphi 0, %s200
    $region4: #{forward_pallas.1} parent=1 // loop_header_branch
      %18 = sbr.rel (%p16) target = $region8
    $region5: #{forward_pallas.1} parent=1 // loop_body
      %s20 = ssub.s32 %s15, 1
      %s21 = ssub.s32 %s15, 2
      %s28 = sadd.s32 1, %s23
      %p29 = scmp.ge.s32.totalorder %s28, 2
      %s30 = scalar_select %p29, 0, %s28
      %s31 = sadd.s32 1, %s22
      %s32 = scalar_select %p29, %s31, %s22
      %p33 = scmp.ge.s32.totalorder %s32, 2
      %s34 = scalar_select %p33, 0, %s32
      %s35 = ssub.s32 %s22, %s34
      %s36 = ssub.s32 %s23, %s30
      %s37 = sor.u32 %s35, %s36
      %p38 = scmp.eq.s32.totalorder %s37, 0
      %s40 = sadd.s32 %s39, 1
      %s41 = scalar_select %p38, %s39, %s40
      %p44 = pneg %p38
      %p45 = scmp.eq.s32.totalorder %s15, 3
      %p46 = por %p44, %p45
      %p47 = scmp.ne.s32.totalorder %s39, %s42
      %p48 = scmp.eq.s32.totalorder %s15, 0
      %p49 = por %p47, %p48
      %p50 = scmp.ne.s32.totalorder %s39, %s42
      %p51 = scmp.eq.s32.totalorder %s20, 3
      %p52 = por %p50, %p51
      %p53 = scmp.ne.s32.totalorder %s42, %s43
      %p54 = scmp.eq.s32.totalorder %s20, 0
      %p55 = por %p53, %p54
      %p56 = scmp.ne.s32.totalorder %s42, %s43
      %p57 = scmp.eq.s32.totalorder %s21, 3
      %p58 = por %p56, %p57
      %p60 = scmp.ne.s32.totalorder %s43, %s59
      %p61 = scmp.eq.s32.totalorder %s21, 0
      %p62 = por %p60, %p61
      %s63 = ssub.s32 %s23, %s30
      %p64 = scmp.eq.s32.totalorder %s63, 0
      %s66 = sadd.s32 %s65, 1
      %s67 = scalar_select %p64, %s65, %s66
      %p70 = pneg %p64
      %p71 = scmp.eq.s32.totalorder %s15, 3
      %p72 = por %p70, %p71
      %p73 = scmp.ne.s32.totalorder %s65, %s68
      %p74 = scmp.eq.s32.totalorder %s15, 0
      %p75 = por %p73, %p74
      %p76 = scmp.ne.s32.totalorder %s65, %s68
      %p77 = scmp.eq.s32.totalorder %s20, 3
      %p78 = por %p76, %p77
      %p79 = scmp.ne.s32.totalorder %s68, %s69
      %p80 = scmp.eq.s32.totalorder %s20, 0
      %p81 = por %p79, %p80
      %p82 = scmp.ne.s32.totalorder %s68, %s69
      %p83 = scmp.eq.s32.totalorder %s21, 3
      %p84 = por %p82, %p83
      %p86 = scmp.ne.s32.totalorder %s69, %s85
      %p87 = scmp.eq.s32.totalorder %s21, 0
      %p88 = por %p86, %p87
      %s90 = sadd.s32 %s89, 1
      %p93 = scmp.eq.s32.totalorder %s15, 3
      %p94 = scmp.ne.s32.totalorder %s89, %s91
      %p95 = scmp.eq.s32.totalorder %s15, 0
      %p96 = por %p94, %p95
      %p97 = scmp.ne.s32.totalorder %s89, %s91
      %p98 = scmp.eq.s32.totalorder %s20, 3
      %p99 = por %p97, %p98
      %p100 = scmp.ne.s32.totalorder %s91, %s92
      %p101 = scmp.eq.s32.totalorder %s20, 0
      %p102 = por %p100, %p101
      %p103 = scmp.ne.s32.totalorder %s91, %s92
      %p104 = scmp.eq.s32.totalorder %s21, 3
      %p105 = por %p103, %p104
      %p107 = scmp.ne.s32.totalorder %s92, %s106
      %p108 = scmp.eq.s32.totalorder %s21, 0
      %p109 = por %p107, %p108
      %s111 = sadd.s32 %s110, 1
      %p114 = scmp.eq.s32.totalorder %s15, 3
      %p115 = scmp.ne.s32.totalorder %s110, %s112
      %p116 = scmp.eq.s32.totalorder %s15, 0
      %p117 = por %p115, %p116
      %p118 = scmp.ne.s32.totalorder %s110, %s112
      %p119 = scmp.eq.s32.totalorder %s20, 3
      %p120 = por %p118, %p119
      %p121 = scmp.ne.s32.totalorder %s112, %s113
      %p122 = scmp.eq.s32.totalorder %s20, 0
      %p123 = por %p121, %p122
      %p124 = scmp.ne.s32.totalorder %s112, %s113
      %p125 = scmp.eq.s32.totalorder %s21, 3
      %p126 = por %p124, %p125
      %p128 = scmp.ne.s32.totalorder %s113, %s127
      %p129 = scmp.eq.s32.totalorder %s21, 0
      %p130 = por %p128, %p129
      %s132 = sadd.s32 %s131, 1
      %p135 = scmp.eq.s32.totalorder %s15, 3
      %p136 = scmp.ne.s32.totalorder %s131, %s133
      %p137 = scmp.eq.s32.totalorder %s15, 0
      %p138 = por %p136, %p137
      %p139 = scmp.ne.s32.totalorder %s131, %s133
      %p140 = scmp.eq.s32.totalorder %s20, 3
      %p141 = por %p139, %p140
      %p142 = scmp.ne.s32.totalorder %s133, %s134
      %p143 = scmp.eq.s32.totalorder %s20, 0
      %p144 = por %p142, %p143
      %p145 = scmp.ne.s32.totalorder %s133, %s134
      %p146 = scmp.eq.s32.totalorder %s21, 3
      %p147 = por %p145, %p146
      %p149 = scmp.ne.s32.totalorder %s134, %s148
      %p150 = scmp.eq.s32.totalorder %s21, 0
      %p151 = por %p149, %p150
      %s153 = sadd.s32 %s152, 1
      %p156 = scmp.eq.s32.totalorder %s15, 3
      %p157 = scmp.ne.s32.totalorder %s152, %s154
      %p158 = scmp.eq.s32.totalorder %s15, 0
      %p159 = por %p157, %p158
      %p160 = scmp.ne.s32.totalorder %s152, %s154
      %p161 = scmp.eq.s32.totalorder %s20, 3
      %p162 = por %p160, %p161
      %p163 = scmp.ne.s32.totalorder %s154, %s155
      %p164 = scmp.eq.s32.totalorder %s20, 0
      %p165 = por %p163, %p164
      %p166 = scmp.ne.s32.totalorder %s154, %s155
      %p167 = scmp.eq.s32.totalorder %s21, 3
      %p168 = por %p166, %p167
      %p170 = scmp.ne.s32.totalorder %s155, %s169
      %p171 = scmp.eq.s32.totalorder %s21, 0
      %p172 = por %p170, %p171
      %s174 = sadd.s32 %s173, 1
      %p177 = scmp.eq.s32.totalorder %s15, 3
      %p178 = scmp.ne.s32.totalorder %s173, %s175
      %p179 = scmp.eq.s32.totalorder %s15, 0
      %p180 = por %p178, %p179
      %p181 = scmp.ne.s32.totalorder %s173, %s175
      %p182 = scmp.eq.s32.totalorder %s20, 3
      %p183 = por %p181, %p182
      %p184 = scmp.ne.s32.totalorder %s175, %s176
      %p185 = scmp.eq.s32.totalorder %s20, 0
      %p186 = por %p184, %p185
      %p187 = scmp.ne.s32.totalorder %s175, %s176
      %p188 = scmp.eq.s32.totalorder %s21, 3
      %p189 = por %p187, %p188
      %p191 = scmp.ne.s32.totalorder %s176, %s190
      %p192 = scmp.eq.s32.totalorder %s21, 0
      %p193 = por %p191, %p192
      %s194 = ssub.s32 %s22, %s34
      %p195 = scmp.eq.s32.totalorder %s194, 0
      %s197 = sadd.s32 %s196, 1
      %s198 = scalar_select %p195, %s196, %s197
      %p201 = pneg %p195
      %p202 = scmp.eq.s32.totalorder %s15, 3
      %p203 = por %p201, %p202
      %p204 = scmp.ne.s32.totalorder %s196, %s199
      %p205 = scmp.eq.s32.totalorder %s15, 0
      %p206 = por %p204, %p205
      %p207 = scmp.ne.s32.totalorder %s196, %s199
      %p208 = scmp.eq.s32.totalorder %s20, 3
      %p209 = por %p207, %p208
      %p210 = scmp.ne.s32.totalorder %s199, %s200
      %p211 = scmp.eq.s32.totalorder %s20, 0
      %p212 = por %p210, %p211
      %p213 = scmp.ne.s32.totalorder %s199, %s200
      %p214 = scmp.eq.s32.totalorder %s21, 3
      %p215 = por %p213, %p214
      %p217 = scmp.ne.s32.totalorder %s200, %s216
      %p218 = scmp.eq.s32.totalorder %s21, 0
      %p219 = por %p217, %p218
      %p220 = scmp.le.s32.totalorder 1, %s15
      %p221 = scmp.lt.s32.totalorder %s15, 5
      %p222 = pnand %p220, %p221
      %p223 = pneg %p222
      // Predicated region
      $region9: #{forward_pallas.1} parent=5 // pred_check
        _
      $region10: #{forward_pallas.1} parent=5 // pred_check_branch
        %225 = sbr.rel (%p222) target = $region12
      $region11: #{forward_pallas.1} parent=5 // pred_region
        %s226 = ssub.s32 %s15, 1
        // Predicated region
        $region13: #{forward_pallas.1} parent=11 // pred_check
          %p227 = pneg %p102
        $region14: #{forward_pallas.1} parent=11 // pred_check_branch
          %229 = sbr.rel (%p227) target = $region16
        $region15: #{forward_pallas.1} parent=11 // pred_region
          _
        $region16: #{forward_pallas.1} parent=11 // pred_fallthru
          _
        // Predicated region
        $region17: #{forward_pallas.1} parent=11 // pred_check
          %p230 = pneg %p123
        $region18: #{forward_pallas.1} parent=11 // pred_check_branch
          %232 = sbr.rel (%p230) target = $region20
        $region19: #{forward_pallas.1} parent=11 // pred_region
          _
        $region20: #{forward_pallas.1} parent=11 // pred_fallthru
          _
        // Predicated region
        $region21: #{forward_pallas.1} parent=11 // pred_check
          %p233 = pneg %p144
        $region22: #{forward_pallas.1} parent=11 // pred_check_branch
          %235 = sbr.rel (%p233) target = $region24
        $region23: #{forward_pallas.1} parent=11 // pred_region
          _
        $region24: #{forward_pallas.1} parent=11 // pred_fallthru
          _
        // Predicated region
        $region25: #{forward_pallas.1} parent=11 // pred_check
          %p236 = pneg %p165
        $region26: #{forward_pallas.1} parent=11 // pred_check_branch
          %238 = sbr.rel (%p236) target = $region28
        $region27: #{forward_pallas.1} parent=11 // pred_region
          _
        $region28: #{forward_pallas.1} parent=11 // pred_fallthru
          _
        // Predicated region
        $region29: #{forward_pallas.1} parent=11 // pred_check
          %p239 = pneg %p186
        $region30: #{forward_pallas.1} parent=11 // pred_check_branch
          %241 = sbr.rel (%p239) target = $region32
        $region31: #{forward_pallas.1} parent=11 // pred_region
          _
        $region32: #{forward_pallas.1} parent=11 // pred_fallthru
          _
      $region12: #{forward_pallas.1} parent=5 // pred_fallthru
        _
      %p242 = scmp.lt.s32.totalorder %s15, 4
      // Predicated region
      $region33: #{forward_pallas.1} parent=5 // pred_check
        %p243 = pneg %p242
      $region34: #{forward_pallas.1} parent=5 // pred_check_branch
        %245 = sbr.rel (%p243) target = $region36
      $region35: #{forward_pallas.1} parent=5 // pred_region
        // Predicated region
        $region37: #{forward_pallas.1} parent=35 // pred_check
          %p246 = pneg %p49
        $region38: #{forward_pallas.1} parent=35 // pred_check_branch
          %248 = sbr.rel (%p246) target = $region40
        $region39: #{forward_pallas.1} parent=35 // pred_region
          %s249 = sand.u32 %s39, 1
          %s250 = sand.u32 %s39, 1
          %s251 = smul.addr %s250, 1024
          %s252 = scalar_lea.vmem [#allocation4], %s251
          %s253 = smul.u32 64, %s23
          %s254 = smul.addr %s22, 512
          %s255 = sadd.s32 %s253, %s254
          %s256 = smul.addr %s255, 4
          %s257 = scalar_lea.vmem %s0, %s256
          // Predicated region
          $region41: #{forward_pallas.1} parent=39 // pred_check
            _
          $region42: #{forward_pallas.1} parent=39 // pred_check_branch
            %259 = sbr.rel (0) target = $region44
          $region43: #{forward_pallas.1} parent=39 // pred_region
            // Predicated region
            $region45: #{forward_pallas.1} parent=43 // pred_check
              _
            $region46: #{forward_pallas.1} parent=43 // pred_check_branch
              %261 = sbr.rel (0) target = $region48
            $region47: #{forward_pallas.1} parent=43 // pred_region
              loop: start=0, step=1, limit=1
              $region49: #{forward_pallas.1} parent=47 // loop_pre_header
                _
              $region50: #{forward_pallas.1} parent=47 // loop_header
                %s263 = sphi 0, %s267
                %p264 = scmp.ge.s32.totalorder %s263, 1
                %s268 = sphi %s257, %s257
                %s269 = sphi %s252, %s252
              $region51: #{forward_pallas.1} parent=47 // loop_header_branch
                %266 = sbr.rel (%p264) target = $region55
              $region52: #{forward_pallas.1} parent=47 // loop_body
                %v270 = vld [vmem:[%s268] sm:$0xff]
                %271 = vst [vmem:[%s269] sm:$0xff] %v270
                %v272 = vld [vmem:[%s268 + $0x8] sm:$0xff]
                %273 = vst [vmem:[%s269 + $0x8] sm:$0xff] %v272
                %v274 = vld [vmem:[%s268 + $0x10] sm:$0xff]
                %275 = vst [vmem:[%s269 + $0x10] sm:$0xff] %v274
                %v276 = vld [vmem:[%s268 + $0x18] sm:$0xff]
                %277 = vst [vmem:[%s269 + $0x18] sm:$0xff] %v276
                %v278 = vld [vmem:[%s268 + $0x20] sm:$0xff]
                %279 = vst [vmem:[%s269 + $0x20] sm:$0xff] %v278
                %v280 = vld [vmem:[%s268 + $0x28] sm:$0xff]
                %281 = vst [vmem:[%s269 + $0x28] sm:$0xff] %v280
                %v282 = vld [vmem:[%s268 + $0x30] sm:$0xff]
                %283 = vst [vmem:[%s269 + $0x30] sm:$0xff] %v282
                %v284 = vld [vmem:[%s268 + $0x38] sm:$0xff]
                %285 = vst [vmem:[%s269 + $0x38] sm:$0xff] %v284
                %v286 = vld [vmem:[%s268 + $0x40] sm:$0xff]
                %287 = vst [vmem:[%s269 + $0x40] sm:$0xff] %v286
                %v288 = vld [vmem:[%s268 + $0x48] sm:$0xff]
                %289 = vst [vmem:[%s269 + $0x48] sm:$0xff] %v288
                %v290 = vld [vmem:[%s268 + $0x50] sm:$0xff]
                %291 = vst [vmem:[%s269 + $0x50] sm:$0xff] %v290
                %v292 = vld [vmem:[%s268 + $0x58] sm:$0xff]
                %293 = vst [vmem:[%s269 + $0x58] sm:$0xff] %v292
                %v294 = vld [vmem:[%s268 + $0x60] sm:$0xff]
                %295 = vst [vmem:[%s269 + $0x60] sm:$0xff] %v294
                %v296 = vld [vmem:[%s268 + $0x68] sm:$0xff]
                %297 = vst [vmem:[%s269 + $0x68] sm:$0xff] %v296
                %v298 = vld [vmem:[%s268 + $0x70] sm:$0xff]
                %299 = vst [vmem:[%s269 + $0x70] sm:$0xff] %v298
                %v300 = vld [vmem:[%s268 + $0x78] sm:$0xff]
                %301 = vst [vmem:[%s269 + $0x78] sm:$0xff] %v300
                %v302 = vld [vmem:[%s268 + $0x80] sm:$0xff]
                %303 = vst [vmem:[%s269 + $0x80] sm:$0xff] %v302
                %v304 = vld [vmem:[%s268 + $0x88] sm:$0xff]
                %305 = vst [vmem:[%s269 + $0x88] sm:$0xff] %v304
                %v306 = vld [vmem:[%s268 + $0x90] sm:$0xff]
                %307 = vst [vmem:[%s269 + $0x90] sm:$0xff] %v306
                %v308 = vld [vmem:[%s268 + $0x98] sm:$0xff]
                %309 = vst [vmem:[%s269 + $0x98] sm:$0xff] %v308
                %v310 = vld [vmem:[%s268 + $0xa0] sm:$0xff]
                %311 = vst [vmem:[%s269 + $0xa0] sm:$0xff] %v310
                %v312 = vld [vmem:[%s268 + $0xa8] sm:$0xff]
                %313 = vst [vmem:[%s269 + $0xa8] sm:$0xff] %v312
                %v314 = vld [vmem:[%s268 + $0xb0] sm:$0xff]
                %315 = vst [vmem:[%s269 + $0xb0] sm:$0xff] %v314
                %v316 = vld [vmem:[%s268 + $0xb8] sm:$0xff]
                %317 = vst [vmem:[%s269 + $0xb8] sm:$0xff] %v316
                %v318 = vld [vmem:[%s268 + $0xc0] sm:$0xff]
                %319 = vst [vmem:[%s269 + $0xc0] sm:$0xff] %v318
                %v320 = vld [vmem:[%s268 + $0xc8] sm:$0xff]
                %321 = vst [vmem:[%s269 + $0xc8] sm:$0xff] %v320
                %v322 = vld [vmem:[%s268 + $0xd0] sm:$0xff]
                %323 = vst [vmem:[%s269 + $0xd0] sm:$0xff] %v322
                %v324 = vld [vmem:[%s268 + $0xd8] sm:$0xff]
                %325 = vst [vmem:[%s269 + $0xd8] sm:$0xff] %v324
                %v326 = vld [vmem:[%s268 + $0xe0] sm:$0xff]
                %327 = vst [vmem:[%s269 + $0xe0] sm:$0xff] %v326
                %v328 = vld [vmem:[%s268 + $0xe8] sm:$0xff]
                %329 = vst [vmem:[%s269 + $0xe8] sm:$0xff] %v328
                %v330 = vld [vmem:[%s268 + $0xf0] sm:$0xff]
                %331 = vst [vmem:[%s269 + $0xf0] sm:$0xff] %v330
                %v332 = vld [vmem:[%s268 + $0xf8] sm:$0xff]
                %333 = vst [vmem:[%s269 + $0xf8] sm:$0xff] %v332
                %v334 = vld [vmem:[%s268 + $0x200] sm:$0xff]
                %335 = vst [vmem:[%s269 + $0x100] sm:$0xff] %v334
                %v336 = vld [vmem:[%s268 + $0x208] sm:$0xff]
                %337 = vst [vmem:[%s269 + $0x108] sm:$0xff] %v336
                %v338 = vld [vmem:[%s268 + $0x210] sm:$0xff]
                %339 = vst [vmem:[%s269 + $0x110] sm:$0xff] %v338
                %v340 = vld [vmem:[%s268 + $0x218] sm:$0xff]
                %341 = vst [vmem:[%s269 + $0x118] sm:$0xff] %v340
                %v342 = vld [vmem:[%s268 + $0x220] sm:$0xff]
                %343 = vst [vmem:[%s269 + $0x120] sm:$0xff] %v342
                %v344 = vld [vmem:[%s268 + $0x228] sm:$0xff]
                %345 = vst [vmem:[%s269 + $0x128] sm:$0xff] %v344
                %v346 = vld [vmem:[%s268 + $0x230] sm:$0xff]
                %347 = vst [vmem:[%s269 + $0x130] sm:$0xff] %v346
                %v348 = vld [vmem:[%s268 + $0x238] sm:$0xff]
                %349 = vst [vmem:[%s269 + $0x138] sm:$0xff] %v348
                %v350 = vld [vmem:[%s268 + $0x240] sm:$0xff]
                %351 = vst [vmem:[%s269 + $0x140] sm:$0xff] %v350
                %v352 = vld [vmem:[%s268 + $0x248] sm:$0xff]
                %353 = vst [vmem:[%s269 + $0x148] sm:$0xff] %v352
                %v354 = vld [vmem:[%s268 + $0x250] sm:$0xff]
                %355 = vst [vmem:[%s269 + $0x150] sm:$0xff] %v354
                %v356 = vld [vmem:[%s268 + $0x258] sm:$0xff]
                %357 = vst [vmem:[%s269 + $0x158] sm:$0xff] %v356
                %v358 = vld [vmem:[%s268 + $0x260] sm:$0xff]
                %359 = vst [vmem:[%s269 + $0x160] sm:$0xff] %v358
                %v360 = vld [vmem:[%s268 + $0x268] sm:$0xff]
                %361 = vst [vmem:[%s269 + $0x168] sm:$0xff] %v360
                %v362 = vld [vmem:[%s268 + $0x270] sm:$0xff]
                %363 = vst [vmem:[%s269 + $0x170] sm:$0xff] %v362
                %v364 = vld [vmem:[%s268 + $0x278] sm:$0xff]
                %365 = vst [vmem:[%s269 + $0x178] sm:$0xff] %v364
                %v366 = vld [vmem:[%s268 + $0x280] sm:$0xff]
                %367 = vst [vmem:[%s269 + $0x180] sm:$0xff] %v366
                %v368 = vld [vmem:[%s268 + $0x288] sm:$0xff]
                %369 = vst [vmem:[%s269 + $0x188] sm:$0xff] %v368
                %v370 = vld [vmem:[%s268 + $0x290] sm:$0xff]
                %371 = vst [vmem:[%s269 + $0x190] sm:$0xff] %v370
                %v372 = vld [vmem:[%s268 + $0x298] sm:$0xff]
                %373 = vst [vmem:[%s269 + $0x198] sm:$0xff] %v372
                %v374 = vld [vmem:[%s268 + $0x2a0] sm:$0xff]
                %375 = vst [vmem:[%s269 + $0x1a0] sm:$0xff] %v374
                %v376 = vld [vmem:[%s268 + $0x2a8] sm:$0xff]
                %377 = vst [vmem:[%s269 + $0x1a8] sm:$0xff] %v376
                %v378 = vld [vmem:[%s268 + $0x2b0] sm:$0xff]
                %379 = vst [vmem:[%s269 + $0x1b0] sm:$0xff] %v378
                %v380 = vld [vmem:[%s268 + $0x2b8] sm:$0xff]
                %381 = vst [vmem:[%s269 + $0x1b8] sm:$0xff] %v380
                %v382 = vld [vmem:[%s268 + $0x2c0] sm:$0xff]
                %383 = vst [vmem:[%s269 + $0x1c0] sm:$0xff] %v382
                %v384 = vld [vmem:[%s268 + $0x2c8] sm:$0xff]
                %385 = vst [vmem:[%s269 + $0x1c8] sm:$0xff] %v384
                %v386 = vld [vmem:[%s268 + $0x2d0] sm:$0xff]
                %387 = vst [vmem:[%s269 + $0x1d0] sm:$0xff] %v386
                %v388 = vld [vmem:[%s268 + $0x2d8] sm:$0xff]
                %389 = vst [vmem:[%s269 + $0x1d8] sm:$0xff] %v388
                %v390 = vld [vmem:[%s268 + $0x2e0] sm:$0xff]
                %391 = vst [vmem:[%s269 + $0x1e0] sm:$0xff] %v390
                %v392 = vld [vmem:[%s268 + $0x2e8] sm:$0xff]
                %393 = vst [vmem:[%s269 + $0x1e8] sm:$0xff] %v392
                %v394 = vld [vmem:[%s268 + $0x2f0] sm:$0xff]
                %395 = vst [vmem:[%s269 + $0x1f0] sm:$0xff] %v394
                %v396 = vld [vmem:[%s268 + $0x2f8] sm:$0xff]
                %397 = vst [vmem:[%s269 + $0x1f8] sm:$0xff] %v396
                %v398 = vld [vmem:[%s268 + $0x400] sm:$0xff]
                %399 = vst [vmem:[%s269 + $0x200] sm:$0xff] %v398
                %v400 = vld [vmem:[%s268 + $0x408] sm:$0xff]
                %401 = vst [vmem:[%s269 + $0x208] sm:$0xff] %v400
                %v402 = vld [vmem:[%s268 + $0x410] sm:$0xff]
                %403 = vst [vmem:[%s269 + $0x210] sm:$0xff] %v402
                %v404 = vld [vmem:[%s268 + $0x418] sm:$0xff]
                %405 = vst [vmem:[%s269 + $0x218] sm:$0xff] %v404
                %v406 = vld [vmem:[%s268 + $0x420] sm:$0xff]
                %407 = vst [vmem:[%s269 + $0x220] sm:$0xff] %v406
                %v408 = vld [vmem:[%s268 + $0x428] sm:$0xff]
                %409 = vst [vmem:[%s269 + $0x228] sm:$0xff] %v408
                %v410 = vld [vmem:[%s268 + $0x430] sm:$0xff]
                %411 = vst [vmem:[%s269 + $0x230] sm:$0xff] %v410
                %v412 = vld [vmem:[%s268 + $0x438] sm:$0xff]
                %413 = vst [vmem:[%s269 + $0x238] sm:$0xff] %v412
                %v414 = vld [vmem:[%s268 + $0x440] sm:$0xff]
                %415 = vst [vmem:[%s269 + $0x240] sm:$0xff] %v414
                %v416 = vld [vmem:[%s268 + $0x448] sm:$0xff]
                %417 = vst [vmem:[%s269 + $0x248] sm:$0xff] %v416
                %v418 = vld [vmem:[%s268 + $0x450] sm:$0xff]
                %419 = vst [vmem:[%s269 + $0x250] sm:$0xff] %v418
                %v420 = vld [vmem:[%s268 + $0x458] sm:$0xff]
                %421 = vst [vmem:[%s269 + $0x258] sm:$0xff] %v420
                %v422 = vld [vmem:[%s268 + $0x460] sm:$0xff]
                %423 = vst [vmem:[%s269 + $0x260] sm:$0xff] %v422
                %v424 = vld [vmem:[%s268 + $0x468] sm:$0xff]
                %425 = vst [vmem:[%s269 + $0x268] sm:$0xff] %v424
                %v426 = vld [vmem:[%s268 + $0x470] sm:$0xff]
                %427 = vst [vmem:[%s269 + $0x270] sm:$0xff] %v426
                %v428 = vld [vmem:[%s268 + $0x478] sm:$0xff]
                %429 = vst [vmem:[%s269 + $0x278] sm:$0xff] %v428
                %v430 = vld [vmem:[%s268 + $0x480] sm:$0xff]
                %431 = vst [vmem:[%s269 + $0x280] sm:$0xff] %v430
                %v432 = vld [vmem:[%s268 + $0x488] sm:$0xff]
                %433 = vst [vmem:[%s269 + $0x288] sm:$0xff] %v432
                %v434 = vld [vmem:[%s268 + $0x490] sm:$0xff]
                %435 = vst [vmem:[%s269 + $0x290] sm:$0xff] %v434
                %v436 = vld [vmem:[%s268 + $0x498] sm:$0xff]
                %437 = vst [vmem:[%s269 + $0x298] sm:$0xff] %v436
                %v438 = vld [vmem:[%s268 + $0x4a0] sm:$0xff]
                %439 = vst [vmem:[%s269 + $0x2a0] sm:$0xff] %v438
                %v440 = vld [vmem:[%s268 + $0x4a8] sm:$0xff]
                %441 = vst [vmem:[%s269 + $0x2a8] sm:$0xff] %v440
                %v442 = vld [vmem:[%s268 + $0x4b0] sm:$0xff]
                %443 = vst [vmem:[%s269 + $0x2b0] sm:$0xff] %v442
                %v444 = vld [vmem:[%s268 + $0x4b8] sm:$0xff]
                %445 = vst [vmem:[%s269 + $0x2b8] sm:$0xff] %v444
                %v446 = vld [vmem:[%s268 + $0x4c0] sm:$0xff]
                %447 = vst [vmem:[%s269 + $0x2c0] sm:$0xff] %v446
                %v448 = vld [vmem:[%s268 + $0x4c8] sm:$0xff]
                %449 = vst [vmem:[%s269 + $0x2c8] sm:$0xff] %v448
                %v450 = vld [vmem:[%s268 + $0x4d0] sm:$0xff]
                %451 = vst [vmem:[%s269 + $0x2d0] sm:$0xff] %v450
                %v452 = vld [vmem:[%s268 + $0x4d8] sm:$0xff]
                %453 = vst [vmem:[%s269 + $0x2d8] sm:$0xff] %v452
                %v454 = vld [vmem:[%s268 + $0x4e0] sm:$0xff]
                %455 = vst [vmem:[%s269 + $0x2e0] sm:$0xff] %v454
                %v456 = vld [vmem:[%s268 + $0x4e8] sm:$0xff]
                %457 = vst [vmem:[%s269 + $0x2e8] sm:$0xff] %v456
                %v458 = vld [vmem:[%s268 + $0x4f0] sm:$0xff]
                %459 = vst [vmem:[%s269 + $0x2f0] sm:$0xff] %v458
                %v460 = vld [vmem:[%s268 + $0x4f8] sm:$0xff]
                %461 = vst [vmem:[%s269 + $0x2f8] sm:$0xff] %v460
                %v462 = vld [vmem:[%s268 + $0x600] sm:$0xff]
                %463 = vst [vmem:[%s269 + $0x300] sm:$0xff] %v462
                %v464 = vld [vmem:[%s268 + $0x608] sm:$0xff]
                %465 = vst [vmem:[%s269 + $0x308] sm:$0xff] %v464
                %v466 = vld [vmem:[%s268 + $0x610] sm:$0xff]
                %467 = vst [vmem:[%s269 + $0x310] sm:$0xff] %v466
                %v468 = vld [vmem:[%s268 + $0x618] sm:$0xff]
                %469 = vst [vmem:[%s269 + $0x318] sm:$0xff] %v468
                %v470 = vld [vmem:[%s268 + $0x620] sm:$0xff]
                %471 = vst [vmem:[%s269 + $0x320] sm:$0xff] %v470
                %v472 = vld [vmem:[%s268 + $0x628] sm:$0xff]
                %473 = vst [vmem:[%s269 + $0x328] sm:$0xff] %v472
                %v474 = vld [vmem:[%s268 + $0x630] sm:$0xff]
                %475 = vst [vmem:[%s269 + $0x330] sm:$0xff] %v474
                %v476 = vld [vmem:[%s268 + $0x638] sm:$0xff]
                %477 = vst [vmem:[%s269 + $0x338] sm:$0xff] %v476
                %v478 = vld [vmem:[%s268 + $0x640] sm:$0xff]
                %479 = vst [vmem:[%s269 + $0x340] sm:$0xff] %v478
                %v480 = vld [vmem:[%s268 + $0x648] sm:$0xff]
                %481 = vst [vmem:[%s269 + $0x348] sm:$0xff] %v480
                %v482 = vld [vmem:[%s268 + $0x650] sm:$0xff]
                %483 = vst [vmem:[%s269 + $0x350] sm:$0xff] %v482
                %v484 = vld [vmem:[%s268 + $0x658] sm:$0xff]
                %485 = vst [vmem:[%s269 + $0x358] sm:$0xff] %v484
                %v486 = vld [vmem:[%s268 + $0x660] sm:$0xff]
                %487 = vst [vmem:[%s269 + $0x360] sm:$0xff] %v486
                %v488 = vld [vmem:[%s268 + $0x668] sm:$0xff]
                %489 = vst [vmem:[%s269 + $0x368] sm:$0xff] %v488
                %v490 = vld [vmem:[%s268 + $0x670] sm:$0xff]
                %491 = vst [vmem:[%s269 + $0x370] sm:$0xff] %v490
                %v492 = vld [vmem:[%s268 + $0x678] sm:$0xff]
                %493 = vst [vmem:[%s269 + $0x378] sm:$0xff] %v492
                %v494 = vld [vmem:[%s268 + $0x680] sm:$0xff]
                %495 = vst [vmem:[%s269 + $0x380] sm:$0xff] %v494
                %v496 = vld [vmem:[%s268 + $0x688] sm:$0xff]
                %497 = vst [vmem:[%s269 + $0x388] sm:$0xff] %v496
                %v498 = vld [vmem:[%s268 + $0x690] sm:$0xff]
                %499 = vst [vmem:[%s269 + $0x390] sm:$0xff] %v498
                %v500 = vld [vmem:[%s268 + $0x698] sm:$0xff]
                %501 = vst [vmem:[%s269 + $0x398] sm:$0xff] %v500
                %v502 = vld [vmem:[%s268 + $0x6a0] sm:$0xff]
                %503 = vst [vmem:[%s269 + $0x3a0] sm:$0xff] %v502
                %v504 = vld [vmem:[%s268 + $0x6a8] sm:$0xff]
                %505 = vst [vmem:[%s269 + $0x3a8] sm:$0xff] %v504
                %v506 = vld [vmem:[%s268 + $0x6b0] sm:$0xff]
                %507 = vst [vmem:[%s269 + $0x3b0] sm:$0xff] %v506
                %v508 = vld [vmem:[%s268 + $0x6b8] sm:$0xff]
                %509 = vst [vmem:[%s269 + $0x3b8] sm:$0xff] %v508
                %v510 = vld [vmem:[%s268 + $0x6c0] sm:$0xff]
                %511 = vst [vmem:[%s269 + $0x3c0] sm:$0xff] %v510
                %v512 = vld [vmem:[%s268 + $0x6c8] sm:$0xff]
                %513 = vst [vmem:[%s269 + $0x3c8] sm:$0xff] %v512
                %v514 = vld [vmem:[%s268 + $0x6d0] sm:$0xff]
                %515 = vst [vmem:[%s269 + $0x3d0] sm:$0xff] %v514
                %v516 = vld [vmem:[%s268 + $0x6d8] sm:$0xff]
                %517 = vst [vmem:[%s269 + $0x3d8] sm:$0xff] %v516
                %v518 = vld [vmem:[%s268 + $0x6e0] sm:$0xff]
                %519 = vst [vmem:[%s269 + $0x3e0] sm:$0xff] %v518
                %v520 = vld [vmem:[%s268 + $0x6e8] sm:$0xff]
                %521 = vst [vmem:[%s269 + $0x3e8] sm:$0xff] %v520
                %v522 = vld [vmem:[%s268 + $0x6f0] sm:$0xff]
                %523 = vst [vmem:[%s269 + $0x3f0] sm:$0xff] %v522
                %v524 = vld [vmem:[%s268 + $0x6f8] sm:$0xff]
                %525 = vst [vmem:[%s269 + $0x3f8] sm:$0xff] %v524
              $region53: #{forward_pallas.1} parent=47 // loop_footer
                %s267 = sadd.s32 1, %s263
              $region54: #{forward_pallas.1} parent=47 // loop_footer_branch
                %262 = sbr.rel target = $region50
              $region55: #{forward_pallas.1} parent=47 // loop_exit
                _
            $region48: #{forward_pallas.1} parent=43 // pred_fallthru
              _
            // Predicated region
            $region56: #{forward_pallas.1} parent=43 // pred_check
              _
            $region57: #{forward_pallas.1} parent=43 // pred_check_branch
              %527 = sbr.rel target = $region59
            $region58: #{forward_pallas.1} parent=43 // pred_region
              _
            $region59: #{forward_pallas.1} parent=43 // pred_fallthru
              _
          $region44: #{forward_pallas.1} parent=39 // pred_fallthru
            _
          %528 = vnop
        $region40: #{forward_pallas.1} parent=35 // pred_fallthru
          _
        // Predicated region
        $region60: #{forward_pallas.1} parent=35 // pred_check
          %p529 = pneg %p75
        $region61: #{forward_pallas.1} parent=35 // pred_check_branch
          %531 = sbr.rel (%p529) target = $region63
        $region62: #{forward_pallas.1} parent=35 // pred_region
          %s532 = sand.u32 %s65, 1
          %s533 = sand.u32 %s65, 1
          %s534 = smul.addr %s533, 1024
          %s535 = scalar_lea.vmem [#allocation5], %s534
          %s536 = smul.u32 16, %s23
          %s537 = smul.addr %s536, 4
          %s538 = scalar_lea.vmem %s1, %s537
          // Predicated region
          $region64: #{forward_pallas.1} parent=62 // pred_check
            _
          $region65: #{forward_pallas.1} parent=62 // pred_check_branch
            %540 = sbr.rel (0) target = $region67
          $region66: #{forward_pallas.1} parent=62 // pred_region
            // Predicated region
            $region68: #{forward_pallas.1} parent=66 // pred_check
              _
            $region69: #{forward_pallas.1} parent=66 // pred_check_branch
              %542 = sbr.rel (0) target = $region71
            $region70: #{forward_pallas.1} parent=66 // pred_region
              loop: start=0, step=1, limit=1
              $region72: #{forward_pallas.1} parent=70 // loop_pre_header
                _
              $region73: #{forward_pallas.1} parent=70 // loop_header
                %s544 = sphi 0, %s548
                %p545 = scmp.ge.s32.totalorder %s544, 1
                %s549 = sphi %s538, %s538
                %s550 = sphi %s535, %s535
              $region74: #{forward_pallas.1} parent=70 // loop_header_branch
                %547 = sbr.rel (%p545) target = $region78
              $region75: #{forward_pallas.1} parent=70 // loop_body
                %v551 = vld [vmem:[%s549] sm:$0xff]
                %552 = vst [vmem:[%s550] sm:$0xff] %v551
                %v553 = vld [vmem:[%s549 + $0x8] sm:$0xff]
                %554 = vst [vmem:[%s550 + $0x8] sm:$0xff] %v553
                %v555 = vld [vmem:[%s549 + $0x10] sm:$0xff]
                %556 = vst [vmem:[%s550 + $0x10] sm:$0xff] %v555
                %v557 = vld [vmem:[%s549 + $0x18] sm:$0xff]
                %558 = vst [vmem:[%s550 + $0x18] sm:$0xff] %v557
                %v559 = vld [vmem:[%s549 + $0x20] sm:$0xff]
                %560 = vst [vmem:[%s550 + $0x20] sm:$0xff] %v559
                %v561 = vld [vmem:[%s549 + $0x28] sm:$0xff]
                %562 = vst [vmem:[%s550 + $0x28] sm:$0xff] %v561
                %v563 = vld [vmem:[%s549 + $0x30] sm:$0xff]
                %564 = vst [vmem:[%s550 + $0x30] sm:$0xff] %v563
                %v565 = vld [vmem:[%s549 + $0x38] sm:$0xff]
                %566 = vst [vmem:[%s550 + $0x38] sm:$0xff] %v565
                %v567 = vld [vmem:[%s549 + $0x80] sm:$0xff]
                %568 = vst [vmem:[%s550 + $0x40] sm:$0xff] %v567
                %v569 = vld [vmem:[%s549 + $0x88] sm:$0xff]
                %570 = vst [vmem:[%s550 + $0x48] sm:$0xff] %v569
                %v571 = vld [vmem:[%s549 + $0x90] sm:$0xff]
                %572 = vst [vmem:[%s550 + $0x50] sm:$0xff] %v571
                %v573 = vld [vmem:[%s549 + $0x98] sm:$0xff]
                %574 = vst [vmem:[%s550 + $0x58] sm:$0xff] %v573
                %v575 = vld [vmem:[%s549 + $0xa0] sm:$0xff]
                %576 = vst [vmem:[%s550 + $0x60] sm:$0xff] %v575
                %v577 = vld [vmem:[%s549 + $0xa8] sm:$0xff]
                %578 = vst [vmem:[%s550 + $0x68] sm:$0xff] %v577
                %v579 = vld [vmem:[%s549 + $0xb0] sm:$0xff]
                %580 = vst [vmem:[%s550 + $0x70] sm:$0xff] %v579
                %v581 = vld [vmem:[%s549 + $0xb8] sm:$0xff]
                %582 = vst [vmem:[%s550 + $0x78] sm:$0xff] %v581
                %v583 = vld [vmem:[%s549 + $0x100] sm:$0xff]
                %584 = vst [vmem:[%s550 + $0x80] sm:$0xff] %v583
                %v585 = vld [vmem:[%s549 + $0x108] sm:$0xff]
                %586 = vst [vmem:[%s550 + $0x88] sm:$0xff] %v585
                %v587 = vld [vmem:[%s549 + $0x110] sm:$0xff]
                %588 = vst [vmem:[%s550 + $0x90] sm:$0xff] %v587
                %v589 = vld [vmem:[%s549 + $0x118] sm:$0xff]
                %590 = vst [vmem:[%s550 + $0x98] sm:$0xff] %v589
                %v591 = vld [vmem:[%s549 + $0x120] sm:$0xff]
                %592 = vst [vmem:[%s550 + $0xa0] sm:$0xff] %v591
                %v593 = vld [vmem:[%s549 + $0x128] sm:$0xff]
                %594 = vst [vmem:[%s550 + $0xa8] sm:$0xff] %v593
                %v595 = vld [vmem:[%s549 + $0x130] sm:$0xff]
                %596 = vst [vmem:[%s550 + $0xb0] sm:$0xff] %v595
                %v597 = vld [vmem:[%s549 + $0x138] sm:$0xff]
                %598 = vst [vmem:[%s550 + $0xb8] sm:$0xff] %v597
                %v599 = vld [vmem:[%s549 + $0x180] sm:$0xff]
                %600 = vst [vmem:[%s550 + $0xc0] sm:$0xff] %v599
                %v601 = vld [vmem:[%s549 + $0x188] sm:$0xff]
                %602 = vst [vmem:[%s550 + $0xc8] sm:$0xff] %v601
                %v603 = vld [vmem:[%s549 + $0x190] sm:$0xff]
                %604 = vst [vmem:[%s550 + $0xd0] sm:$0xff] %v603
                %v605 = vld [vmem:[%s549 + $0x198] sm:$0xff]
                %606 = vst [vmem:[%s550 + $0xd8] sm:$0xff] %v605
                %v607 = vld [vmem:[%s549 + $0x1a0] sm:$0xff]
                %608 = vst [vmem:[%s550 + $0xe0] sm:$0xff] %v607
                %v609 = vld [vmem:[%s549 + $0x1a8] sm:$0xff]
                %610 = vst [vmem:[%s550 + $0xe8] sm:$0xff] %v609
                %v611 = vld [vmem:[%s549 + $0x1b0] sm:$0xff]
                %612 = vst [vmem:[%s550 + $0xf0] sm:$0xff] %v611
                %v613 = vld [vmem:[%s549 + $0x1b8] sm:$0xff]
                %614 = vst [vmem:[%s550 + $0xf8] sm:$0xff] %v613
                %v615 = vld [vmem:[%s549 + $0x200] sm:$0xff]
                %616 = vst [vmem:[%s550 + $0x100] sm:$0xff] %v615
                %v617 = vld [vmem:[%s549 + $0x208] sm:$0xff]
                %618 = vst [vmem:[%s550 + $0x108] sm:$0xff] %v617
                %v619 = vld [vmem:[%s549 + $0x210] sm:$0xff]
                %620 = vst [vmem:[%s550 + $0x110] sm:$0xff] %v619
                %v621 = vld [vmem:[%s549 + $0x218] sm:$0xff]
                %622 = vst [vmem:[%s550 + $0x118] sm:$0xff] %v621
                %v623 = vld [vmem:[%s549 + $0x220] sm:$0xff]
                %624 = vst [vmem:[%s550 + $0x120] sm:$0xff] %v623
                %v625 = vld [vmem:[%s549 + $0x228] sm:$0xff]
                %626 = vst [vmem:[%s550 + $0x128] sm:$0xff] %v625
                %v627 = vld [vmem:[%s549 + $0x230] sm:$0xff]
                %628 = vst [vmem:[%s550 + $0x130] sm:$0xff] %v627
                %v629 = vld [vmem:[%s549 + $0x238] sm:$0xff]
                %630 = vst [vmem:[%s550 + $0x138] sm:$0xff] %v629
                %v631 = vld [vmem:[%s549 + $0x280] sm:$0xff]
                %632 = vst [vmem:[%s550 + $0x140] sm:$0xff] %v631
                %v633 = vld [vmem:[%s549 + $0x288] sm:$0xff]
                %634 = vst [vmem:[%s550 + $0x148] sm:$0xff] %v633
                %v635 = vld [vmem:[%s549 + $0x290] sm:$0xff]
                %636 = vst [vmem:[%s550 + $0x150] sm:$0xff] %v635
                %v637 = vld [vmem:[%s549 + $0x298] sm:$0xff]
                %638 = vst [vmem:[%s550 + $0x158] sm:$0xff] %v637
                %v639 = vld [vmem:[%s549 + $0x2a0] sm:$0xff]
                %640 = vst [vmem:[%s550 + $0x160] sm:$0xff] %v639
                %v641 = vld [vmem:[%s549 + $0x2a8] sm:$0xff]
                %642 = vst [vmem:[%s550 + $0x168] sm:$0xff] %v641
                %v643 = vld [vmem:[%s549 + $0x2b0] sm:$0xff]
                %644 = vst [vmem:[%s550 + $0x170] sm:$0xff] %v643
                %v645 = vld [vmem:[%s549 + $0x2b8] sm:$0xff]
                %646 = vst [vmem:[%s550 + $0x178] sm:$0xff] %v645
                %v647 = vld [vmem:[%s549 + $0x300] sm:$0xff]
                %648 = vst [vmem:[%s550 + $0x180] sm:$0xff] %v647
                %v649 = vld [vmem:[%s549 + $0x308] sm:$0xff]
                %650 = vst [vmem:[%s550 + $0x188] sm:$0xff] %v649
                %v651 = vld [vmem:[%s549 + $0x310] sm:$0xff]
                %652 = vst [vmem:[%s550 + $0x190] sm:$0xff] %v651
                %v653 = vld [vmem:[%s549 + $0x318] sm:$0xff]
                %654 = vst [vmem:[%s550 + $0x198] sm:$0xff] %v653
                %v655 = vld [vmem:[%s549 + $0x320] sm:$0xff]
                %656 = vst [vmem:[%s550 + $0x1a0] sm:$0xff] %v655
                %v657 = vld [vmem:[%s549 + $0x328] sm:$0xff]
                %658 = vst [vmem:[%s550 + $0x1a8] sm:$0xff] %v657
                %v659 = vld [vmem:[%s549 + $0x330] sm:$0xff]
                %660 = vst [vmem:[%s550 + $0x1b0] sm:$0xff] %v659
                %v661 = vld [vmem:[%s549 + $0x338] sm:$0xff]
                %662 = vst [vmem:[%s550 + $0x1b8] sm:$0xff] %v661
                %v663 = vld [vmem:[%s549 + $0x380] sm:$0xff]
                %664 = vst [vmem:[%s550 + $0x1c0] sm:$0xff] %v663
                %v665 = vld [vmem:[%s549 + $0x388] sm:$0xff]
                %666 = vst [vmem:[%s550 + $0x1c8] sm:$0xff] %v665
                %v667 = vld [vmem:[%s549 + $0x390] sm:$0xff]
                %668 = vst [vmem:[%s550 + $0x1d0] sm:$0xff] %v667
                %v669 = vld [vmem:[%s549 + $0x398] sm:$0xff]
                %670 = vst [vmem:[%s550 + $0x1d8] sm:$0xff] %v669
                %v671 = vld [vmem:[%s549 + $0x3a0] sm:$0xff]
                %672 = vst [vmem:[%s550 + $0x1e0] sm:$0xff] %v671
                %v673 = vld [vmem:[%s549 + $0x3a8] sm:$0xff]
                %674 = vst [vmem:[%s550 + $0x1e8] sm:$0xff] %v673
                %v675 = vld [vmem:[%s549 + $0x3b0] sm:$0xff]
                %676 = vst [vmem:[%s550 + $0x1f0] sm:$0xff] %v675
                %v677 = vld [vmem:[%s549 + $0x3b8] sm:$0xff]
                %678 = vst [vmem:[%s550 + $0x1f8] sm:$0xff] %v677
                %v679 = vld [vmem:[%s549 + $0x400] sm:$0xff]
                %680 = vst [vmem:[%s550 + $0x200] sm:$0xff] %v679
                %v681 = vld [vmem:[%s549 + $0x408] sm:$0xff]
                %682 = vst [vmem:[%s550 + $0x208] sm:$0xff] %v681
                %v683 = vld [vmem:[%s549 + $0x410] sm:$0xff]
                %684 = vst [vmem:[%s550 + $0x210] sm:$0xff] %v683
                %v685 = vld [vmem:[%s549 + $0x418] sm:$0xff]
                %686 = vst [vmem:[%s550 + $0x218] sm:$0xff] %v685
                %v687 = vld [vmem:[%s549 + $0x420] sm:$0xff]
                %688 = vst [vmem:[%s550 + $0x220] sm:$0xff] %v687
                %v689 = vld [vmem:[%s549 + $0x428] sm:$0xff]
                %690 = vst [vmem:[%s550 + $0x228] sm:$0xff] %v689
                %v691 = vld [vmem:[%s549 + $0x430] sm:$0xff]
                %692 = vst [vmem:[%s550 + $0x230] sm:$0xff] %v691
                %v693 = vld [vmem:[%s549 + $0x438] sm:$0xff]
                %694 = vst [vmem:[%s550 + $0x238] sm:$0xff] %v693
                %v695 = vld [vmem:[%s549 + $0x480] sm:$0xff]
                %696 = vst [vmem:[%s550 + $0x240] sm:$0xff] %v695
                %v697 = vld [vmem:[%s549 + $0x488] sm:$0xff]
                %698 = vst [vmem:[%s550 + $0x248] sm:$0xff] %v697
                %v699 = vld [vmem:[%s549 + $0x490] sm:$0xff]
                %700 = vst [vmem:[%s550 + $0x250] sm:$0xff] %v699
                %v701 = vld [vmem:[%s549 + $0x498] sm:$0xff]
                %702 = vst [vmem:[%s550 + $0x258] sm:$0xff] %v701
                %v703 = vld [vmem:[%s549 + $0x4a0] sm:$0xff]
                %704 = vst [vmem:[%s550 + $0x260] sm:$0xff] %v703
                %v705 = vld [vmem:[%s549 + $0x4a8] sm:$0xff]
                %706 = vst [vmem:[%s550 + $0x268] sm:$0xff] %v705
                %v707 = vld [vmem:[%s549 + $0x4b0] sm:$0xff]
                %708 = vst [vmem:[%s550 + $0x270] sm:$0xff] %v707
                %v709 = vld [vmem:[%s549 + $0x4b8] sm:$0xff]
                %710 = vst [vmem:[%s550 + $0x278] sm:$0xff] %v709
                %v711 = vld [vmem:[%s549 + $0x500] sm:$0xff]
                %712 = vst [vmem:[%s550 + $0x280] sm:$0xff] %v711
                %v713 = vld [vmem:[%s549 + $0x508] sm:$0xff]
                %714 = vst [vmem:[%s550 + $0x288] sm:$0xff] %v713
                %v715 = vld [vmem:[%s549 + $0x510] sm:$0xff]
                %716 = vst [vmem:[%s550 + $0x290] sm:$0xff] %v715
                %v717 = vld [vmem:[%s549 + $0x518] sm:$0xff]
                %718 = vst [vmem:[%s550 + $0x298] sm:$0xff] %v717
                %v719 = vld [vmem:[%s549 + $0x520] sm:$0xff]
                %720 = vst [vmem:[%s550 + $0x2a0] sm:$0xff] %v719
                %v721 = vld [vmem:[%s549 + $0x528] sm:$0xff]
                %722 = vst [vmem:[%s550 + $0x2a8] sm:$0xff] %v721
                %v723 = vld [vmem:[%s549 + $0x530] sm:$0xff]
                %724 = vst [vmem:[%s550 + $0x2b0] sm:$0xff] %v723
                %v725 = vld [vmem:[%s549 + $0x538] sm:$0xff]
                %726 = vst [vmem:[%s550 + $0x2b8] sm:$0xff] %v725
                %v727 = vld [vmem:[%s549 + $0x580] sm:$0xff]
                %728 = vst [vmem:[%s550 + $0x2c0] sm:$0xff] %v727
                %v729 = vld [vmem:[%s549 + $0x588] sm:$0xff]
                %730 = vst [vmem:[%s550 + $0x2c8] sm:$0xff] %v729
                %v731 = vld [vmem:[%s549 + $0x590] sm:$0xff]
                %732 = vst [vmem:[%s550 + $0x2d0] sm:$0xff] %v731
                %v733 = vld [vmem:[%s549 + $0x598] sm:$0xff]
                %734 = vst [vmem:[%s550 + $0x2d8] sm:$0xff] %v733
                %v735 = vld [vmem:[%s549 + $0x5a0] sm:$0xff]
                %736 = vst [vmem:[%s550 + $0x2e0] sm:$0xff] %v735
                %v737 = vld [vmem:[%s549 + $0x5a8] sm:$0xff]
                %738 = vst [vmem:[%s550 + $0x2e8] sm:$0xff] %v737
                %v739 = vld [vmem:[%s549 + $0x5b0] sm:$0xff]
                %740 = vst [vmem:[%s550 + $0x2f0] sm:$0xff] %v739
                %v741 = vld [vmem:[%s549 + $0x5b8] sm:$0xff]
                %742 = vst [vmem:[%s550 + $0x2f8] sm:$0xff] %v741
                %v743 = vld [vmem:[%s549 + $0x600] sm:$0xff]
                %744 = vst [vmem:[%s550 + $0x300] sm:$0xff] %v743
                %v745 = vld [vmem:[%s549 + $0x608] sm:$0xff]
                %746 = vst [vmem:[%s550 + $0x308] sm:$0xff] %v745
                %v747 = vld [vmem:[%s549 + $0x610] sm:$0xff]
                %748 = vst [vmem:[%s550 + $0x310] sm:$0xff] %v747
                %v749 = vld [vmem:[%s549 + $0x618] sm:$0xff]
                %750 = vst [vmem:[%s550 + $0x318] sm:$0xff] %v749
                %v751 = vld [vmem:[%s549 + $0x620] sm:$0xff]
                %752 = vst [vmem:[%s550 + $0x320] sm:$0xff] %v751
                %v753 = vld [vmem:[%s549 + $0x628] sm:$0xff]
                %754 = vst [vmem:[%s550 + $0x328] sm:$0xff] %v753
                %v755 = vld [vmem:[%s549 + $0x630] sm:$0xff]
                %756 = vst [vmem:[%s550 + $0x330] sm:$0xff] %v755
                %v757 = vld [vmem:[%s549 + $0x638] sm:$0xff]
                %758 = vst [vmem:[%s550 + $0x338] sm:$0xff] %v757
                %v759 = vld [vmem:[%s549 + $0x680] sm:$0xff]
                %760 = vst [vmem:[%s550 + $0x340] sm:$0xff] %v759
                %v761 = vld [vmem:[%s549 + $0x688] sm:$0xff]
                %762 = vst [vmem:[%s550 + $0x348] sm:$0xff] %v761
                %v763 = vld [vmem:[%s549 + $0x690] sm:$0xff]
                %764 = vst [vmem:[%s550 + $0x350] sm:$0xff] %v763
                %v765 = vld [vmem:[%s549 + $0x698] sm:$0xff]
                %766 = vst [vmem:[%s550 + $0x358] sm:$0xff] %v765
                %v767 = vld [vmem:[%s549 + $0x6a0] sm:$0xff]
                %768 = vst [vmem:[%s550 + $0x360] sm:$0xff] %v767
                %v769 = vld [vmem:[%s549 + $0x6a8] sm:$0xff]
                %770 = vst [vmem:[%s550 + $0x368] sm:$0xff] %v769
                %v771 = vld [vmem:[%s549 + $0x6b0] sm:$0xff]
                %772 = vst [vmem:[%s550 + $0x370] sm:$0xff] %v771
                %v773 = vld [vmem:[%s549 + $0x6b8] sm:$0xff]
                %774 = vst [vmem:[%s550 + $0x378] sm:$0xff] %v773
                %v775 = vld [vmem:[%s549 + $0x700] sm:$0xff]
                %776 = vst [vmem:[%s550 + $0x380] sm:$0xff] %v775
                %v777 = vld [vmem:[%s549 + $0x708] sm:$0xff]
                %778 = vst [vmem:[%s550 + $0x388] sm:$0xff] %v777
                %v779 = vld [vmem:[%s549 + $0x710] sm:$0xff]
                %780 = vst [vmem:[%s550 + $0x390] sm:$0xff] %v779
                %v781 = vld [vmem:[%s549 + $0x718] sm:$0xff]
                %782 = vst [vmem:[%s550 + $0x398] sm:$0xff] %v781
                %v783 = vld [vmem:[%s549 + $0x720] sm:$0xff]
                %784 = vst [vmem:[%s550 + $0x3a0] sm:$0xff] %v783
                %v785 = vld [vmem:[%s549 + $0x728] sm:$0xff]
                %786 = vst [vmem:[%s550 + $0x3a8] sm:$0xff] %v785
                %v787 = vld [vmem:[%s549 + $0x730] sm:$0xff]
                %788 = vst [vmem:[%s550 + $0x3b0] sm:$0xff] %v787
                %v789 = vld [vmem:[%s549 + $0x738] sm:$0xff]
                %790 = vst [vmem:[%s550 + $0x3b8] sm:$0xff] %v789
                %v791 = vld [vmem:[%s549 + $0x780] sm:$0xff]
                %792 = vst [vmem:[%s550 + $0x3c0] sm:$0xff] %v791
                %v793 = vld [vmem:[%s549 + $0x788] sm:$0xff]
                %794 = vst [vmem:[%s550 + $0x3c8] sm:$0xff] %v793
                %v795 = vld [vmem:[%s549 + $0x790] sm:$0xff]
                %796 = vst [vmem:[%s550 + $0x3d0] sm:$0xff] %v795
                %v797 = vld [vmem:[%s549 + $0x798] sm:$0xff]
                %798 = vst [vmem:[%s550 + $0x3d8] sm:$0xff] %v797
                %v799 = vld [vmem:[%s549 + $0x7a0] sm:$0xff]
                %800 = vst [vmem:[%s550 + $0x3e0] sm:$0xff] %v799
                %v801 = vld [vmem:[%s549 + $0x7a8] sm:$0xff]
                %802 = vst [vmem:[%s550 + $0x3e8] sm:$0xff] %v801
                %v803 = vld [vmem:[%s549 + $0x7b0] sm:$0xff]
                %804 = vst [vmem:[%s550 + $0x3f0] sm:$0xff] %v803
                %v805 = vld [vmem:[%s549 + $0x7b8] sm:$0xff]
                %806 = vst [vmem:[%s550 + $0x3f8] sm:$0xff] %v805
              $region76: #{forward_pallas.1} parent=70 // loop_footer
                %s548 = sadd.s32 1, %s544
              $region77: #{forward_pallas.1} parent=70 // loop_footer_branch
                %543 = sbr.rel target = $region73
              $region78: #{forward_pallas.1} parent=70 // loop_exit
                _
            $region71: #{forward_pallas.1} parent=66 // pred_fallthru
              _
            // Predicated region
            $region79: #{forward_pallas.1} parent=66 // pred_check
              _
            $region80: #{forward_pallas.1} parent=66 // pred_check_branch
              %808 = sbr.rel target = $region82
            $region81: #{forward_pallas.1} parent=66 // pred_region
              _
            $region82: #{forward_pallas.1} parent=66 // pred_fallthru
              _
          $region67: #{forward_pallas.1} parent=62 // pred_fallthru
            _
          %809 = vnop
        $region63: #{forward_pallas.1} parent=35 // pred_fallthru
          _
      $region36: #{forward_pallas.1} parent=5 // pred_fallthru
        _
      %p810 = scmp.le.s32.totalorder 1, %s15
      %p811 = scmp.lt.s32.totalorder %s15, 5
      %p812 = pnand %p810, %p811
      %p813 = pneg %p812
      // Predicated region
      $region83: #{forward_pallas.1} parent=5 // pred_check
        _
      $region84: #{forward_pallas.1} parent=5 // pred_check_branch
        %815 = sbr.rel (%p812) target = $region86
      $region85: #{forward_pallas.1} parent=5 // pred_region
        %s816 = ssub.s32 %s15, 1
        %s817 = sand.u32 %s42, 1
        %s818 = sand.u32 %s42, 1
        %s819 = smul.addr %s818, 1024
        %s820 = scalar_lea.vmem [#allocation4], %s819
        // Predicated region
        $region87: #{forward_pallas.1} parent=85 // pred_check
          %p821 = pneg %p55
        $region88: #{forward_pallas.1} parent=85 // pred_check_branch
          %823 = sbr.rel (%p821) target = $region90
        $region89: #{forward_pallas.1} parent=85 // pred_region
          _
        $region90: #{forward_pallas.1} parent=85 // pred_fallthru
          _
        %s824 = sand.u32 %s68, 1
        %s825 = sand.u32 %s68, 1
        %s826 = smul.addr %s825, 1024
        %s827 = scalar_lea.vmem [#allocation5], %s826
        // Predicated region
        $region91: #{forward_pallas.1} parent=85 // pred_check
          %p828 = pneg %p81
        $region92: #{forward_pallas.1} parent=85 // pred_check_branch
          %830 = sbr.rel (%p828) target = $region94
        $region93: #{forward_pallas.1} parent=85 // pred_region
          _
        $region94: #{forward_pallas.1} parent=85 // pred_fallthru
          _
        %s831 = sand.u32 %s42, 1
        %s832 = sand.u32 %s42, 1
        %s833 = smul.addr %s832, 1024
        %s834 = scalar_lea.vmem [#allocation4], %s833
        %p835 = pneg %p55
        %p836 = pneg %p52
        %s837 = sand.u32 %s68, 1
        %s838 = sand.u32 %s68, 1
        %s839 = smul.addr %s838, 1024
        %s840 = scalar_lea.vmem [#allocation5], %s839
        %p841 = pneg %p81
        %p842 = pneg %p78
        %p843 = pneg %p102
        %p844 = pneg %p99
        %p845 = pneg %p123
        %p846 = pneg %p120
        %p847 = pneg %p144
        %p848 = pneg %p141
        %p849 = pneg %p165
        %p850 = pneg %p162
        %p851 = pneg %p186
        %p852 = pneg %p183
        %p853 = pneg %p212
        %p854 = pneg %p209
        %p855 = scmp.lt.s32.totalorder %s24, 1
        %s856 = scalar_select %p855, %s24, 1
        %s857 = scalar_lea.vmem %s7, %s856
        %s858 = smul.u32 64, %s25
        %s859 = smul.u32 16, %s25
        %p860 = scmp.lt.s32.totalorder %s24, 1
        %s861 = scalar_select %p860, %s24, 1
        %s862 = scalar_lea.vmem %s7, %s861
        %p864 = scmp.eq.s32.totalorder %s25, 0
        // Predicated region
        $region95: #{forward_pallas.1} parent=85 // pred_check
          %p865 = pneg %p864
        $region96: #{forward_pallas.1} parent=85 // pred_check_branch
          %867 = sbr.rel (%p865) target = $region98
        $region97: #{forward_pallas.1} parent=85 // pred_region
          %vm868 = vcmask 7168
          %869 = vst.msk [vmem:[#allocation2] sm:$0xff] %vm868, 0.0
          %870 = vst.msk [vmem:[#allocation2 + $0x8] sm:$0xff] %vm868, 0.0
        $region98: #{forward_pallas.1} parent=85 // pred_fallthru
          _
        %v871 = vld [vmem:[%s2] sm:$0xf]
        %v872 = vld [vmem:[%s820] sm:$0xff]
        %v873 = vld [vmem:[%s820 + $0x8] sm:$0xff]
        %v874 = vld [vmem:[%s820 + $0x10] sm:$0xff]
        %v875 = vld [vmem:[%s820 + $0x18] sm:$0xff]
        %v876 = vld [vmem:[%s820 + $0x20] sm:$0xff]
        %v877 = vld [vmem:[%s820 + $0x28] sm:$0xff]
        %v878 = vld [vmem:[%s820 + $0x30] sm:$0xff]
        %v879 = vld [vmem:[%s820 + $0x38] sm:$0xff]
        %v880 = vld [vmem:[%s820 + $0x40] sm:$0xff]
        %v881 = vld [vmem:[%s820 + $0x48] sm:$0xff]
        %v882 = vld [vmem:[%s820 + $0x50] sm:$0xff]
        %v883 = vld [vmem:[%s820 + $0x58] sm:$0xff]
        %v884 = vld [vmem:[%s820 + $0x60] sm:$0xff]
        %v885 = vld [vmem:[%s820 + $0x68] sm:$0xff]
        %v886 = vld [vmem:[%s820 + $0x70] sm:$0xff]
        %v887 = vld [vmem:[%s820 + $0x78] sm:$0xff]
        %v888 = vld [vmem:[%s820 + $0x80] sm:$0xff]
        %v889 = vld [vmem:[%s820 + $0x88] sm:$0xff]
        %v890 = vld [vmem:[%s820 + $0x90] sm:$0xff]
        %v891 = vld [vmem:[%s820 + $0x98] sm:$0xff]
        %v892 = vld [vmem:[%s820 + $0xa0] sm:$0xff]
        %v893 = vld [vmem:[%s820 + $0xa8] sm:$0xff]
        %v894 = vld [vmem:[%s820 + $0xb0] sm:$0xff]
        %v895 = vld [vmem:[%s820 + $0xb8] sm:$0xff]
        %v896 = vld [vmem:[%s820 + $0xc0] sm:$0xff]
        %v897 = vld [vmem:[%s820 + $0xc8] sm:$0xff]
        %v898 = vld [vmem:[%s820 + $0xd0] sm:$0xff]
        %v899 = vld [vmem:[%s820 + $0xd8] sm:$0xff]
        %v900 = vld [vmem:[%s820 + $0xe0] sm:$0xff]
        %v901 = vld [vmem:[%s820 + $0xe8] sm:$0xff]
        %v902 = vld [vmem:[%s820 + $0xf0] sm:$0xff]
        %v903 = vld [vmem:[%s820 + $0xf8] sm:$0xff]
        %v904 = vld [vmem:[%s820 + $0x100] sm:$0xff]
        %v905 = vld [vmem:[%s820 + $0x108] sm:$0xff]
        %v906 = vld [vmem:[%s820 + $0x110] sm:$0xff]
        %v907 = vld [vmem:[%s820 + $0x118] sm:$0xff]
        %v908 = vld [vmem:[%s820 + $0x120] sm:$0xff]
        %v909 = vld [vmem:[%s820 + $0x128] sm:$0xff]
        %v910 = vld [vmem:[%s820 + $0x130] sm:$0xff]
        %v911 = vld [vmem:[%s820 + $0x138] sm:$0xff]
        %v912 = vld [vmem:[%s820 + $0x140] sm:$0xff]
        %v913 = vld [vmem:[%s820 + $0x148] sm:$0xff]
        %v914 = vld [vmem:[%s820 + $0x150] sm:$0xff]
        %v915 = vld [vmem:[%s820 + $0x158] sm:$0xff]
        %v916 = vld [vmem:[%s820 + $0x160] sm:$0xff]
        %v917 = vld [vmem:[%s820 + $0x168] sm:$0xff]
        %v918 = vld [vmem:[%s820 + $0x170] sm:$0xff]
        %v919 = vld [vmem:[%s820 + $0x178] sm:$0xff]
        %v920 = vld [vmem:[%s820 + $0x180] sm:$0xff]
        %v921 = vld [vmem:[%s820 + $0x188] sm:$0xff]
        %v922 = vld [vmem:[%s820 + $0x190] sm:$0xff]
        %v923 = vld [vmem:[%s820 + $0x198] sm:$0xff]
        %v924 = vld [vmem:[%s820 + $0x1a0] sm:$0xff]
        %v925 = vld [vmem:[%s820 + $0x1a8] sm:$0xff]
        %v926 = vld [vmem:[%s820 + $0x1b0] sm:$0xff]
        %v927 = vld [vmem:[%s820 + $0x1b8] sm:$0xff]
        %v928 = vld [vmem:[%s820 + $0x1c0] sm:$0xff]
        %v929 = vld [vmem:[%s820 + $0x1c8] sm:$0xff]
        %v930 = vld [vmem:[%s820 + $0x1d0] sm:$0xff]
        %v931 = vld [vmem:[%s820 + $0x1d8] sm:$0xff]
        %v932 = vld [vmem:[%s820 + $0x1e0] sm:$0xff]
        %v933 = vld [vmem:[%s820 + $0x1e8] sm:$0xff]
        %v934 = vld [vmem:[%s820 + $0x1f0] sm:$0xff]
        %v935 = vld [vmem:[%s820 + $0x1f8] sm:$0xff]
        %v936 = vld [vmem:[%s820 + $0x200] sm:$0xff]
        %v937 = vld [vmem:[%s820 + $0x208] sm:$0xff]
        %v938 = vld [vmem:[%s820 + $0x210] sm:$0xff]
        %v939 = vld [vmem:[%s820 + $0x218] sm:$0xff]
        %v940 = vld [vmem:[%s820 + $0x220] sm:$0xff]
        %v941 = vld [vmem:[%s820 + $0x228] sm:$0xff]
        %v942 = vld [vmem:[%s820 + $0x230] sm:$0xff]
        %v943 = vld [vmem:[%s820 + $0x238] sm:$0xff]
        %v944 = vld [vmem:[%s820 + $0x240] sm:$0xff]
        %v945 = vld [vmem:[%s820 + $0x248] sm:$0xff]
        %v946 = vld [vmem:[%s820 + $0x250] sm:$0xff]
        %v947 = vld [vmem:[%s820 + $0x258] sm:$0xff]
        %v948 = vld [vmem:[%s820 + $0x260] sm:$0xff]
        %v949 = vld [vmem:[%s820 + $0x268] sm:$0xff]
        %v950 = vld [vmem:[%s820 + $0x270] sm:$0xff]
        %v951 = vld [vmem:[%s820 + $0x278] sm:$0xff]
        %v952 = vld [vmem:[%s820 + $0x280] sm:$0xff]
        %v953 = vld [vmem:[%s820 + $0x288] sm:$0xff]
        %v954 = vld [vmem:[%s820 + $0x290] sm:$0xff]
        %v955 = vld [vmem:[%s820 + $0x298] sm:$0xff]
        %v956 = vld [vmem:[%s820 + $0x2a0] sm:$0xff]
        %v957 = vld [vmem:[%s820 + $0x2a8] sm:$0xff]
        %v958 = vld [vmem:[%s820 + $0x2b0] sm:$0xff]
        %v959 = vld [vmem:[%s820 + $0x2b8] sm:$0xff]
        %v960 = vld [vmem:[%s820 + $0x2c0] sm:$0xff]
        %v961 = vld [vmem:[%s820 + $0x2c8] sm:$0xff]
        %v962 = vld [vmem:[%s820 + $0x2d0] sm:$0xff]
        %v963 = vld [vmem:[%s820 + $0x2d8] sm:$0xff]
        %v964 = vld [vmem:[%s820 + $0x2e0] sm:$0xff]
        %v965 = vld [vmem:[%s820 + $0x2e8] sm:$0xff]
        %v966 = vld [vmem:[%s820 + $0x2f0] sm:$0xff]
        %v967 = vld [vmem:[%s820 + $0x2f8] sm:$0xff]
        %v968 = vld [vmem:[%s820 + $0x300] sm:$0xff]
        %v969 = vld [vmem:[%s820 + $0x308] sm:$0xff]
        %v970 = vld [vmem:[%s820 + $0x310] sm:$0xff]
        %v971 = vld [vmem:[%s820 + $0x318] sm:$0xff]
        %v972 = vld [vmem:[%s820 + $0x320] sm:$0xff]
        %v973 = vld [vmem:[%s820 + $0x328] sm:$0xff]
        %v974 = vld [vmem:[%s820 + $0x330] sm:$0xff]
        %v975 = vld [vmem:[%s820 + $0x338] sm:$0xff]
        %v976 = vld [vmem:[%s820 + $0x340] sm:$0xff]
        %v977 = vld [vmem:[%s820 + $0x348] sm:$0xff]
        %v978 = vld [vmem:[%s820 + $0x350] sm:$0xff]
        %v979 = vld [vmem:[%s820 + $0x358] sm:$0xff]
        %v980 = vld [vmem:[%s820 + $0x360] sm:$0xff]
        %v981 = vld [vmem:[%s820 + $0x368] sm:$0xff]
        %v982 = vld [vmem:[%s820 + $0x370] sm:$0xff]
        %v983 = vld [vmem:[%s820 + $0x378] sm:$0xff]
        %v984 = vld [vmem:[%s820 + $0x380] sm:$0xff]
        %v985 = vld [vmem:[%s820 + $0x388] sm:$0xff]
        %v986 = vld [vmem:[%s820 + $0x390] sm:$0xff]
        %v987 = vld [vmem:[%s820 + $0x398] sm:$0xff]
        %v988 = vld [vmem:[%s820 + $0x3a0] sm:$0xff]
        %v989 = vld [vmem:[%s820 + $0x3a8] sm:$0xff]
        %v990 = vld [vmem:[%s820 + $0x3b0] sm:$0xff]
        %v991 = vld [vmem:[%s820 + $0x3b8] sm:$0xff]
        %v992 = vld [vmem:[%s820 + $0x3c0] sm:$0xff]
        %v993 = vld [vmem:[%s820 + $0x3c8] sm:$0xff]
        %v994 = vld [vmem:[%s820 + $0x3d0] sm:$0xff]
        %v995 = vld [vmem:[%s820 + $0x3d8] sm:$0xff]
        %v996 = vld [vmem:[%s820 + $0x3e0] sm:$0xff]
        %v997 = vld [vmem:[%s820 + $0x3e8] sm:$0xff]
        %v998 = vld [vmem:[%s820 + $0x3f0] sm:$0xff]
        %v999 = vld [vmem:[%s820 + $0x3f8] sm:$0xff]
        %v1000 = vld [vmem:[%s3] sm:$0xff]
        %1002 = vset.pattern.permute.xlu0 0
        %1003 = vperm.xlu0 %1002, %v1000
        %v1004 = vpop.permute.xlu0 %1003
        %v1134 = vunpack.c.l.b16 %v872
        %v1135 = vunpack.c.h.b16 %v872
        %v1136 = vunpack.c.l.b16 %v873
        %v1137 = vunpack.c.h.b16 %v873
        %v1138 = vunpack.c.l.b16 %v874
        %v1139 = vunpack.c.h.b16 %v874
        %v1140 = vunpack.c.l.b16 %v875
        %v1141 = vunpack.c.h.b16 %v875
        %v1142 = vunpack.c.l.b16 %v876
        %v1143 = vunpack.c.h.b16 %v876
        %v1144 = vunpack.c.l.b16 %v877
        %v1145 = vunpack.c.h.b16 %v877
        %v1146 = vunpack.c.l.b16 %v878
        %v1147 = vunpack.c.h.b16 %v878
        %v1148 = vunpack.c.l.b16 %v879
        %v1149 = vunpack.c.h.b16 %v879
        %v1150 = vunpack.c.l.b16 %v880
        %v1151 = vunpack.c.h.b16 %v880
        %v1152 = vunpack.c.l.b16 %v881
        %v1153 = vunpack.c.h.b16 %v881
        %v1154 = vunpack.c.l.b16 %v882
        %v1155 = vunpack.c.h.b16 %v882
        %v1156 = vunpack.c.l.b16 %v883
        %v1157 = vunpack.c.h.b16 %v883
        %v1158 = vunpack.c.l.b16 %v884
        %v1159 = vunpack.c.h.b16 %v884
        %v1160 = vunpack.c.l.b16 %v885
        %v1161 = vunpack.c.h.b16 %v885
        %v1162 = vunpack.c.l.b16 %v886
        %v1163 = vunpack.c.h.b16 %v886
        %v1164 = vunpack.c.l.b16 %v887
        %v1165 = vunpack.c.h.b16 %v887
        %v1166 = vunpack.c.l.b16 %v888
        %v1167 = vunpack.c.h.b16 %v888
        %v1168 = vunpack.c.l.b16 %v889
        %v1169 = vunpack.c.h.b16 %v889
        %v1170 = vunpack.c.l.b16 %v890
        %v1171 = vunpack.c.h.b16 %v890
        %v1172 = vunpack.c.l.b16 %v891
        %v1173 = vunpack.c.h.b16 %v891
        %v1174 = vunpack.c.l.b16 %v892
        %v1175 = vunpack.c.h.b16 %v892
        %v1176 = vunpack.c.l.b16 %v893
        %v1177 = vunpack.c.h.b16 %v893
        %v1178 = vunpack.c.l.b16 %v894
        %v1179 = vunpack.c.h.b16 %v894
        %v1180 = vunpack.c.l.b16 %v895
        %v1181 = vunpack.c.h.b16 %v895
        %v1182 = vunpack.c.l.b16 %v896
        %v1183 = vunpack.c.h.b16 %v896
        %v1184 = vunpack.c.l.b16 %v897
        %v1185 = vunpack.c.h.b16 %v897
        %v1186 = vunpack.c.l.b16 %v898
        %v1187 = vunpack.c.h.b16 %v898
        %v1188 = vunpack.c.l.b16 %v899
        %v1189 = vunpack.c.h.b16 %v899
        %v1190 = vunpack.c.l.b16 %v900
        %v1191 = vunpack.c.h.b16 %v900
        %v1192 = vunpack.c.l.b16 %v901
        %v1193 = vunpack.c.h.b16 %v901
        %v1194 = vunpack.c.l.b16 %v902
        %v1195 = vunpack.c.h.b16 %v902
        %v1196 = vunpack.c.l.b16 %v903
        %v1197 = vunpack.c.h.b16 %v903
        %v1198 = vunpack.c.l.b16 %v904
        %v1199 = vunpack.c.h.b16 %v904
        %v1200 = vunpack.c.l.b16 %v905
        %v1201 = vunpack.c.h.b16 %v905
        %v1202 = vunpack.c.l.b16 %v906
        %v1203 = vunpack.c.h.b16 %v906
        %v1204 = vunpack.c.l.b16 %v907
        %v1205 = vunpack.c.h.b16 %v907
        %v1206 = vunpack.c.l.b16 %v908
        %v1207 = vunpack.c.h.b16 %v908
        %v1208 = vunpack.c.l.b16 %v909
        %v1209 = vunpack.c.h.b16 %v909
        %v1210 = vunpack.c.l.b16 %v910
        %v1211 = vunpack.c.h.b16 %v910
        %v1212 = vunpack.c.l.b16 %v911
        %v1213 = vunpack.c.h.b16 %v911
        %v1214 = vunpack.c.l.b16 %v912
        %v1215 = vunpack.c.h.b16 %v912
        %v1216 = vunpack.c.l.b16 %v913
        %v1217 = vunpack.c.h.b16 %v913
        %v1218 = vunpack.c.l.b16 %v914
        %v1219 = vunpack.c.h.b16 %v914
        %v1220 = vunpack.c.l.b16 %v915
        %v1221 = vunpack.c.h.b16 %v915
        %v1222 = vunpack.c.l.b16 %v916
        %v1223 = vunpack.c.h.b16 %v916
        %v1224 = vunpack.c.l.b16 %v917
        %v1225 = vunpack.c.h.b16 %v917
        %v1226 = vunpack.c.l.b16 %v918
        %v1227 = vunpack.c.h.b16 %v918
        %v1228 = vunpack.c.l.b16 %v919
        %v1229 = vunpack.c.h.b16 %v919
        %v1230 = vunpack.c.l.b16 %v920
        %v1231 = vunpack.c.h.b16 %v920
        %v1232 = vunpack.c.l.b16 %v921
        %v1233 = vunpack.c.h.b16 %v921
        %v1234 = vunpack.c.l.b16 %v922
        %v1235 = vunpack.c.h.b16 %v922
        %v1236 = vunpack.c.l.b16 %v923
        %v1237 = vunpack.c.h.b16 %v923
        %v1238 = vunpack.c.l.b16 %v924
        %v1239 = vunpack.c.h.b16 %v924
        %v1240 = vunpack.c.l.b16 %v925
        %v1241 = vunpack.c.h.b16 %v925
        %v1242 = vunpack.c.l.b16 %v926
        %v1243 = vunpack.c.h.b16 %v926
        %v1244 = vunpack.c.l.b16 %v927
        %v1245 = vunpack.c.h.b16 %v927
        %v1246 = vunpack.c.l.b16 %v928
        %v1247 = vunpack.c.h.b16 %v928
        %v1248 = vunpack.c.l.b16 %v929
        %v1249 = vunpack.c.h.b16 %v929
        %v1250 = vunpack.c.l.b16 %v930
        %v1251 = vunpack.c.h.b16 %v930
        %v1252 = vunpack.c.l.b16 %v931
        %v1253 = vunpack.c.h.b16 %v931
        %v1254 = vunpack.c.l.b16 %v932
        %v1255 = vunpack.c.h.b16 %v932
        %v1256 = vunpack.c.l.b16 %v933
        %v1257 = vunpack.c.h.b16 %v933
        %v1258 = vunpack.c.l.b16 %v934
        %v1259 = vunpack.c.h.b16 %v934
        %v1260 = vunpack.c.l.b16 %v935
        %v1261 = vunpack.c.h.b16 %v935
        %v1262 = vunpack.c.l.b16 %v936
        %v1263 = vunpack.c.h.b16 %v936
        %v1264 = vunpack.c.l.b16 %v937
        %v1265 = vunpack.c.h.b16 %v937
        %v1266 = vunpack.c.l.b16 %v938
        %v1267 = vunpack.c.h.b16 %v938
        %v1268 = vunpack.c.l.b16 %v939
        %v1269 = vunpack.c.h.b16 %v939
        %v1270 = vunpack.c.l.b16 %v940
        %v1271 = vunpack.c.h.b16 %v940
        %v1272 = vunpack.c.l.b16 %v941
        %v1273 = vunpack.c.h.b16 %v941
        %v1274 = vunpack.c.l.b16 %v942
        %v1275 = vunpack.c.h.b16 %v942
        %v1276 = vunpack.c.l.b16 %v943
        %v1277 = vunpack.c.h.b16 %v943
        %v1278 = vunpack.c.l.b16 %v944
        %v1279 = vunpack.c.h.b16 %v944
        %v1280 = vunpack.c.l.b16 %v945
        %v1281 = vunpack.c.h.b16 %v945
        %v1282 = vunpack.c.l.b16 %v946
        %v1283 = vunpack.c.h.b16 %v946
        %v1284 = vunpack.c.l.b16 %v947
        %v1285 = vunpack.c.h.b16 %v947
        %v1286 = vunpack.c.l.b16 %v948
        %v1287 = vunpack.c.h.b16 %v948
        %v1288 = vunpack.c.l.b16 %v949
        %v1289 = vunpack.c.h.b16 %v949
        %v1290 = vunpack.c.l.b16 %v950
        %v1291 = vunpack.c.h.b16 %v950
        %v1292 = vunpack.c.l.b16 %v951
        %v1293 = vunpack.c.h.b16 %v951
        %v1294 = vunpack.c.l.b16 %v952
        %v1295 = vunpack.c.h.b16 %v952
        %v1296 = vunpack.c.l.b16 %v953
        %v1297 = vunpack.c.h.b16 %v953
        %v1298 = vunpack.c.l.b16 %v954
        %v1299 = vunpack.c.h.b16 %v954
        %v1300 = vunpack.c.l.b16 %v955
        %v1301 = vunpack.c.h.b16 %v955
        %v1302 = vunpack.c.l.b16 %v956
        %v1303 = vunpack.c.h.b16 %v956
        %v1304 = vunpack.c.l.b16 %v957
        %v1305 = vunpack.c.h.b16 %v957
        %v1306 = vunpack.c.l.b16 %v958
        %v1307 = vunpack.c.h.b16 %v958
        %v1308 = vunpack.c.l.b16 %v959
        %v1309 = vunpack.c.h.b16 %v959
        %v1310 = vunpack.c.l.b16 %v960
        %v1311 = vunpack.c.h.b16 %v960
        %v1312 = vunpack.c.l.b16 %v961
        %v1313 = vunpack.c.h.b16 %v961
        %v1314 = vunpack.c.l.b16 %v962
        %v1315 = vunpack.c.h.b16 %v962
        %v1316 = vunpack.c.l.b16 %v963
        %v1317 = vunpack.c.h.b16 %v963
        %v1318 = vunpack.c.l.b16 %v964
        %v1319 = vunpack.c.h.b16 %v964
        %v1320 = vunpack.c.l.b16 %v965
        %v1321 = vunpack.c.h.b16 %v965
        %v1322 = vunpack.c.l.b16 %v966
        %v1323 = vunpack.c.h.b16 %v966
        %v1324 = vunpack.c.l.b16 %v967
        %v1325 = vunpack.c.h.b16 %v967
        %v1326 = vunpack.c.l.b16 %v968
        %v1327 = vunpack.c.h.b16 %v968
        %v1328 = vunpack.c.l.b16 %v969
        %v1329 = vunpack.c.h.b16 %v969
        %v1330 = vunpack.c.l.b16 %v970
        %v1331 = vunpack.c.h.b16 %v970
        %v1332 = vunpack.c.l.b16 %v971
        %v1333 = vunpack.c.h.b16 %v971
        %v1334 = vunpack.c.l.b16 %v972
        %v1335 = vunpack.c.h.b16 %v972
        %v1336 = vunpack.c.l.b16 %v973
        %v1337 = vunpack.c.h.b16 %v973
        %v1338 = vunpack.c.l.b16 %v974
        %v1339 = vunpack.c.h.b16 %v974
        %v1340 = vunpack.c.l.b16 %v975
        %v1341 = vunpack.c.h.b16 %v975
        %v1342 = vunpack.c.l.b16 %v976
        %v1343 = vunpack.c.h.b16 %v976
        %v1344 = vunpack.c.l.b16 %v977
        %v1345 = vunpack.c.h.b16 %v977
        %v1346 = vunpack.c.l.b16 %v978
        %v1347 = vunpack.c.h.b16 %v978
        %v1348 = vunpack.c.l.b16 %v979
        %v1349 = vunpack.c.h.b16 %v979
        %v1350 = vunpack.c.l.b16 %v980
        %v1351 = vunpack.c.h.b16 %v980
        %v1352 = vunpack.c.l.b16 %v981
        %v1353 = vunpack.c.h.b16 %v981
        %v1354 = vunpack.c.l.b16 %v982
        %v1355 = vunpack.c.h.b16 %v982
        %v1356 = vunpack.c.l.b16 %v983
        %v1357 = vunpack.c.h.b16 %v983
        %v1358 = vunpack.c.l.b16 %v984
        %v1359 = vunpack.c.h.b16 %v984
        %v1360 = vunpack.c.l.b16 %v985
        %v1361 = vunpack.c.h.b16 %v985
        %v1362 = vunpack.c.l.b16 %v986
        %v1363 = vunpack.c.h.b16 %v986
        %v1364 = vunpack.c.l.b16 %v987
        %v1365 = vunpack.c.h.b16 %v987
        %v1366 = vunpack.c.l.b16 %v988
        %v1367 = vunpack.c.h.b16 %v988
        %v1368 = vunpack.c.l.b16 %v989
        %v1369 = vunpack.c.h.b16 %v989
        %v1370 = vunpack.c.l.b16 %v990
        %v1371 = vunpack.c.h.b16 %v990
        %v1372 = vunpack.c.l.b16 %v991
        %v1373 = vunpack.c.h.b16 %v991
        %v1374 = vunpack.c.l.b16 %v992
        %v1375 = vunpack.c.h.b16 %v992
        %v1376 = vunpack.c.l.b16 %v993
        %v1377 = vunpack.c.h.b16 %v993
        %v1378 = vunpack.c.l.b16 %v994
        %v1379 = vunpack.c.h.b16 %v994
        %v1380 = vunpack.c.l.b16 %v995
        %v1381 = vunpack.c.h.b16 %v995
        %v1382 = vunpack.c.l.b16 %v996
        %v1383 = vunpack.c.h.b16 %v996
        %v1384 = vunpack.c.l.b16 %v997
        %v1385 = vunpack.c.h.b16 %v997
        %v1386 = vunpack.c.l.b16 %v998
        %v1387 = vunpack.c.h.b16 %v998
        %v1388 = vunpack.c.l.b16 %v999
        %v1389 = vunpack.c.h.b16 %v999
        %v1390 = vpack.c.b16 %v1198, %v1134
        %v1391 = vpack.c.b16 %v1199, %v1135
        %v1392 = vpack.c.b16 %v1200, %v1136
        %v1393 = vpack.c.b16 %v1201, %v1137
        %v1394 = vpack.c.b16 %v1202, %v1138
        %v1395 = vpack.c.b16 %v1203, %v1139
        %v1396 = vpack.c.b16 %v1204, %v1140
        %v1397 = vpack.c.b16 %v1205, %v1141
        %v1398 = vpack.c.b16 %v1206, %v1142
        %v1399 = vpack.c.b16 %v1207, %v1143
        %v1400 = vpack.c.b16 %v1208, %v1144
        %v1401 = vpack.c.b16 %v1209, %v1145
        %v1402 = vpack.c.b16 %v1210, %v1146
        %v1403 = vpack.c.b16 %v1211, %v1147
        %v1404 = vpack.c.b16 %v1212, %v1148
        %v1405 = vpack.c.b16 %v1213, %v1149
        %v1406 = vpack.c.b16 %v1214, %v1150
        %v1407 = vpack.c.b16 %v1215, %v1151
        %v1408 = vpack.c.b16 %v1216, %v1152
        %v1409 = vpack.c.b16 %v1217, %v1153
        %v1410 = vpack.c.b16 %v1218, %v1154
        %v1411 = vpack.c.b16 %v1219, %v1155
        %v1412 = vpack.c.b16 %v1220, %v1156
        %v1413 = vpack.c.b16 %v1221, %v1157
        %v1414 = vpack.c.b16 %v1222, %v1158
        %v1415 = vpack.c.b16 %v1223, %v1159
        %v1416 = vpack.c.b16 %v1224, %v1160
        %v1417 = vpack.c.b16 %v1225, %v1161
        %v1418 = vpack.c.b16 %v1226, %v1162
        %v1419 = vpack.c.b16 %v1227, %v1163
        %v1420 = vpack.c.b16 %v1228, %v1164
        %v1421 = vpack.c.b16 %v1229, %v1165
        %v1422 = vpack.c.b16 %v1230, %v1166
        %v1423 = vpack.c.b16 %v1231, %v1167
        %v1424 = vpack.c.b16 %v1232, %v1168
        %v1425 = vpack.c.b16 %v1233, %v1169
        %v1426 = vpack.c.b16 %v1234, %v1170
        %v1427 = vpack.c.b16 %v1235, %v1171
        %v1428 = vpack.c.b16 %v1236, %v1172
        %v1429 = vpack.c.b16 %v1237, %v1173
        %v1430 = vpack.c.b16 %v1238, %v1174
        %v1431 = vpack.c.b16 %v1239, %v1175
        %v1432 = vpack.c.b16 %v1240, %v1176
        %v1433 = vpack.c.b16 %v1241, %v1177
        %v1434 = vpack.c.b16 %v1242, %v1178
        %v1435 = vpack.c.b16 %v1243, %v1179
        %v1436 = vpack.c.b16 %v1244, %v1180
        %v1437 = vpack.c.b16 %v1245, %v1181
        %v1438 = vpack.c.b16 %v1246, %v1182
        %v1439 = vpack.c.b16 %v1247, %v1183
        %v1440 = vpack.c.b16 %v1248, %v1184
        %v1441 = vpack.c.b16 %v1249, %v1185
        %v1442 = vpack.c.b16 %v1250, %v1186
        %v1443 = vpack.c.b16 %v1251, %v1187
        %v1444 = vpack.c.b16 %v1252, %v1188
        %v1445 = vpack.c.b16 %v1253, %v1189
        %v1446 = vpack.c.b16 %v1254, %v1190
        %v1447 = vpack.c.b16 %v1255, %v1191
        %v1448 = vpack.c.b16 %v1256, %v1192
        %v1449 = vpack.c.b16 %v1257, %v1193
        %v1450 = vpack.c.b16 %v1258, %v1194
        %v1451 = vpack.c.b16 %v1259, %v1195
        %v1452 = vpack.c.b16 %v1260, %v1196
        %v1453 = vpack.c.b16 %v1261, %v1197
        %v1454 = vpack.c.b16 %v1326, %v1262
        %v1455 = vpack.c.b16 %v1327, %v1263
        %v1456 = vpack.c.b16 %v1328, %v1264
        %v1457 = vpack.c.b16 %v1329, %v1265
        %v1458 = vpack.c.b16 %v1330, %v1266
        %v1459 = vpack.c.b16 %v1331, %v1267
        %v1460 = vpack.c.b16 %v1332, %v1268
        %v1461 = vpack.c.b16 %v1333, %v1269
        %v1462 = vpack.c.b16 %v1334, %v1270
        %v1463 = vpack.c.b16 %v1335, %v1271
        %v1464 = vpack.c.b16 %v1336, %v1272
        %v1465 = vpack.c.b16 %v1337, %v1273
        %v1466 = vpack.c.b16 %v1338, %v1274
        %v1467 = vpack.c.b16 %v1339, %v1275
        %v1468 = vpack.c.b16 %v1340, %v1276
        %v1469 = vpack.c.b16 %v1341, %v1277
        %v1470 = vpack.c.b16 %v1342, %v1278
        %v1471 = vpack.c.b16 %v1343, %v1279
        %v1472 = vpack.c.b16 %v1344, %v1280
        %v1473 = vpack.c.b16 %v1345, %v1281
        %v1474 = vpack.c.b16 %v1346, %v1282
        %v1475 = vpack.c.b16 %v1347, %v1283
        %v1476 = vpack.c.b16 %v1348, %v1284
        %v1477 = vpack.c.b16 %v1349, %v1285
        %v1478 = vpack.c.b16 %v1350, %v1286
        %v1479 = vpack.c.b16 %v1351, %v1287
        %v1480 = vpack.c.b16 %v1352, %v1288
        %v1481 = vpack.c.b16 %v1353, %v1289
        %v1482 = vpack.c.b16 %v1354, %v1290
        %v1483 = vpack.c.b16 %v1355, %v1291
        %v1484 = vpack.c.b16 %v1356, %v1292
        %v1485 = vpack.c.b16 %v1357, %v1293
        %v1486 = vpack.c.b16 %v1358, %v1294
        %v1487 = vpack.c.b16 %v1359, %v1295
        %v1488 = vpack.c.b16 %v1360, %v1296
        %v1489 = vpack.c.b16 %v1361, %v1297
        %v1490 = vpack.c.b16 %v1362, %v1298
        %v1491 = vpack.c.b16 %v1363, %v1299
        %v1492 = vpack.c.b16 %v1364, %v1300
        %v1493 = vpack.c.b16 %v1365, %v1301
        %v1494 = vpack.c.b16 %v1366, %v1302
        %v1495 = vpack.c.b16 %v1367, %v1303
        %v1496 = vpack.c.b16 %v1368, %v1304
        %v1497 = vpack.c.b16 %v1369, %v1305
        %v1498 = vpack.c.b16 %v1370, %v1306
        %v1499 = vpack.c.b16 %v1371, %v1307
        %v1500 = vpack.c.b16 %v1372, %v1308
        %v1501 = vpack.c.b16 %v1373, %v1309
        %v1502 = vpack.c.b16 %v1374, %v1310
        %v1503 = vpack.c.b16 %v1375, %v1311
        %v1504 = vpack.c.b16 %v1376, %v1312
        %v1505 = vpack.c.b16 %v1377, %v1313
        %v1506 = vpack.c.b16 %v1378, %v1314
        %v1507 = vpack.c.b16 %v1379, %v1315
        %v1508 = vpack.c.b16 %v1380, %v1316
        %v1509 = vpack.c.b16 %v1381, %v1317
        %v1510 = vpack.c.b16 %v1382, %v1318
        %v1511 = vpack.c.b16 %v1383, %v1319
        %v1512 = vpack.c.b16 %v1384, %v1320
        %v1513 = vpack.c.b16 %v1385, %v1321
        %v1514 = vpack.c.b16 %v1386, %v1322
        %v1515 = vpack.c.b16 %v1387, %v1323
        %v1516 = vpack.c.b16 %v1388, %v1324
        %v1517 = vpack.c.b16 %v1389, %v1325
        %vm1646 = vcmask 261120
        %v1648 = vsel %vm1646, %v871, 0
        %1650 = vmatprep.subr.bf16.mxu0 0
        %1651 = vmatpush1.bf16.msra.mxu0 0
        %1652 = vmatprep.subr.bf16.mxu0 0
        %1653 = vmatpush1.bf16.msra.mxu0 0
        %1654 = vmatprep.subr.bf16.mxu0 0
        %1655 = vmatpush1.bf16.msra.mxu0 0
        %1656 = vmatprep.subr.bf16.mxu0 0
        %1657 = vmatpush1.bf16.msra.mxu0 0
        %1658 = vmatprep.subr.bf16.mxu0 0
        %1659 = vmatpush1.bf16.msra.mxu0 0
        %1660 = vmatprep.subr.bf16.mxu0 0
        %1661 = vmatpush1.bf16.msra.mxu0 0
        %1662 = vmatprep.subr.bf16.mxu0 %v1455
        %1663 = vmatpush1.bf16.msra.mxu0 %v1454
        %1664 = vmatprep.subr.bf16.mxu0 %v1391
        %1665 = vmatpush1.bf16.msra.mxu0 %v1390
        %1666 = vmatprep.subr.bf16.mxu0 0
        %1667 = vmatpush2.bf16.msra.mxu0 0
        %1668 = vmatprep.subr.bf16.mxu0 0
        %1669 = vmatpush2.bf16.msra.mxu0 0
        %1670 = vmatprep.subr.bf16.mxu0 0
        %1671 = vmatpush2.bf16.msra.mxu0 0
        %1672 = vmatprep.subr.bf16.mxu0 0
        %1673 = vmatpush2.bf16.msra.mxu0 0
        %1674 = vmatprep.subr.bf16.mxu0 0
        %1675 = vmatpush2.bf16.msra.mxu0 0
        %1676 = vmatprep.subr.bf16.mxu0 0
        %1677 = vmatpush2.bf16.msra.mxu0 0
        %1678 = vmatprep.subr.bf16.mxu0 0
        %1679 = vmatpush2.bf16.msra.mxu0 0
        %1680 = vmatprep.subr.bf16.mxu0 0
        %1681 = vmatpush2.bf16.msra.mxu0 0
        %1682 = vmatprep.mubr.bf16.mxu0 0
        %1683 = vmatmul.mubr.bf16.gmra.mxu0 %v1648
        %v1684 = vpop.f32.mrf.mxu0
        %v1685 = vadd.f32 %v1004, %v1684
        %v1686 = vpop.f32.mrf.mxu0
        %v1687 = vadd.f32 %v1004, %v1686
        %v1688 = vpop.f32.mrf.mxu0
        %v1689 = vpop.f32.mrf.mxu0
        %1690 = vdwg.mxu0
        %1691 = vmatprep.subr.bf16.mxu0 0
        %1692 = vmatpush1.bf16.msra.mxu0 0
        %1693 = vmatprep.subr.bf16.mxu0 0
        %1694 = vmatpush1.bf16.msra.mxu0 0
        %1695 = vmatprep.subr.bf16.mxu0 0
        %1696 = vmatpush1.bf16.msra.mxu0 0
        %1697 = vmatprep.subr.bf16.mxu0 0
        %1698 = vmatpush1.bf16.msra.mxu0 0
        %1699 = vmatprep.subr.bf16.mxu0 0
        %1700 = vmatpush1.bf16.msra.mxu0 0
        %1701 = vmatprep.subr.bf16.mxu0 0
        %1702 = vmatpush1.bf16.msra.mxu0 0
        %1703 = vmatprep.subr.bf16.mxu0 %v1457
        %1704 = vmatpush1.bf16.msra.mxu0 %v1456
        %1705 = vmatprep.subr.bf16.mxu0 %v1393
        %1706 = vmatpush1.bf16.msra.mxu0 %v1392
        %1707 = vmatprep.subr.bf16.mxu0 0
        %1708 = vmatpush2.bf16.msra.mxu0 0
        %1709 = vmatprep.subr.bf16.mxu0 0
        %1710 = vmatpush2.bf16.msra.mxu0 0
        %1711 = vmatprep.subr.bf16.mxu0 0
        %1712 = vmatpush2.bf16.msra.mxu0 0
        %1713 = vmatprep.subr.bf16.mxu0 0
        %1714 = vmatpush2.bf16.msra.mxu0 0
        %1715 = vmatprep.subr.bf16.mxu0 0
        %1716 = vmatpush2.bf16.msra.mxu0 0
        %1717 = vmatprep.subr.bf16.mxu0 0
        %1718 = vmatpush2.bf16.msra.mxu0 0
        %1719 = vmatprep.subr.bf16.mxu0 0
        %1720 = vmatpush2.bf16.msra.mxu0 0
        %1721 = vmatprep.subr.bf16.mxu0 0
        %1722 = vmatpush2.bf16.msra.mxu0 0
        %1723 = vmatprep.mubr.bf16.mxu0 0
        %1724 = vmatmul.mubr.bf16.gmra.mxu0 %v1648
        %v1725 = vpop.f32.mrf.mxu0
        %v1726 = vadd.f32 %v1004, %v1725
        %v1727 = vpop.f32.mrf.mxu0
        %v1728 = vadd.f32 %v1004, %v1727
        %v1729 = vpop.f32.mrf.mxu0
        %v1730 = vpop.f32.mrf.mxu0
        %1731 = vdwg.mxu0
        %1732 = vmatprep.subr.bf16.mxu0 0
        %1733 = vmatpush1.bf16.msra.mxu0 0
        %1734 = vmatprep.subr.bf16.mxu0 0
        %1735 = vmatpush1.bf16.msra.mxu0 0
        %1736 = vmatprep.subr.bf16.mxu0 0
        %1737 = vmatpush1.bf16.msra.mxu0 0
        %1738 = vmatprep.subr.bf16.mxu0 0
        %1739 = vmatpush1.bf16.msra.mxu0 0
        %1740 = vmatprep.subr.bf16.mxu0 0
        %1741 = vmatpush1.bf16.msra.mxu0 0
        %1742 = vmatprep.subr.bf16.mxu0 0
        %1743 = vmatpush1.bf16.msra.mxu0 0
        %1744 = vmatprep.subr.bf16.mxu0 %v1459
        %1745 = vmatpush1.bf16.msra.mxu0 %v1458
        %1746 = vmatprep.subr.bf16.mxu0 %v1395
        %1747 = vmatpush1.bf16.msra.mxu0 %v1394
        %1748 = vmatprep.subr.bf16.mxu0 0
        %1749 = vmatpush2.bf16.msra.mxu0 0
        %1750 = vmatprep.subr.bf16.mxu0 0
        %1751 = vmatpush2.bf16.msra.mxu0 0
        %1752 = vmatprep.subr.bf16.mxu0 0
        %1753 = vmatpush2.bf16.msra.mxu0 0
        %1754 = vmatprep.subr.bf16.mxu0 0
        %1755 = vmatpush2.bf16.msra.mxu0 0
        %1756 = vmatprep.subr.bf16.mxu0 0
        %1757 = vmatpush2.bf16.msra.mxu0 0
        %1758 = vmatprep.subr.bf16.mxu0 0
        %1759 = vmatpush2.bf16.msra.mxu0 0
        %1760 = vmatprep.subr.bf16.mxu0 0
        %1761 = vmatpush2.bf16.msra.mxu0 0
        %1762 = vmatprep.subr.bf16.mxu0 0
        %1763 = vmatpush2.bf16.msra.mxu0 0
        %1764 = vmatprep.mubr.bf16.mxu0 0
        %1765 = vmatmul.mubr.bf16.gmra.mxu0 %v1648
        %v1766 = vpop.f32.mrf.mxu0
        %v1767 = vadd.f32 %v1004, %v1766
        %v1768 = vpop.f32.mrf.mxu0
        %v1769 = vadd.f32 %v1004, %v1768
        %v1770 = vpop.f32.mrf.mxu0
        %v1771 = vpop.f32.mrf.mxu0
        %1772 = vdwg.mxu0
        %1773 = vmatprep.subr.bf16.mxu0 0
        %1774 = vmatpush1.bf16.msra.mxu0 0
        %1775 = vmatprep.subr.bf16.mxu0 0
        %1776 = vmatpush1.bf16.msra.mxu0 0
        %1777 = vmatprep.subr.bf16.mxu0 0
        %1778 = vmatpush1.bf16.msra.mxu0 0
        %1779 = vmatprep.subr.bf16.mxu0 0
        %1780 = vmatpush1.bf16.msra.mxu0 0
        %1781 = vmatprep.subr.bf16.mxu0 0
        %1782 = vmatpush1.bf16.msra.mxu0 0
        %1783 = vmatprep.subr.bf16.mxu0 0
        %1784 = vmatpush1.bf16.msra.mxu0 0
        %1785 = vmatprep.subr.bf16.mxu0 %v1461
        %1786 = vmatpush1.bf16.msra.mxu0 %v1460
        %1787 = vmatprep.subr.bf16.mxu0 %v1397
        %1788 = vmatpush1.bf16.msra.mxu0 %v1396
        %1789 = vmatprep.subr.bf16.mxu0 0
        %1790 = vmatpush2.bf16.msra.mxu0 0
        %1791 = vmatprep.subr.bf16.mxu0 0
        %1792 = vmatpush2.bf16.msra.mxu0 0
        %1793 = vmatprep.subr.bf16.mxu0 0
        %1794 = vmatpush2.bf16.msra.mxu0 0
        %1795 = vmatprep.subr.bf16.mxu0 0
        %1796 = vmatpush2.bf16.msra.mxu0 0
        %1797 = vmatprep.subr.bf16.mxu0 0
        %1798 = vmatpush2.bf16.msra.mxu0 0
        %1799 = vmatprep.subr.bf16.mxu0 0
        %1800 = vmatpush2.bf16.msra.mxu0 0
        %1801 = vmatprep.subr.bf16.mxu0 0
        %1802 = vmatpush2.bf16.msra.mxu0 0
        %1803 = vmatprep.subr.bf16.mxu0 0
        %1804 = vmatpush2.bf16.msra.mxu0 0
        %1805 = vmatprep.mubr.bf16.mxu0 0
        %1806 = vmatmul.mubr.bf16.gmra.mxu0 %v1648
        %v1807 = vpop.f32.mrf.mxu0
        %v1808 = vadd.f32 %v1004, %v1807
        %v1809 = vpop.f32.mrf.mxu0
        %v1810 = vadd.f32 %v1004, %v1809
        %v1811 = vpop.f32.mrf.mxu0
        %v1812 = vpop.f32.mrf.mxu0
        %1813 = vdwg.mxu0
        %1814 = vmatprep.subr.bf16.mxu0 0
        %1815 = vmatpush1.bf16.msra.mxu0 0
        %1816 = vmatprep.subr.bf16.mxu0 0
        %1817 = vmatpush1.bf16.msra.mxu0 0
        %1818 = vmatprep.subr.bf16.mxu0 0
        %1819 = vmatpush1.bf16.msra.mxu0 0
        %1820 = vmatprep.subr.bf16.mxu0 0
        %1821 = vmatpush1.bf16.msra.mxu0 0
        %1822 = vmatprep.subr.bf16.mxu0 0
        %1823 = vmatpush1.bf16.msra.mxu0 0
        %1824 = vmatprep.subr.bf16.mxu0 0
        %1825 = vmatpush1.bf16.msra.mxu0 0
        %1826 = vmatprep.subr.bf16.mxu0 %v1463
        %1827 = vmatpush1.bf16.msra.mxu0 %v1462
        %1828 = vmatprep.subr.bf16.mxu0 %v1399
        %1829 = vmatpush1.bf16.msra.mxu0 %v1398
        %1830 = vmatprep.subr.bf16.mxu0 0
        %1831 = vmatpush2.bf16.msra.mxu0 0
        %1832 = vmatprep.subr.bf16.mxu0 0
        %1833 = vmatpush2.bf16.msra.mxu0 0
        %1834 = vmatprep.subr.bf16.mxu0 0
        %1835 = vmatpush2.bf16.msra.mxu0 0
        %1836 = vmatprep.subr.bf16.mxu0 0
        %1837 = vmatpush2.bf16.msra.mxu0 0
        %1838 = vmatprep.subr.bf16.mxu0 0
        %1839 = vmatpush2.bf16.msra.mxu0 0
        %1840 = vmatprep.subr.bf16.mxu0 0
        %1841 = vmatpush2.bf16.msra.mxu0 0
        %1842 = vmatprep.subr.bf16.mxu0 0
        %1843 = vmatpush2.bf16.msra.mxu0 0
        %1844 = vmatprep.subr.bf16.mxu0 0
        %1845 = vmatpush2.bf16.msra.mxu0 0
        %1846 = vmatprep.mubr.bf16.mxu0 0
        %1847 = vmatmul.mubr.bf16.gmra.mxu0 %v1648
        %v1848 = vpop.f32.mrf.mxu0
        %v1849 = vadd.f32 %v1004, %v1848
        %v1850 = vpop.f32.mrf.mxu0
        %v1851 = vadd.f32 %v1004, %v1850
        %v1852 = vpop.f32.mrf.mxu0
        %v1853 = vpop.f32.mrf.mxu0
        %1854 = vdwg.mxu0
        %1855 = vmatprep.subr.bf16.mxu0 0
        %1856 = vmatpush1.bf16.msra.mxu0 0
        %1857 = vmatprep.subr.bf16.mxu0 0
        %1858 = vmatpush1.bf16.msra.mxu0 0
        %1859 = vmatprep.subr.bf16.mxu0 0
        %1860 = vmatpush1.bf16.msra.mxu0 0
        %1861 = vmatprep.subr.bf16.mxu0 0
        %1862 = vmatpush1.bf16.msra.mxu0 0
        %1863 = vmatprep.subr.bf16.mxu0 0
        %1864 = vmatpush1.bf16.msra.mxu0 0
        %1865 = vmatprep.subr.bf16.mxu0 0
        %1866 = vmatpush1.bf16.msra.mxu0 0
        %1867 = vmatprep.subr.bf16.mxu0 %v1465
        %1868 = vmatpush1.bf16.msra.mxu0 %v1464
        %1869 = vmatprep.subr.bf16.mxu0 %v1401
        %1870 = vmatpush1.bf16.msra.mxu0 %v1400
        %1871 = vmatprep.subr.bf16.mxu0 0
        %1872 = vmatpush2.bf16.msra.mxu0 0
        %1873 = vmatprep.subr.bf16.mxu0 0
        %1874 = vmatpush2.bf16.msra.mxu0 0
        %1875 = vmatprep.subr.bf16.mxu0 0
        %1876 = vmatpush2.bf16.msra.mxu0 0
        %1877 = vmatprep.subr.bf16.mxu0 0
        %1878 = vmatpush2.bf16.msra.mxu0 0
        %1879 = vmatprep.subr.bf16.mxu0 0
        %1880 = vmatpush2.bf16.msra.mxu0 0
        %1881 = vmatprep.subr.bf16.mxu0 0
        %1882 = vmatpush2.bf16.msra.mxu0 0
        %1883 = vmatprep.subr.bf16.mxu0 0
        %1884 = vmatpush2.bf16.msra.mxu0 0
        %1885 = vmatprep.subr.bf16.mxu0 0
        %1886 = vmatpush2.bf16.msra.mxu0 0
        %1887 = vmatprep.mubr.bf16.mxu0 0
        %1888 = vmatmul.mubr.bf16.gmra.mxu0 %v1648
        %v1889 = vpop.f32.mrf.mxu0
        %v1890 = vadd.f32 %v1004, %v1889
        %v1891 = vpop.f32.mrf.mxu0
        %v1892 = vadd.f32 %v1004, %v1891
        %v1893 = vpop.f32.mrf.mxu0
        %v1894 = vpop.f32.mrf.mxu0
        %1895 = vdwg.mxu0
        %1896 = vmatprep.subr.bf16.mxu0 0
        %1897 = vmatpush1.bf16.msra.mxu0 0
        %1898 = vmatprep.subr.bf16.mxu0 0
        %1899 = vmatpush1.bf16.msra.mxu0 0
        %1900 = vmatprep.subr.bf16.mxu0 0
        %1901 = vmatpush1.bf16.msra.mxu0 0
        %1902 = vmatprep.subr.bf16.mxu0 0
        %1903 = vmatpush1.bf16.msra.mxu0 0
        %1904 = vmatprep.subr.bf16.mxu0 0
        %1905 = vmatpush1.bf16.msra.mxu0 0
        %1906 = vmatprep.subr.bf16.mxu0 0
        %1907 = vmatpush1.bf16.msra.mxu0 0
        %1908 = vmatprep.subr.bf16.mxu0 %v1467
        %1909 = vmatpush1.bf16.msra.mxu0 %v1466
        %1910 = vmatprep.subr.bf16.mxu0 %v1403
        %1911 = vmatpush1.bf16.msra.mxu0 %v1402
        %1912 = vmatprep.subr.bf16.mxu0 0
        %1913 = vmatpush2.bf16.msra.mxu0 0
        %1914 = vmatprep.subr.bf16.mxu0 0
        %1915 = vmatpush2.bf16.msra.mxu0 0
        %1916 = vmatprep.subr.bf16.mxu0 0
        %1917 = vmatpush2.bf16.msra.mxu0 0
        %1918 = vmatprep.subr.bf16.mxu0 0
        %1919 = vmatpush2.bf16.msra.mxu0 0
        %1920 = vmatprep.subr.bf16.mxu0 0
        %1921 = vmatpush2.bf16.msra.mxu0 0
        %1922 = vmatprep.subr.bf16.mxu0 0
        %1923 = vmatpush2.bf16.msra.mxu0 0
        %1924 = vmatprep.subr.bf16.mxu0 0
        %1925 = vmatpush2.bf16.msra.mxu0 0
        %1926 = vmatprep.subr.bf16.mxu0 0
        %1927 = vmatpush2.bf16.msra.mxu0 0
        %1928 = vmatprep.mubr.bf16.mxu0 0
        %1929 = vmatmul.mubr.bf16.gmra.mxu0 %v1648
        %v1930 = vpop.f32.mrf.mxu0
        %v1931 = vadd.f32 %v1004, %v1930
        %v1932 = vpop.f32.mrf.mxu0
        %v1933 = vadd.f32 %v1004, %v1932
        %v1934 = vpop.f32.mrf.mxu0
        %v1935 = vpop.f32.mrf.mxu0
        %1936 = vdwg.mxu0
        %1937 = vmatprep.subr.bf16.mxu0 0
        %1938 = vmatpush1.bf16.msra.mxu0 0
        %1939 = vmatprep.subr.bf16.mxu0 0
        %1940 = vmatpush1.bf16.msra.mxu0 0
        %1941 = vmatprep.subr.bf16.mxu0 0
        %1942 = vmatpush1.bf16.msra.mxu0 0
        %1943 = vmatprep.subr.bf16.mxu0 0
        %1944 = vmatpush1.bf16.msra.mxu0 0
        %1945 = vmatprep.subr.bf16.mxu0 0
        %1946 = vmatpush1.bf16.msra.mxu0 0
        %1947 = vmatprep.subr.bf16.mxu0 0
        %1948 = vmatpush1.bf16.msra.mxu0 0
        %1949 = vmatprep.subr.bf16.mxu0 %v1469
        %1950 = vmatpush1.bf16.msra.mxu0 %v1468
        %1951 = vmatprep.subr.bf16.mxu0 %v1405
        %1952 = vmatpush1.bf16.msra.mxu0 %v1404
        %1953 = vmatprep.subr.bf16.mxu0 0
        %1954 = vmatpush2.bf16.msra.mxu0 0
        %1955 = vmatprep.subr.bf16.mxu0 0
        %1956 = vmatpush2.bf16.msra.mxu0 0
        %1957 = vmatprep.subr.bf16.mxu0 0
        %1958 = vmatpush2.bf16.msra.mxu0 0
        %1959 = vmatprep.subr.bf16.mxu0 0
        %1960 = vmatpush2.bf16.msra.mxu0 0
        %1961 = vmatprep.subr.bf16.mxu0 0
        %1962 = vmatpush2.bf16.msra.mxu0 0
        %1963 = vmatprep.subr.bf16.mxu0 0
        %1964 = vmatpush2.bf16.msra.mxu0 0
        %1965 = vmatprep.subr.bf16.mxu0 0
        %1966 = vmatpush2.bf16.msra.mxu0 0
        %1967 = vmatprep.subr.bf16.mxu0 0
        %1968 = vmatpush2.bf16.msra.mxu0 0
        %1969 = vmatprep.mubr.bf16.mxu0 0
        %1970 = vmatmul.mubr.bf16.gmra.mxu0 %v1648
        %v1971 = vpop.f32.mrf.mxu0
        %v1972 = vadd.f32 %v1004, %v1971
        %v1973 = vpop.f32.mrf.mxu0
        %v1974 = vadd.f32 %v1004, %v1973
        %v1975 = vpop.f32.mrf.mxu0
        %v1976 = vpop.f32.mrf.mxu0
        %1977 = vdwg.mxu0
        %1978 = vmatprep.subr.bf16.mxu0 0
        %1979 = vmatpush1.bf16.msra.mxu0 0
        %1980 = vmatprep.subr.bf16.mxu0 0
        %1981 = vmatpush1.bf16.msra.mxu0 0
        %1982 = vmatprep.subr.bf16.mxu0 0
        %1983 = vmatpush1.bf16.msra.mxu0 0
        %1984 = vmatprep.subr.bf16.mxu0 0
        %1985 = vmatpush1.bf16.msra.mxu0 0
        %1986 = vmatprep.subr.bf16.mxu0 0
        %1987 = vmatpush1.bf16.msra.mxu0 0
        %1988 = vmatprep.subr.bf16.mxu0 0
        %1989 = vmatpush1.bf16.msra.mxu0 0
        %1990 = vmatprep.subr.bf16.mxu0 %v1471
        %1991 = vmatpush1.bf16.msra.mxu0 %v1470
        %1992 = vmatprep.subr.bf16.mxu0 %v1407
        %1993 = vmatpush1.bf16.msra.mxu0 %v1406
        %1994 = vmatprep.subr.bf16.mxu0 0
        %1995 = vmatpush2.bf16.msra.mxu0 0
        %1996 = vmatprep.subr.bf16.mxu0 0
        %1997 = vmatpush2.bf16.msra.mxu0 0
        %1998 = vmatprep.subr.bf16.mxu0 0
        %1999 = vmatpush2.bf16.msra.mxu0 0
        %2000 = vmatprep.subr.bf16.mxu0 0
        %2001 = vmatpush2.bf16.msra.mxu0 0
        %2002 = vmatprep.subr.bf16.mxu0 0
        %2003 = vmatpush2.bf16.msra.mxu0 0
        %2004 = vmatprep.subr.bf16.mxu0 0
        %2005 = vmatpush2.bf16.msra.mxu0 0
        %2006 = vmatprep.subr.bf16.mxu0 0
        %2007 = vmatpush2.bf16.msra.mxu0 0
        %2008 = vmatprep.subr.bf16.mxu0 0
        %2009 = vmatpush2.bf16.msra.mxu0 0
        %2010 = vmatprep.mubr.bf16.mxu0 0
        %2011 = vmatmul.mubr.bf16.gmra.mxu0 %v1648
        %v2012 = vpop.f32.mrf.mxu0
        %v2013 = vadd.f32 %v1004, %v2012
        %v2014 = vpop.f32.mrf.mxu0
        %v2015 = vadd.f32 %v1004, %v2014
        %v2016 = vpop.f32.mrf.mxu0
        %v2017 = vpop.f32.mrf.mxu0
        %2018 = vdwg.mxu0
        %2019 = vmatprep.subr.bf16.mxu0 0
        %2020 = vmatpush1.bf16.msra.mxu0 0
        %2021 = vmatprep.subr.bf16.mxu0 0
        %2022 = vmatpush1.bf16.msra.mxu0 0
        %2023 = vmatprep.subr.bf16.mxu0 0
        %2024 = vmatpush1.bf16.msra.mxu0 0
        %2025 = vmatprep.subr.bf16.mxu0 0
        %2026 = vmatpush1.bf16.msra.mxu0 0
        %2027 = vmatprep.subr.bf16.mxu0 0
        %2028 = vmatpush1.bf16.msra.mxu0 0
        %2029 = vmatprep.subr.bf16.mxu0 0
        %2030 = vmatpush1.bf16.msra.mxu0 0
        %2031 = vmatprep.subr.bf16.mxu0 %v1473
        %2032 = vmatpush1.bf16.msra.mxu0 %v1472
        %2033 = vmatprep.subr.bf16.mxu0 %v1409
        %2034 = vmatpush1.bf16.msra.mxu0 %v1408
        %2035 = vmatprep.subr.bf16.mxu0 0
        %2036 = vmatpush2.bf16.msra.mxu0 0
        %2037 = vmatprep.subr.bf16.mxu0 0
        %2038 = vmatpush2.bf16.msra.mxu0 0
        %2039 = vmatprep.subr.bf16.mxu0 0
        %2040 = vmatpush2.bf16.msra.mxu0 0
        %2041 = vmatprep.subr.bf16.mxu0 0
        %2042 = vmatpush2.bf16.msra.mxu0 0
        %2043 = vmatprep.subr.bf16.mxu0 0
        %2044 = vmatpush2.bf16.msra.mxu0 0
        %2045 = vmatprep.subr.bf16.mxu0 0
        %2046 = vmatpush2.bf16.msra.mxu0 0
        %2047 = vmatprep.subr.bf16.mxu0 0
        %2048 = vmatpush2.bf16.msra.mxu0 0
        %2049 = vmatprep.subr.bf16.mxu0 0
        %2050 = vmatpush2.bf16.msra.mxu0 0
        %2051 = vmatprep.mubr.bf16.mxu0 0
        %2052 = vmatmul.mubr.bf16.gmra.mxu0 %v1648
        %v2053 = vpop.f32.mrf.mxu0
        %v2054 = vadd.f32 %v1004, %v2053
        %v2055 = vpop.f32.mrf.mxu0
        %v2056 = vadd.f32 %v1004, %v2055
        %v2057 = vpop.f32.mrf.mxu0
        %v2058 = vpop.f32.mrf.mxu0
        %2059 = vdwg.mxu0
        %2060 = vmatprep.subr.bf16.mxu0 0
        %2061 = vmatpush1.bf16.msra.mxu0 0
        %2062 = vmatprep.subr.bf16.mxu0 0
        %2063 = vmatpush1.bf16.msra.mxu0 0
        %2064 = vmatprep.subr.bf16.mxu0 0
        %2065 = vmatpush1.bf16.msra.mxu0 0
        %2066 = vmatprep.subr.bf16.mxu0 0
        %2067 = vmatpush1.bf16.msra.mxu0 0
        %2068 = vmatprep.subr.bf16.mxu0 0
        %2069 = vmatpush1.bf16.msra.mxu0 0
        %2070 = vmatprep.subr.bf16.mxu0 0
        %2071 = vmatpush1.bf16.msra.mxu0 0
        %2072 = vmatprep.subr.bf16.mxu0 %v1475
        %2073 = vmatpush1.bf16.msra.mxu0 %v1474
        %2074 = vmatprep.subr.bf16.mxu0 %v1411
        %2075 = vmatpush1.bf16.msra.mxu0 %v1410
        %2076 = vmatprep.subr.bf16.mxu0 0
        %2077 = vmatpush2.bf16.msra.mxu0 0
        %2078 = vmatprep.subr.bf16.mxu0 0
        %2079 = vmatpush2.bf16.msra.mxu0 0
        %2080 = vmatprep.subr.bf16.mxu0 0
        %2081 = vmatpush2.bf16.msra.mxu0 0
        %2082 = vmatprep.subr.bf16.mxu0 0
        %2083 = vmatpush2.bf16.msra.mxu0 0
        %2084 = vmatprep.subr.bf16.mxu0 0
        %2085 = vmatpush2.bf16.msra.mxu0 0
        %2086 = vmatprep.subr.bf16.mxu0 0
        %2087 = vmatpush2.bf16.msra.mxu0 0
        %2088 = vmatprep.subr.bf16.mxu0 0
        %2089 = vmatpush2.bf16.msra.mxu0 0
        %2090 = vmatprep.subr.bf16.mxu0 0
        %2091 = vmatpush2.bf16.msra.mxu0 0
        %2092 = vmatprep.mubr.bf16.mxu0 0
        %2093 = vmatmul.mubr.bf16.gmra.mxu0 %v1648
        %v2094 = vpop.f32.mrf.mxu0
        %v2095 = vadd.f32 %v1004, %v2094
        %v2096 = vpop.f32.mrf.mxu0
        %v2097 = vadd.f32 %v1004, %v2096
        %v2098 = vpop.f32.mrf.mxu0
        %v2099 = vpop.f32.mrf.mxu0
        %2100 = vdwg.mxu0
        %2101 = vmatprep.subr.bf16.mxu0 0
        %2102 = vmatpush1.bf16.msra.mxu0 0
        %2103 = vmatprep.subr.bf16.mxu0 0
        %2104 = vmatpush1.bf16.msra.mxu0 0
        %2105 = vmatprep.subr.bf16.mxu0 0
        %2106 = vmatpush1.bf16.msra.mxu0 0
        %2107 = vmatprep.subr.bf16.mxu0 0
        %2108 = vmatpush1.bf16.msra.mxu0 0
        %2109 = vmatprep.subr.bf16.mxu0 0
        %2110 = vmatpush1.bf16.msra.mxu0 0
        %2111 = vmatprep.subr.bf16.mxu0 0
        %2112 = vmatpush1.bf16.msra.mxu0 0
        %2113 = vmatprep.subr.bf16.mxu0 %v1477
        %2114 = vmatpush1.bf16.msra.mxu0 %v1476
        %2115 = vmatprep.subr.bf16.mxu0 %v1413
        %2116 = vmatpush1.bf16.msra.mxu0 %v1412
        %2117 = vmatprep.subr.bf16.mxu0 0
        %2118 = vmatpush2.bf16.msra.mxu0 0
        %2119 = vmatprep.subr.bf16.mxu0 0
        %2120 = vmatpush2.bf16.msra.mxu0 0
        %2121 = vmatprep.subr.bf16.mxu0 0
        %2122 = vmatpush2.bf16.msra.mxu0 0
        %2123 = vmatprep.subr.bf16.mxu0 0
        %2124 = vmatpush2.bf16.msra.mxu0 0
        %2125 = vmatprep.subr.bf16.mxu0 0
        %2126 = vmatpush2.bf16.msra.mxu0 0
        %2127 = vmatprep.subr.bf16.mxu0 0
        %2128 = vmatpush2.bf16.msra.mxu0 0
        %2129 = vmatprep.subr.bf16.mxu0 0
        %2130 = vmatpush2.bf16.msra.mxu0 0
        %2131 = vmatprep.subr.bf16.mxu0 0
        %2132 = vmatpush2.bf16.msra.mxu0 0
        %2133 = vmatprep.mubr.bf16.mxu0 0
        %2134 = vmatmul.mubr.bf16.gmra.mxu0 %v1648
        %v2135 = vpop.f32.mrf.mxu0
        %v2136 = vadd.f32 %v1004, %v2135
        %v2137 = vpop.f32.mrf.mxu0
        %v2138 = vadd.f32 %v1004, %v2137
        %v2139 = vpop.f32.mrf.mxu0
        %v2140 = vpop.f32.mrf.mxu0
        %2141 = vdwg.mxu0
        %2142 = vmatprep.subr.bf16.mxu0 0
        %2143 = vmatpush1.bf16.msra.mxu0 0
        %2144 = vmatprep.subr.bf16.mxu0 0
        %2145 = vmatpush1.bf16.msra.mxu0 0
        %2146 = vmatprep.subr.bf16.mxu0 0
        %2147 = vmatpush1.bf16.msra.mxu0 0
        %2148 = vmatprep.subr.bf16.mxu0 0
        %2149 = vmatpush1.bf16.msra.mxu0 0
        %2150 = vmatprep.subr.bf16.mxu0 0
        %2151 = vmatpush1.bf16.msra.mxu0 0
        %2152 = vmatprep.subr.bf16.mxu0 0
        %2153 = vmatpush1.bf16.msra.mxu0 0
        %2154 = vmatprep.subr.bf16.mxu0 %v1479
        %2155 = vmatpush1.bf16.msra.mxu0 %v1478
        %2156 = vmatprep.subr.bf16.mxu0 %v1415
        %2157 = vmatpush1.bf16.msra.mxu0 %v1414
        %2158 = vmatprep.subr.bf16.mxu0 0
        %2159 = vmatpush2.bf16.msra.mxu0 0
        %2160 = vmatprep.subr.bf16.mxu0 0
        %2161 = vmatpush2.bf16.msra.mxu0 0
        %2162 = vmatprep.subr.bf16.mxu0 0
        %2163 = vmatpush2.bf16.msra.mxu0 0
        %2164 = vmatprep.subr.bf16.mxu0 0
        %2165 = vmatpush2.bf16.msra.mxu0 0
        %2166 = vmatprep.subr.bf16.mxu0 0
        %2167 = vmatpush2.bf16.msra.mxu0 0
        %2168 = vmatprep.subr.bf16.mxu0 0
        %2169 = vmatpush2.bf16.msra.mxu0 0
        %2170 = vmatprep.subr.bf16.mxu0 0
        %2171 = vmatpush2.bf16.msra.mxu0 0
        %2172 = vmatprep.subr.bf16.mxu0 0
        %2173 = vmatpush2.bf16.msra.mxu0 0
        %2174 = vmatprep.mubr.bf16.mxu0 0
        %2175 = vmatmul.mubr.bf16.gmra.mxu0 %v1648
        %v2176 = vpop.f32.mrf.mxu0
        %v2177 = vadd.f32 %v1004, %v2176
        %v2178 = vpop.f32.mrf.mxu0
        %v2179 = vadd.f32 %v1004, %v2178
        %v2180 = vpop.f32.mrf.mxu0
        %v2181 = vpop.f32.mrf.mxu0
        %2182 = vdwg.mxu0
        %2183 = vmatprep.subr.bf16.mxu0 0
        %2184 = vmatpush1.bf16.msra.mxu0 0
        %2185 = vmatprep.subr.bf16.mxu0 0
        %2186 = vmatpush1.bf16.msra.mxu0 0
        %2187 = vmatprep.subr.bf16.mxu0 0
        %2188 = vmatpush1.bf16.msra.mxu0 0
        %2189 = vmatprep.subr.bf16.mxu0 0
        %2190 = vmatpush1.bf16.msra.mxu0 0
        %2191 = vmatprep.subr.bf16.mxu0 0
        %2192 = vmatpush1.bf16.msra.mxu0 0
        %2193 = vmatprep.subr.bf16.mxu0 0
        %2194 = vmatpush1.bf16.msra.mxu0 0
        %2195 = vmatprep.subr.bf16.mxu0 %v1481
        %2196 = vmatpush1.bf16.msra.mxu0 %v1480
        %2197 = vmatprep.subr.bf16.mxu0 %v1417
        %2198 = vmatpush1.bf16.msra.mxu0 %v1416
        %2199 = vmatprep.subr.bf16.mxu0 0
        %2200 = vmatpush2.bf16.msra.mxu0 0
        %2201 = vmatprep.subr.bf16.mxu0 0
        %2202 = vmatpush2.bf16.msra.mxu0 0
        %2203 = vmatprep.subr.bf16.mxu0 0
        %2204 = vmatpush2.bf16.msra.mxu0 0
        %2205 = vmatprep.subr.bf16.mxu0 0
        %2206 = vmatpush2.bf16.msra.mxu0 0
        %2207 = vmatprep.subr.bf16.mxu0 0
        %2208 = vmatpush2.bf16.msra.mxu0 0
        %2209 = vmatprep.subr.bf16.mxu0 0
        %2210 = vmatpush2.bf16.msra.mxu0 0
        %2211 = vmatprep.subr.bf16.mxu0 0
        %2212 = vmatpush2.bf16.msra.mxu0 0
        %2213 = vmatprep.subr.bf16.mxu0 0
        %2214 = vmatpush2.bf16.msra.mxu0 0
        %2215 = vmatprep.mubr.bf16.mxu0 0
        %2216 = vmatmul.mubr.bf16.gmra.mxu0 %v1648
        %v2217 = vpop.f32.mrf.mxu0
        %v2218 = vadd.f32 %v1004, %v2217
        %v2219 = vpop.f32.mrf.mxu0
        %v2220 = vadd.f32 %v1004, %v2219
        %v2221 = vpop.f32.mrf.mxu0
        %v2222 = vpop.f32.mrf.mxu0
        %2223 = vdwg.mxu0
        %2224 = vmatprep.subr.bf16.mxu0 0
        %2225 = vmatpush1.bf16.msra.mxu0 0
        %2226 = vmatprep.subr.bf16.mxu0 0
        %2227 = vmatpush1.bf16.msra.mxu0 0
        %2228 = vmatprep.subr.bf16.mxu0 0
        %2229 = vmatpush1.bf16.msra.mxu0 0
        %2230 = vmatprep.subr.bf16.mxu0 0
        %2231 = vmatpush1.bf16.msra.mxu0 0
        %2232 = vmatprep.subr.bf16.mxu0 0
        %2233 = vmatpush1.bf16.msra.mxu0 0
        %2234 = vmatprep.subr.bf16.mxu0 0
        %2235 = vmatpush1.bf16.msra.mxu0 0
        %2236 = vmatprep.subr.bf16.mxu0 %v1483
        %2237 = vmatpush1.bf16.msra.mxu0 %v1482
        %2238 = vmatprep.subr.bf16.mxu0 %v1419
        %2239 = vmatpush1.bf16.msra.mxu0 %v1418
        %2240 = vmatprep.subr.bf16.mxu0 0
        %2241 = vmatpush2.bf16.msra.mxu0 0
        %2242 = vmatprep.subr.bf16.mxu0 0
        %2243 = vmatpush2.bf16.msra.mxu0 0
        %2244 = vmatprep.subr.bf16.mxu0 0
        %2245 = vmatpush2.bf16.msra.mxu0 0
        %2246 = vmatprep.subr.bf16.mxu0 0
        %2247 = vmatpush2.bf16.msra.mxu0 0
        %2248 = vmatprep.subr.bf16.mxu0 0
        %2249 = vmatpush2.bf16.msra.mxu0 0
        %2250 = vmatprep.subr.bf16.mxu0 0
        %2251 = vmatpush2.bf16.msra.mxu0 0
        %2252 = vmatprep.subr.bf16.mxu0 0
        %2253 = vmatpush2.bf16.msra.mxu0 0
        %2254 = vmatprep.subr.bf16.mxu0 0
        %2255 = vmatpush2.bf16.msra.mxu0 0
        %2256 = vmatprep.mubr.bf16.mxu0 0
        %2257 = vmatmul.mubr.bf16.gmra.mxu0 %v1648
        %v2258 = vpop.f32.mrf.mxu0
        %v2259 = vadd.f32 %v1004, %v2258
        %v2260 = vpop.f32.mrf.mxu0
        %v2261 = vadd.f32 %v1004, %v2260
        %v2262 = vpop.f32.mrf.mxu0
        %v2263 = vpop.f32.mrf.mxu0
        %2264 = vdwg.mxu0
        %2265 = vmatprep.subr.bf16.mxu0 0
        %2266 = vmatpush1.bf16.msra.mxu0 0
        %2267 = vmatprep.subr.bf16.mxu0 0
        %2268 = vmatpush1.bf16.msra.mxu0 0
        %2269 = vmatprep.subr.bf16.mxu0 0
        %2270 = vmatpush1.bf16.msra.mxu0 0
        %2271 = vmatprep.subr.bf16.mxu0 0
        %2272 = vmatpush1.bf16.msra.mxu0 0
        %2273 = vmatprep.subr.bf16.mxu0 0
        %2274 = vmatpush1.bf16.msra.mxu0 0
        %2275 = vmatprep.subr.bf16.mxu0 0
        %2276 = vmatpush1.bf16.msra.mxu0 0
        %2277 = vmatprep.subr.bf16.mxu0 %v1485
        %2278 = vmatpush1.bf16.msra.mxu0 %v1484
        %2279 = vmatprep.subr.bf16.mxu0 %v1421
        %2280 = vmatpush1.bf16.msra.mxu0 %v1420
        %2281 = vmatprep.subr.bf16.mxu0 0
        %2282 = vmatpush2.bf16.msra.mxu0 0
        %2283 = vmatprep.subr.bf16.mxu0 0
        %2284 = vmatpush2.bf16.msra.mxu0 0
        %2285 = vmatprep.subr.bf16.mxu0 0
        %2286 = vmatpush2.bf16.msra.mxu0 0
        %2287 = vmatprep.subr.bf16.mxu0 0
        %2288 = vmatpush2.bf16.msra.mxu0 0
        %2289 = vmatprep.subr.bf16.mxu0 0
        %2290 = vmatpush2.bf16.msra.mxu0 0
        %2291 = vmatprep.subr.bf16.mxu0 0
        %2292 = vmatpush2.bf16.msra.mxu0 0
        %2293 = vmatprep.subr.bf16.mxu0 0
        %2294 = vmatpush2.bf16.msra.mxu0 0
        %2295 = vmatprep.subr.bf16.mxu0 0
        %2296 = vmatpush2.bf16.msra.mxu0 0
        %2297 = vmatprep.mubr.bf16.mxu0 0
        %2298 = vmatmul.mubr.bf16.gmra.mxu0 %v1648
        %v2299 = vpop.f32.mrf.mxu0
        %v2300 = vadd.f32 %v1004, %v2299
        %v2301 = vpop.f32.mrf.mxu0
        %v2302 = vadd.f32 %v1004, %v2301
        %v2303 = vpop.f32.mrf.mxu0
        %v2304 = vpop.f32.mrf.mxu0
        %2305 = vdwg.mxu0
        %2306 = vmatprep.subr.bf16.mxu0 0
        %2307 = vmatpush1.bf16.msra.mxu0 0
        %2308 = vmatprep.subr.bf16.mxu0 0
        %2309 = vmatpush1.bf16.msra.mxu0 0
        %2310 = vmatprep.subr.bf16.mxu0 0
        %2311 = vmatpush1.bf16.msra.mxu0 0
        %2312 = vmatprep.subr.bf16.mxu0 0
        %2313 = vmatpush1.bf16.msra.mxu0 0
        %2314 = vmatprep.subr.bf16.mxu0 0
        %2315 = vmatpush1.bf16.msra.mxu0 0
        %2316 = vmatprep.subr.bf16.mxu0 0
        %2317 = vmatpush1.bf16.msra.mxu0 0
        %2318 = vmatprep.subr.bf16.mxu0 %v1487
        %2319 = vmatpush1.bf16.msra.mxu0 %v1486
        %2320 = vmatprep.subr.bf16.mxu0 %v1423
        %2321 = vmatpush1.bf16.msra.mxu0 %v1422
        %2322 = vmatprep.subr.bf16.mxu0 0
        %2323 = vmatpush2.bf16.msra.mxu0 0
        %2324 = vmatprep.subr.bf16.mxu0 0
        %2325 = vmatpush2.bf16.msra.mxu0 0
        %2326 = vmatprep.subr.bf16.mxu0 0
        %2327 = vmatpush2.bf16.msra.mxu0 0
        %2328 = vmatprep.subr.bf16.mxu0 0
        %2329 = vmatpush2.bf16.msra.mxu0 0
        %2330 = vmatprep.subr.bf16.mxu0 0
        %2331 = vmatpush2.bf16.msra.mxu0 0
        %2332 = vmatprep.subr.bf16.mxu0 0
        %2333 = vmatpush2.bf16.msra.mxu0 0
        %2334 = vmatprep.subr.bf16.mxu0 0
        %2335 = vmatpush2.bf16.msra.mxu0 0
        %2336 = vmatprep.subr.bf16.mxu0 0
        %2337 = vmatpush2.bf16.msra.mxu0 0
        %2338 = vmatprep.mubr.bf16.mxu0 0
        %2339 = vmatmul.mubr.bf16.gmra.mxu0 %v1648
        %v2340 = vpop.f32.mrf.mxu0
        %v2341 = vadd.f32 %v1004, %v2340
        %v2342 = vpop.f32.mrf.mxu0
        %v2343 = vadd.f32 %v1004, %v2342
        %v2344 = vpop.f32.mrf.mxu0
        %v2345 = vpop.f32.mrf.mxu0
        %2346 = vdwg.mxu0
        %2347 = vmatprep.subr.bf16.mxu0 0
        %2348 = vmatpush1.bf16.msra.mxu0 0
        %2349 = vmatprep.subr.bf16.mxu0 0
        %2350 = vmatpush1.bf16.msra.mxu0 0
        %2351 = vmatprep.subr.bf16.mxu0 0
        %2352 = vmatpush1.bf16.msra.mxu0 0
        %2353 = vmatprep.subr.bf16.mxu0 0
        %2354 = vmatpush1.bf16.msra.mxu0 0
        %2355 = vmatprep.subr.bf16.mxu0 0
        %2356 = vmatpush1.bf16.msra.mxu0 0
        %2357 = vmatprep.subr.bf16.mxu0 0
        %2358 = vmatpush1.bf16.msra.mxu0 0
        %2359 = vmatprep.subr.bf16.mxu0 %v1489
        %2360 = vmatpush1.bf16.msra.mxu0 %v1488
        %2361 = vmatprep.subr.bf16.mxu0 %v1425
        %2362 = vmatpush1.bf16.msra.mxu0 %v1424
        %2363 = vmatprep.subr.bf16.mxu0 0
        %2364 = vmatpush2.bf16.msra.mxu0 0
        %2365 = vmatprep.subr.bf16.mxu0 0
        %2366 = vmatpush2.bf16.msra.mxu0 0
        %2367 = vmatprep.subr.bf16.mxu0 0
        %2368 = vmatpush2.bf16.msra.mxu0 0
        %2369 = vmatprep.subr.bf16.mxu0 0
        %2370 = vmatpush2.bf16.msra.mxu0 0
        %2371 = vmatprep.subr.bf16.mxu0 0
        %2372 = vmatpush2.bf16.msra.mxu0 0
        %2373 = vmatprep.subr.bf16.mxu0 0
        %2374 = vmatpush2.bf16.msra.mxu0 0
        %2375 = vmatprep.subr.bf16.mxu0 0
        %2376 = vmatpush2.bf16.msra.mxu0 0
        %2377 = vmatprep.subr.bf16.mxu0 0
        %2378 = vmatpush2.bf16.msra.mxu0 0
        %2379 = vmatprep.mubr.bf16.mxu0 0
        %2380 = vmatmul.mubr.bf16.gmra.mxu0 %v1648
        %v2381 = vpop.f32.mrf.mxu0
        %v2382 = vadd.f32 %v1004, %v2381
        %v2383 = vpop.f32.mrf.mxu0
        %v2384 = vadd.f32 %v1004, %v2383
        %v2385 = vpop.f32.mrf.mxu0
        %v2386 = vpop.f32.mrf.mxu0
        %2387 = vdwg.mxu0
        %2388 = vmatprep.subr.bf16.mxu0 0
        %2389 = vmatpush1.bf16.msra.mxu0 0
        %2390 = vmatprep.subr.bf16.mxu0 0
        %2391 = vmatpush1.bf16.msra.mxu0 0
        %2392 = vmatprep.subr.bf16.mxu0 0
        %2393 = vmatpush1.bf16.msra.mxu0 0
        %2394 = vmatprep.subr.bf16.mxu0 0
        %2395 = vmatpush1.bf16.msra.mxu0 0
        %2396 = vmatprep.subr.bf16.mxu0 0
        %2397 = vmatpush1.bf16.msra.mxu0 0
        %2398 = vmatprep.subr.bf16.mxu0 0
        %2399 = vmatpush1.bf16.msra.mxu0 0
        %2400 = vmatprep.subr.bf16.mxu0 %v1491
        %2401 = vmatpush1.bf16.msra.mxu0 %v1490
        %2402 = vmatprep.subr.bf16.mxu0 %v1427
        %2403 = vmatpush1.bf16.msra.mxu0 %v1426
        %2404 = vmatprep.subr.bf16.mxu0 0
        %2405 = vmatpush2.bf16.msra.mxu0 0
        %2406 = vmatprep.subr.bf16.mxu0 0
        %2407 = vmatpush2.bf16.msra.mxu0 0
        %2408 = vmatprep.subr.bf16.mxu0 0
        %2409 = vmatpush2.bf16.msra.mxu0 0
        %2410 = vmatprep.subr.bf16.mxu0 0
        %2411 = vmatpush2.bf16.msra.mxu0 0
        %2412 = vmatprep.subr.bf16.mxu0 0
        %2413 = vmatpush2.bf16.msra.mxu0 0
        %2414 = vmatprep.subr.bf16.mxu0 0
        %2415 = vmatpush2.bf16.msra.mxu0 0
        %2416 = vmatprep.subr.bf16.mxu0 0
        %2417 = vmatpush2.bf16.msra.mxu0 0
        %2418 = vmatprep.subr.bf16.mxu0 0
        %2419 = vmatpush2.bf16.msra.mxu0 0
        %2420 = vmatprep.mubr.bf16.mxu0 0
        %2421 = vmatmul.mubr.bf16.gmra.mxu0 %v1648
        %v2422 = vpop.f32.mrf.mxu0
        %v2423 = vadd.f32 %v1004, %v2422
        %v2424 = vpop.f32.mrf.mxu0
        %v2425 = vadd.f32 %v1004, %v2424
        %v2426 = vpop.f32.mrf.mxu0
        %v2427 = vpop.f32.mrf.mxu0
        %2428 = vdwg.mxu0
        %2429 = vmatprep.subr.bf16.mxu0 0
        %2430 = vmatpush1.bf16.msra.mxu0 0
        %2431 = vmatprep.subr.bf16.mxu0 0
        %2432 = vmatpush1.bf16.msra.mxu0 0
        %2433 = vmatprep.subr.bf16.mxu0 0
        %2434 = vmatpush1.bf16.msra.mxu0 0
        %2435 = vmatprep.subr.bf16.mxu0 0
        %2436 = vmatpush1.bf16.msra.mxu0 0
        %2437 = vmatprep.subr.bf16.mxu0 0
        %2438 = vmatpush1.bf16.msra.mxu0 0
        %2439 = vmatprep.subr.bf16.mxu0 0
        %2440 = vmatpush1.bf16.msra.mxu0 0
        %2441 = vmatprep.subr.bf16.mxu0 %v1493
        %2442 = vmatpush1.bf16.msra.mxu0 %v1492
        %2443 = vmatprep.subr.bf16.mxu0 %v1429
        %2444 = vmatpush1.bf16.msra.mxu0 %v1428
        %2445 = vmatprep.subr.bf16.mxu0 0
        %2446 = vmatpush2.bf16.msra.mxu0 0
        %2447 = vmatprep.subr.bf16.mxu0 0
        %2448 = vmatpush2.bf16.msra.mxu0 0
        %2449 = vmatprep.subr.bf16.mxu0 0
        %2450 = vmatpush2.bf16.msra.mxu0 0
        %2451 = vmatprep.subr.bf16.mxu0 0
        %2452 = vmatpush2.bf16.msra.mxu0 0
        %2453 = vmatprep.subr.bf16.mxu0 0
        %2454 = vmatpush2.bf16.msra.mxu0 0
        %2455 = vmatprep.subr.bf16.mxu0 0
        %2456 = vmatpush2.bf16.msra.mxu0 0
        %2457 = vmatprep.subr.bf16.mxu0 0
        %2458 = vmatpush2.bf16.msra.mxu0 0
        %2459 = vmatprep.subr.bf16.mxu0 0
        %2460 = vmatpush2.bf16.msra.mxu0 0
        %2461 = vmatprep.mubr.bf16.mxu0 0
        %2462 = vmatmul.mubr.bf16.gmra.mxu0 %v1648
        %v2463 = vpop.f32.mrf.mxu0
        %v2464 = vadd.f32 %v1004, %v2463
        %v2465 = vpop.f32.mrf.mxu0
        %v2466 = vadd.f32 %v1004, %v2465
        %v2467 = vpop.f32.mrf.mxu0
        %v2468 = vpop.f32.mrf.mxu0
        %2469 = vdwg.mxu0
        %2470 = vmatprep.subr.bf16.mxu0 0
        %2471 = vmatpush1.bf16.msra.mxu0 0
        %2472 = vmatprep.subr.bf16.mxu0 0
        %2473 = vmatpush1.bf16.msra.mxu0 0
        %2474 = vmatprep.subr.bf16.mxu0 0
        %2475 = vmatpush1.bf16.msra.mxu0 0
        %2476 = vmatprep.subr.bf16.mxu0 0
        %2477 = vmatpush1.bf16.msra.mxu0 0
        %2478 = vmatprep.subr.bf16.mxu0 0
        %2479 = vmatpush1.bf16.msra.mxu0 0
        %2480 = vmatprep.subr.bf16.mxu0 0
        %2481 = vmatpush1.bf16.msra.mxu0 0
        %2482 = vmatprep.subr.bf16.mxu0 %v1495
        %2483 = vmatpush1.bf16.msra.mxu0 %v1494
        %2484 = vmatprep.subr.bf16.mxu0 %v1431
        %2485 = vmatpush1.bf16.msra.mxu0 %v1430
        %2486 = vmatprep.subr.bf16.mxu0 0
        %2487 = vmatpush2.bf16.msra.mxu0 0
        %2488 = vmatprep.subr.bf16.mxu0 0
        %2489 = vmatpush2.bf16.msra.mxu0 0
        %2490 = vmatprep.subr.bf16.mxu0 0
        %2491 = vmatpush2.bf16.msra.mxu0 0
        %2492 = vmatprep.subr.bf16.mxu0 0
        %2493 = vmatpush2.bf16.msra.mxu0 0
        %2494 = vmatprep.subr.bf16.mxu0 0
        %2495 = vmatpush2.bf16.msra.mxu0 0
        %2496 = vmatprep.subr.bf16.mxu0 0
        %2497 = vmatpush2.bf16.msra.mxu0 0
        %2498 = vmatprep.subr.bf16.mxu0 0
        %2499 = vmatpush2.bf16.msra.mxu0 0
        %2500 = vmatprep.subr.bf16.mxu0 0
        %2501 = vmatpush2.bf16.msra.mxu0 0
        %2502 = vmatprep.mubr.bf16.mxu0 0
        %2503 = vmatmul.mubr.bf16.gmra.mxu0 %v1648
        %v2504 = vpop.f32.mrf.mxu0
        %v2505 = vadd.f32 %v1004, %v2504
        %v2506 = vpop.f32.mrf.mxu0
        %v2507 = vadd.f32 %v1004, %v2506
        %v2508 = vpop.f32.mrf.mxu0
        %v2509 = vpop.f32.mrf.mxu0
        %2510 = vdwg.mxu0
        %2511 = vmatprep.subr.bf16.mxu0 0
        %2512 = vmatpush1.bf16.msra.mxu0 0
        %2513 = vmatprep.subr.bf16.mxu0 0
        %2514 = vmatpush1.bf16.msra.mxu0 0
        %2515 = vmatprep.subr.bf16.mxu0 0
        %2516 = vmatpush1.bf16.msra.mxu0 0
        %2517 = vmatprep.subr.bf16.mxu0 0
        %2518 = vmatpush1.bf16.msra.mxu0 0
        %2519 = vmatprep.subr.bf16.mxu0 0
        %2520 = vmatpush1.bf16.msra.mxu0 0
        %2521 = vmatprep.subr.bf16.mxu0 0
        %2522 = vmatpush1.bf16.msra.mxu0 0
        %2523 = vmatprep.subr.bf16.mxu0 %v1497
        %2524 = vmatpush1.bf16.msra.mxu0 %v1496
        %2525 = vmatprep.subr.bf16.mxu0 %v1433
        %2526 = vmatpush1.bf16.msra.mxu0 %v1432
        %2527 = vmatprep.subr.bf16.mxu0 0
        %2528 = vmatpush2.bf16.msra.mxu0 0
        %2529 = vmatprep.subr.bf16.mxu0 0
        %2530 = vmatpush2.bf16.msra.mxu0 0
        %2531 = vmatprep.subr.bf16.mxu0 0
        %2532 = vmatpush2.bf16.msra.mxu0 0
        %2533 = vmatprep.subr.bf16.mxu0 0
        %2534 = vmatpush2.bf16.msra.mxu0 0
        %2535 = vmatprep.subr.bf16.mxu0 0
        %2536 = vmatpush2.bf16.msra.mxu0 0
        %2537 = vmatprep.subr.bf16.mxu0 0
        %2538 = vmatpush2.bf16.msra.mxu0 0
        %2539 = vmatprep.subr.bf16.mxu0 0
        %2540 = vmatpush2.bf16.msra.mxu0 0
        %2541 = vmatprep.subr.bf16.mxu0 0
        %2542 = vmatpush2.bf16.msra.mxu0 0
        %2543 = vmatprep.mubr.bf16.mxu0 0
        %2544 = vmatmul.mubr.bf16.gmra.mxu0 %v1648
        %v2545 = vpop.f32.mrf.mxu0
        %v2546 = vadd.f32 %v1004, %v2545
        %v2547 = vpop.f32.mrf.mxu0
        %v2548 = vadd.f32 %v1004, %v2547
        %v2549 = vpop.f32.mrf.mxu0
        %v2550 = vpop.f32.mrf.mxu0
        %2551 = vdwg.mxu0
        %2552 = vmatprep.subr.bf16.mxu0 0
        %2553 = vmatpush1.bf16.msra.mxu0 0
        %2554 = vmatprep.subr.bf16.mxu0 0
        %2555 = vmatpush1.bf16.msra.mxu0 0
        %2556 = vmatprep.subr.bf16.mxu0 0
        %2557 = vmatpush1.bf16.msra.mxu0 0
        %2558 = vmatprep.subr.bf16.mxu0 0
        %2559 = vmatpush1.bf16.msra.mxu0 0
        %2560 = vmatprep.subr.bf16.mxu0 0
        %2561 = vmatpush1.bf16.msra.mxu0 0
        %2562 = vmatprep.subr.bf16.mxu0 0
        %2563 = vmatpush1.bf16.msra.mxu0 0
        %2564 = vmatprep.subr.bf16.mxu0 %v1499
        %2565 = vmatpush1.bf16.msra.mxu0 %v1498
        %2566 = vmatprep.subr.bf16.mxu0 %v1435
        %2567 = vmatpush1.bf16.msra.mxu0 %v1434
        %2568 = vmatprep.subr.bf16.mxu0 0
        %2569 = vmatpush2.bf16.msra.mxu0 0
        %2570 = vmatprep.subr.bf16.mxu0 0
        %2571 = vmatpush2.bf16.msra.mxu0 0
        %2572 = vmatprep.subr.bf16.mxu0 0
        %2573 = vmatpush2.bf16.msra.mxu0 0
        %2574 = vmatprep.subr.bf16.mxu0 0
        %2575 = vmatpush2.bf16.msra.mxu0 0
        %2576 = vmatprep.subr.bf16.mxu0 0
        %2577 = vmatpush2.bf16.msra.mxu0 0
        %2578 = vmatprep.subr.bf16.mxu0 0
        %2579 = vmatpush2.bf16.msra.mxu0 0
        %2580 = vmatprep.subr.bf16.mxu0 0
        %2581 = vmatpush2.bf16.msra.mxu0 0
        %2582 = vmatprep.subr.bf16.mxu0 0
        %2583 = vmatpush2.bf16.msra.mxu0 0
        %2584 = vmatprep.mubr.bf16.mxu0 0
        %2585 = vmatmul.mubr.bf16.gmra.mxu0 %v1648
        %v2586 = vpop.f32.mrf.mxu0
        %v2587 = vadd.f32 %v1004, %v2586
        %v2588 = vpop.f32.mrf.mxu0
        %v2589 = vadd.f32 %v1004, %v2588
        %v2590 = vpop.f32.mrf.mxu0
        %v2591 = vpop.f32.mrf.mxu0
        %2592 = vdwg.mxu0
        %2593 = vmatprep.subr.bf16.mxu0 0
        %2594 = vmatpush1.bf16.msra.mxu0 0
        %2595 = vmatprep.subr.bf16.mxu0 0
        %2596 = vmatpush1.bf16.msra.mxu0 0
        %2597 = vmatprep.subr.bf16.mxu0 0
        %2598 = vmatpush1.bf16.msra.mxu0 0
        %2599 = vmatprep.subr.bf16.mxu0 0
        %2600 = vmatpush1.bf16.msra.mxu0 0
        %2601 = vmatprep.subr.bf16.mxu0 0
        %2602 = vmatpush1.bf16.msra.mxu0 0
        %2603 = vmatprep.subr.bf16.mxu0 0
        %2604 = vmatpush1.bf16.msra.mxu0 0
        %2605 = vmatprep.subr.bf16.mxu0 %v1501
        %2606 = vmatpush1.bf16.msra.mxu0 %v1500
        %2607 = vmatprep.subr.bf16.mxu0 %v1437
        %2608 = vmatpush1.bf16.msra.mxu0 %v1436
        %2609 = vmatprep.subr.bf16.mxu0 0
        %2610 = vmatpush2.bf16.msra.mxu0 0
        %2611 = vmatprep.subr.bf16.mxu0 0
        %2612 = vmatpush2.bf16.msra.mxu0 0
        %2613 = vmatprep.subr.bf16.mxu0 0
        %2614 = vmatpush2.bf16.msra.mxu0 0
        %2615 = vmatprep.subr.bf16.mxu0 0
        %2616 = vmatpush2.bf16.msra.mxu0 0
        %2617 = vmatprep.subr.bf16.mxu0 0
        %2618 = vmatpush2.bf16.msra.mxu0 0
        %2619 = vmatprep.subr.bf16.mxu0 0
        %2620 = vmatpush2.bf16.msra.mxu0 0
        %2621 = vmatprep.subr.bf16.mxu0 0
        %2622 = vmatpush2.bf16.msra.mxu0 0
        %2623 = vmatprep.subr.bf16.mxu0 0
        %2624 = vmatpush2.bf16.msra.mxu0 0
        %2625 = vmatprep.mubr.bf16.mxu0 0
        %2626 = vmatmul.mubr.bf16.gmra.mxu0 %v1648
        %v2627 = vpop.f32.mrf.mxu0
        %v2628 = vadd.f32 %v1004, %v2627
        %v2629 = vpop.f32.mrf.mxu0
        %v2630 = vadd.f32 %v1004, %v2629
        %v2631 = vpop.f32.mrf.mxu0
        %v2632 = vpop.f32.mrf.mxu0
        %2633 = vdwg.mxu0
        %2634 = vmatprep.subr.bf16.mxu0 0
        %2635 = vmatpush1.bf16.msra.mxu0 0
        %2636 = vmatprep.subr.bf16.mxu0 0
        %2637 = vmatpush1.bf16.msra.mxu0 0
        %2638 = vmatprep.subr.bf16.mxu0 0
        %2639 = vmatpush1.bf16.msra.mxu0 0
        %2640 = vmatprep.subr.bf16.mxu0 0
        %2641 = vmatpush1.bf16.msra.mxu0 0
        %2642 = vmatprep.subr.bf16.mxu0 0
        %2643 = vmatpush1.bf16.msra.mxu0 0
        %2644 = vmatprep.subr.bf16.mxu0 0
        %2645 = vmatpush1.bf16.msra.mxu0 0
        %2646 = vmatprep.subr.bf16.mxu0 %v1503
        %2647 = vmatpush1.bf16.msra.mxu0 %v1502
        %2648 = vmatprep.subr.bf16.mxu0 %v1439
        %2649 = vmatpush1.bf16.msra.mxu0 %v1438
        %2650 = vmatprep.subr.bf16.mxu0 0
        %2651 = vmatpush2.bf16.msra.mxu0 0
        %2652 = vmatprep.subr.bf16.mxu0 0
        %2653 = vmatpush2.bf16.msra.mxu0 0
        %2654 = vmatprep.subr.bf16.mxu0 0
        %2655 = vmatpush2.bf16.msra.mxu0 0
        %2656 = vmatprep.subr.bf16.mxu0 0
        %2657 = vmatpush2.bf16.msra.mxu0 0
        %2658 = vmatprep.subr.bf16.mxu0 0
        %2659 = vmatpush2.bf16.msra.mxu0 0
        %2660 = vmatprep.subr.bf16.mxu0 0
        %2661 = vmatpush2.bf16.msra.mxu0 0
        %2662 = vmatprep.subr.bf16.mxu0 0
        %2663 = vmatpush2.bf16.msra.mxu0 0
        %2664 = vmatprep.subr.bf16.mxu0 0
        %2665 = vmatpush2.bf16.msra.mxu0 0
        %2666 = vmatprep.mubr.bf16.mxu0 0
        %2667 = vmatmul.mubr.bf16.gmra.mxu0 %v1648
        %v2668 = vpop.f32.mrf.mxu0
        %v2669 = vadd.f32 %v1004, %v2668
        %v2670 = vpop.f32.mrf.mxu0
        %v2671 = vadd.f32 %v1004, %v2670
        %v2672 = vpop.f32.mrf.mxu0
        %v2673 = vpop.f32.mrf.mxu0
        %2674 = vdwg.mxu0
        %2675 = vmatprep.subr.bf16.mxu0 0
        %2676 = vmatpush1.bf16.msra.mxu0 0
        %2677 = vmatprep.subr.bf16.mxu0 0
        %2678 = vmatpush1.bf16.msra.mxu0 0
        %2679 = vmatprep.subr.bf16.mxu0 0
        %2680 = vmatpush1.bf16.msra.mxu0 0
        %2681 = vmatprep.subr.bf16.mxu0 0
        %2682 = vmatpush1.bf16.msra.mxu0 0
        %2683 = vmatprep.subr.bf16.mxu0 0
        %2684 = vmatpush1.bf16.msra.mxu0 0
        %2685 = vmatprep.subr.bf16.mxu0 0
        %2686 = vmatpush1.bf16.msra.mxu0 0
        %2687 = vmatprep.subr.bf16.mxu0 %v1505
        %2688 = vmatpush1.bf16.msra.mxu0 %v1504
        %2689 = vmatprep.subr.bf16.mxu0 %v1441
        %2690 = vmatpush1.bf16.msra.mxu0 %v1440
        %2691 = vmatprep.subr.bf16.mxu0 0
        %2692 = vmatpush2.bf16.msra.mxu0 0
        %2693 = vmatprep.subr.bf16.mxu0 0
        %2694 = vmatpush2.bf16.msra.mxu0 0
        %2695 = vmatprep.subr.bf16.mxu0 0
        %2696 = vmatpush2.bf16.msra.mxu0 0
        %2697 = vmatprep.subr.bf16.mxu0 0
        %2698 = vmatpush2.bf16.msra.mxu0 0
        %2699 = vmatprep.subr.bf16.mxu0 0
        %2700 = vmatpush2.bf16.msra.mxu0 0
        %2701 = vmatprep.subr.bf16.mxu0 0
        %2702 = vmatpush2.bf16.msra.mxu0 0
        %2703 = vmatprep.subr.bf16.mxu0 0
        %2704 = vmatpush2.bf16.msra.mxu0 0
        %2705 = vmatprep.subr.bf16.mxu0 0
        %2706 = vmatpush2.bf16.msra.mxu0 0
        %2707 = vmatprep.mubr.bf16.mxu0 0
        %2708 = vmatmul.mubr.bf16.gmra.mxu0 %v1648
        %v2709 = vpop.f32.mrf.mxu0
        %v2710 = vadd.f32 %v1004, %v2709
        %v2711 = vpop.f32.mrf.mxu0
        %v2712 = vadd.f32 %v1004, %v2711
        %v2713 = vpop.f32.mrf.mxu0
        %v2714 = vpop.f32.mrf.mxu0
        %2715 = vdwg.mxu0
        %2716 = vmatprep.subr.bf16.mxu0 0
        %2717 = vmatpush1.bf16.msra.mxu0 0
        %2718 = vmatprep.subr.bf16.mxu0 0
        %2719 = vmatpush1.bf16.msra.mxu0 0
        %2720 = vmatprep.subr.bf16.mxu0 0
        %2721 = vmatpush1.bf16.msra.mxu0 0
        %2722 = vmatprep.subr.bf16.mxu0 0
        %2723 = vmatpush1.bf16.msra.mxu0 0
        %2724 = vmatprep.subr.bf16.mxu0 0
        %2725 = vmatpush1.bf16.msra.mxu0 0
        %2726 = vmatprep.subr.bf16.mxu0 0
        %2727 = vmatpush1.bf16.msra.mxu0 0
        %2728 = vmatprep.subr.bf16.mxu0 %v1507
        %2729 = vmatpush1.bf16.msra.mxu0 %v1506
        %2730 = vmatprep.subr.bf16.mxu0 %v1443
        %2731 = vmatpush1.bf16.msra.mxu0 %v1442
        %2732 = vmatprep.subr.bf16.mxu0 0
        %2733 = vmatpush2.bf16.msra.mxu0 0
        %2734 = vmatprep.subr.bf16.mxu0 0
        %2735 = vmatpush2.bf16.msra.mxu0 0
        %2736 = vmatprep.subr.bf16.mxu0 0
        %2737 = vmatpush2.bf16.msra.mxu0 0
        %2738 = vmatprep.subr.bf16.mxu0 0
        %2739 = vmatpush2.bf16.msra.mxu0 0
        %2740 = vmatprep.subr.bf16.mxu0 0
        %2741 = vmatpush2.bf16.msra.mxu0 0
        %2742 = vmatprep.subr.bf16.mxu0 0
        %2743 = vmatpush2.bf16.msra.mxu0 0
        %2744 = vmatprep.subr.bf16.mxu0 0
        %2745 = vmatpush2.bf16.msra.mxu0 0
        %2746 = vmatprep.subr.bf16.mxu0 0
        %2747 = vmatpush2.bf16.msra.mxu0 0
        %2748 = vmatprep.mubr.bf16.mxu0 0
        %2749 = vmatmul.mubr.bf16.gmra.mxu0 %v1648
        %v2750 = vpop.f32.mrf.mxu0
        %v2751 = vadd.f32 %v1004, %v2750
        %v2752 = vpop.f32.mrf.mxu0
        %v2753 = vadd.f32 %v1004, %v2752
        %v2754 = vpop.f32.mrf.mxu0
        %v2755 = vpop.f32.mrf.mxu0
        %2756 = vdwg.mxu0
        %2757 = vmatprep.subr.bf16.mxu0 0
        %2758 = vmatpush1.bf16.msra.mxu0 0
        %2759 = vmatprep.subr.bf16.mxu0 0
        %2760 = vmatpush1.bf16.msra.mxu0 0
        %2761 = vmatprep.subr.bf16.mxu0 0
        %2762 = vmatpush1.bf16.msra.mxu0 0
        %2763 = vmatprep.subr.bf16.mxu0 0
        %2764 = vmatpush1.bf16.msra.mxu0 0
        %2765 = vmatprep.subr.bf16.mxu0 0
        %2766 = vmatpush1.bf16.msra.mxu0 0
        %2767 = vmatprep.subr.bf16.mxu0 0
        %2768 = vmatpush1.bf16.msra.mxu0 0
        %2769 = vmatprep.subr.bf16.mxu0 %v1509
        %2770 = vmatpush1.bf16.msra.mxu0 %v1508
        %2771 = vmatprep.subr.bf16.mxu0 %v1445
        %2772 = vmatpush1.bf16.msra.mxu0 %v1444
        %2773 = vmatprep.subr.bf16.mxu0 0
        %2774 = vmatpush2.bf16.msra.mxu0 0
        %2775 = vmatprep.subr.bf16.mxu0 0
        %2776 = vmatpush2.bf16.msra.mxu0 0
        %2777 = vmatprep.subr.bf16.mxu0 0
        %2778 = vmatpush2.bf16.msra.mxu0 0
        %2779 = vmatprep.subr.bf16.mxu0 0
        %2780 = vmatpush2.bf16.msra.mxu0 0
        %2781 = vmatprep.subr.bf16.mxu0 0
        %2782 = vmatpush2.bf16.msra.mxu0 0
        %2783 = vmatprep.subr.bf16.mxu0 0
        %2784 = vmatpush2.bf16.msra.mxu0 0
        %2785 = vmatprep.subr.bf16.mxu0 0
        %2786 = vmatpush2.bf16.msra.mxu0 0
        %2787 = vmatprep.subr.bf16.mxu0 0
        %2788 = vmatpush2.bf16.msra.mxu0 0
        %2789 = vmatprep.mubr.bf16.mxu0 0
        %2790 = vmatmul.mubr.bf16.gmra.mxu0 %v1648
        %v2791 = vpop.f32.mrf.mxu0
        %v2792 = vadd.f32 %v1004, %v2791
        %v2793 = vpop.f32.mrf.mxu0
        %v2794 = vadd.f32 %v1004, %v2793
        %v2795 = vpop.f32.mrf.mxu0
        %v2796 = vpop.f32.mrf.mxu0
        %2797 = vdwg.mxu0
        %2798 = vmatprep.subr.bf16.mxu0 0
        %2799 = vmatpush1.bf16.msra.mxu0 0
        %2800 = vmatprep.subr.bf16.mxu0 0
        %2801 = vmatpush1.bf16.msra.mxu0 0
        %2802 = vmatprep.subr.bf16.mxu0 0
        %2803 = vmatpush1.bf16.msra.mxu0 0
        %2804 = vmatprep.subr.bf16.mxu0 0
        %2805 = vmatpush1.bf16.msra.mxu0 0
        %2806 = vmatprep.subr.bf16.mxu0 0
        %2807 = vmatpush1.bf16.msra.mxu0 0
        %2808 = vmatprep.subr.bf16.mxu0 0
        %2809 = vmatpush1.bf16.msra.mxu0 0
        %2810 = vmatprep.subr.bf16.mxu0 %v1511
        %2811 = vmatpush1.bf16.msra.mxu0 %v1510
        %2812 = vmatprep.subr.bf16.mxu0 %v1447
        %2813 = vmatpush1.bf16.msra.mxu0 %v1446
        %2814 = vmatprep.subr.bf16.mxu0 0
        %2815 = vmatpush2.bf16.msra.mxu0 0
        %2816 = vmatprep.subr.bf16.mxu0 0
        %2817 = vmatpush2.bf16.msra.mxu0 0
        %2818 = vmatprep.subr.bf16.mxu0 0
        %2819 = vmatpush2.bf16.msra.mxu0 0
        %2820 = vmatprep.subr.bf16.mxu0 0
        %2821 = vmatpush2.bf16.msra.mxu0 0
        %2822 = vmatprep.subr.bf16.mxu0 0
        %2823 = vmatpush2.bf16.msra.mxu0 0
        %2824 = vmatprep.subr.bf16.mxu0 0
        %2825 = vmatpush2.bf16.msra.mxu0 0
        %2826 = vmatprep.subr.bf16.mxu0 0
        %2827 = vmatpush2.bf16.msra.mxu0 0
        %2828 = vmatprep.subr.bf16.mxu0 0
        %2829 = vmatpush2.bf16.msra.mxu0 0
        %2830 = vmatprep.mubr.bf16.mxu0 0
        %2831 = vmatmul.mubr.bf16.gmra.mxu0 %v1648
        %v2832 = vpop.f32.mrf.mxu0
        %v2833 = vadd.f32 %v1004, %v2832
        %v2834 = vpop.f32.mrf.mxu0
        %v2835 = vadd.f32 %v1004, %v2834
        %v2836 = vpop.f32.mrf.mxu0
        %v2837 = vpop.f32.mrf.mxu0
        %2838 = vdwg.mxu0
        %2839 = vmatprep.subr.bf16.mxu0 0
        %2840 = vmatpush1.bf16.msra.mxu0 0
        %2841 = vmatprep.subr.bf16.mxu0 0
        %2842 = vmatpush1.bf16.msra.mxu0 0
        %2843 = vmatprep.subr.bf16.mxu0 0
        %2844 = vmatpush1.bf16.msra.mxu0 0
        %2845 = vmatprep.subr.bf16.mxu0 0
        %2846 = vmatpush1.bf16.msra.mxu0 0
        %2847 = vmatprep.subr.bf16.mxu0 0
        %2848 = vmatpush1.bf16.msra.mxu0 0
        %2849 = vmatprep.subr.bf16.mxu0 0
        %2850 = vmatpush1.bf16.msra.mxu0 0
        %2851 = vmatprep.subr.bf16.mxu0 %v1513
        %2852 = vmatpush1.bf16.msra.mxu0 %v1512
        %2853 = vmatprep.subr.bf16.mxu0 %v1449
        %2854 = vmatpush1.bf16.msra.mxu0 %v1448
        %2855 = vmatprep.subr.bf16.mxu0 0
        %2856 = vmatpush2.bf16.msra.mxu0 0
        %2857 = vmatprep.subr.bf16.mxu0 0
        %2858 = vmatpush2.bf16.msra.mxu0 0
        %2859 = vmatprep.subr.bf16.mxu0 0
        %2860 = vmatpush2.bf16.msra.mxu0 0
        %2861 = vmatprep.subr.bf16.mxu0 0
        %2862 = vmatpush2.bf16.msra.mxu0 0
        %2863 = vmatprep.subr.bf16.mxu0 0
        %2864 = vmatpush2.bf16.msra.mxu0 0
        %2865 = vmatprep.subr.bf16.mxu0 0
        %2866 = vmatpush2.bf16.msra.mxu0 0
        %2867 = vmatprep.subr.bf16.mxu0 0
        %2868 = vmatpush2.bf16.msra.mxu0 0
        %2869 = vmatprep.subr.bf16.mxu0 0
        %2870 = vmatpush2.bf16.msra.mxu0 0
        %2871 = vmatprep.mubr.bf16.mxu0 0
        %2872 = vmatmul.mubr.bf16.gmra.mxu0 %v1648
        %v2873 = vpop.f32.mrf.mxu0
        %v2874 = vadd.f32 %v1004, %v2873
        %v2875 = vpop.f32.mrf.mxu0
        %v2876 = vadd.f32 %v1004, %v2875
        %v2877 = vpop.f32.mrf.mxu0
        %v2878 = vpop.f32.mrf.mxu0
        %2879 = vdwg.mxu0
        %2880 = vmatprep.subr.bf16.mxu0 0
        %2881 = vmatpush1.bf16.msra.mxu0 0
        %2882 = vmatprep.subr.bf16.mxu0 0
        %2883 = vmatpush1.bf16.msra.mxu0 0
        %2884 = vmatprep.subr.bf16.mxu0 0
        %2885 = vmatpush1.bf16.msra.mxu0 0
        %2886 = vmatprep.subr.bf16.mxu0 0
        %2887 = vmatpush1.bf16.msra.mxu0 0
        %2888 = vmatprep.subr.bf16.mxu0 0
        %2889 = vmatpush1.bf16.msra.mxu0 0
        %2890 = vmatprep.subr.bf16.mxu0 0
        %2891 = vmatpush1.bf16.msra.mxu0 0
        %2892 = vmatprep.subr.bf16.mxu0 %v1515
        %2893 = vmatpush1.bf16.msra.mxu0 %v1514
        %2894 = vmatprep.subr.bf16.mxu0 %v1451
        %2895 = vmatpush1.bf16.msra.mxu0 %v1450
        %2896 = vmatprep.subr.bf16.mxu0 0
        %2897 = vmatpush2.bf16.msra.mxu0 0
        %2898 = vmatprep.subr.bf16.mxu0 0
        %2899 = vmatpush2.bf16.msra.mxu0 0
        %2900 = vmatprep.subr.bf16.mxu0 0
        %2901 = vmatpush2.bf16.msra.mxu0 0
        %2902 = vmatprep.subr.bf16.mxu0 0
        %2903 = vmatpush2.bf16.msra.mxu0 0
        %2904 = vmatprep.subr.bf16.mxu0 0
        %2905 = vmatpush2.bf16.msra.mxu0 0
        %2906 = vmatprep.subr.bf16.mxu0 0
        %2907 = vmatpush2.bf16.msra.mxu0 0
        %2908 = vmatprep.subr.bf16.mxu0 0
        %2909 = vmatpush2.bf16.msra.mxu0 0
        %2910 = vmatprep.subr.bf16.mxu0 0
        %2911 = vmatpush2.bf16.msra.mxu0 0
        %2912 = vmatprep.mubr.bf16.mxu0 0
        %2913 = vmatmul.mubr.bf16.gmra.mxu0 %v1648
        %v2914 = vpop.f32.mrf.mxu0
        %v2915 = vadd.f32 %v1004, %v2914
        %v2916 = vpop.f32.mrf.mxu0
        %v2917 = vadd.f32 %v1004, %v2916
        %v2918 = vpop.f32.mrf.mxu0
        %v2919 = vpop.f32.mrf.mxu0
        %2920 = vdwg.mxu0
        %2921 = vmatprep.subr.bf16.mxu0 0
        %2922 = vmatpush1.bf16.msra.mxu0 0
        %2923 = vmatprep.subr.bf16.mxu0 0
        %2924 = vmatpush1.bf16.msra.mxu0 0
        %2925 = vmatprep.subr.bf16.mxu0 0
        %2926 = vmatpush1.bf16.msra.mxu0 0
        %2927 = vmatprep.subr.bf16.mxu0 0
        %2928 = vmatpush1.bf16.msra.mxu0 0
        %2929 = vmatprep.subr.bf16.mxu0 0
        %2930 = vmatpush1.bf16.msra.mxu0 0
        %2931 = vmatprep.subr.bf16.mxu0 0
        %2932 = vmatpush1.bf16.msra.mxu0 0
        %2933 = vmatprep.subr.bf16.mxu0 %v1517
        %2934 = vmatpush1.bf16.msra.mxu0 %v1516
        %2935 = vmatprep.subr.bf16.mxu0 %v1453
        %2936 = vmatpush1.bf16.msra.mxu0 %v1452
        %2937 = vmatprep.subr.bf16.mxu0 0
        %2938 = vmatpush2.bf16.msra.mxu0 0
        %2939 = vmatprep.subr.bf16.mxu0 0
        %2940 = vmatpush2.bf16.msra.mxu0 0
        %2941 = vmatprep.subr.bf16.mxu0 0
        %2942 = vmatpush2.bf16.msra.mxu0 0
        %2943 = vmatprep.subr.bf16.mxu0 0
        %2944 = vmatpush2.bf16.msra.mxu0 0
        %2945 = vmatprep.subr.bf16.mxu0 0
        %2946 = vmatpush2.bf16.msra.mxu0 0
        %2947 = vmatprep.subr.bf16.mxu0 0
        %2948 = vmatpush2.bf16.msra.mxu0 0
        %2949 = vmatprep.subr.bf16.mxu0 0
        %2950 = vmatpush2.bf16.msra.mxu0 0
        %2951 = vmatprep.subr.bf16.mxu0 0
        %2952 = vmatpush2.bf16.msra.mxu0 0
        %2953 = vmatprep.mubr.bf16.mxu0 0
        %2954 = vmatmul.mubr.bf16.gmra.mxu0 %v1648
        %v2955 = vpop.f32.mrf.mxu0
        %v2956 = vadd.f32 %v1004, %v2955
        %v2957 = vpop.f32.mrf.mxu0
        %v2958 = vadd.f32 %v1004, %v2957
        %v2959 = vpop.f32.mrf.mxu0
        %v2960 = vpop.f32.mrf.mxu0
        %2961 = vdwg.mxu0
        %v2962 = vmax.f32 %v1685, 0.0
        %v2963 = vmax.f32 %v1687, 0.0
        %v2964 = vmax.f32 %v1726, 0.0
        %v2965 = vmax.f32 %v1728, 0.0
        %v2966 = vmax.f32 %v1767, 0.0
        %v2967 = vmax.f32 %v1769, 0.0
        %v2968 = vmax.f32 %v1808, 0.0
        %v2969 = vmax.f32 %v1810, 0.0
        %v2970 = vmax.f32 %v1849, 0.0
        %v2971 = vmax.f32 %v1851, 0.0
        %v2972 = vmax.f32 %v1890, 0.0
        %v2973 = vmax.f32 %v1892, 0.0
        %v2974 = vmax.f32 %v1931, 0.0
        %v2975 = vmax.f32 %v1933, 0.0
        %v2976 = vmax.f32 %v1972, 0.0
        %v2977 = vmax.f32 %v1974, 0.0
        %v2978 = vmax.f32 %v2013, 0.0
        %v2979 = vmax.f32 %v2015, 0.0
        %v2980 = vmax.f32 %v2054, 0.0
        %v2981 = vmax.f32 %v2056, 0.0
        %v2982 = vmax.f32 %v2095, 0.0
        %v2983 = vmax.f32 %v2097, 0.0
        %v2984 = vmax.f32 %v2136, 0.0
        %v2985 = vmax.f32 %v2138, 0.0
        %v2986 = vmax.f32 %v2177, 0.0
        %v2987 = vmax.f32 %v2179, 0.0
        %v2988 = vmax.f32 %v2218, 0.0
        %v2989 = vmax.f32 %v2220, 0.0
        %v2990 = vmax.f32 %v2259, 0.0
        %v2991 = vmax.f32 %v2261, 0.0
        %v2992 = vmax.f32 %v2300, 0.0
        %v2993 = vmax.f32 %v2302, 0.0
        %v2994 = vmax.f32 %v2341, 0.0
        %v2995 = vmax.f32 %v2343, 0.0
        %v2996 = vmax.f32 %v2382, 0.0
        %v2997 = vmax.f32 %v2384, 0.0
        %v2998 = vmax.f32 %v2423, 0.0
        %v2999 = vmax.f32 %v2425, 0.0
        %v3000 = vmax.f32 %v2464, 0.0
        %v3001 = vmax.f32 %v2466, 0.0
        %v3002 = vmax.f32 %v2505, 0.0
        %v3003 = vmax.f32 %v2507, 0.0
        %v3004 = vmax.f32 %v2546, 0.0
        %v3005 = vmax.f32 %v2548, 0.0
        %v3006 = vmax.f32 %v2587, 0.0
        %v3007 = vmax.f32 %v2589, 0.0
        %v3008 = vmax.f32 %v2628, 0.0
        %v3009 = vmax.f32 %v2630, 0.0
        %v3010 = vmax.f32 %v2669, 0.0
        %v3011 = vmax.f32 %v2671, 0.0
        %v3012 = vmax.f32 %v2710, 0.0
        %v3013 = vmax.f32 %v2712, 0.0
        %v3014 = vmax.f32 %v2751, 0.0
        %v3015 = vmax.f32 %v2753, 0.0
        %v3016 = vmax.f32 %v2792, 0.0
        %v3017 = vmax.f32 %v2794, 0.0
        %v3018 = vmax.f32 %v2833, 0.0
        %v3019 = vmax.f32 %v2835, 0.0
        %v3020 = vmax.f32 %v2874, 0.0
        %v3021 = vmax.f32 %v2876, 0.0
        %v3022 = vmax.f32 %v2915, 0.0
        %v3023 = vmax.f32 %v2917, 0.0
        %v3024 = vmax.f32 %v2956, 0.0
        %v3025 = vmax.f32 %v2958, 0.0
        %v3026 = vmax.f32 %v2962, %v2978
        %v3027 = vmax.f32 %v2963, %v2979
        %v3028 = vmax.f32 %v2964, %v2980
        %v3029 = vmax.f32 %v2965, %v2981
        %v3030 = vmax.f32 %v2966, %v2982
        %v3031 = vmax.f32 %v2967, %v2983
        %v3032 = vmax.f32 %v2968, %v2984
        %v3033 = vmax.f32 %v2969, %v2985
        %v3034 = vmax.f32 %v2970, %v2986
        %v3035 = vmax.f32 %v2971, %v2987
        %v3036 = vmax.f32 %v2972, %v2988
        %v3037 = vmax.f32 %v2973, %v2989
        %v3038 = vmax.f32 %v2974, %v2990
        %v3039 = vmax.f32 %v2975, %v2991
        %v3040 = vmax.f32 %v2976, %v2992
        %v3041 = vmax.f32 %v2977, %v2993
        %v3042 = vmax.f32 %v2994, %v3010
        %v3043 = vmax.f32 %v2995, %v3011
        %v3044 = vmax.f32 %v2996, %v3012
        %v3045 = vmax.f32 %v2997, %v3013
        %v3046 = vmax.f32 %v2998, %v3014
        %v3047 = vmax.f32 %v2999, %v3015
        %v3048 = vmax.f32 %v3000, %v3016
        %v3049 = vmax.f32 %v3001, %v3017
        %v3050 = vmax.f32 %v3002, %v3018
        %v3051 = vmax.f32 %v3003, %v3019
        %v3052 = vmax.f32 %v3004, %v3020
        %v3053 = vmax.f32 %v3005, %v3021
        %v3054 = vmax.f32 %v3006, %v3022
        %v3055 = vmax.f32 %v3007, %v3023
        %v3056 = vmax.f32 %v3008, %v3024
        %v3057 = vmax.f32 %v3009, %v3025
        %v3058 = vmax.f32 %v3026, %v3042
        %v3059 = vmax.f32 %v3027, %v3043
        %v3060 = vmax.f32 %v3028, %v3044
        %v3061 = vmax.f32 %v3029, %v3045
        %v3062 = vmax.f32 %v3030, %v3046
        %v3063 = vmax.f32 %v3031, %v3047
        %v3064 = vmax.f32 %v3032, %v3048
        %v3065 = vmax.f32 %v3033, %v3049
        %v3066 = vmax.f32 %v3034, %v3050
        %v3067 = vmax.f32 %v3035, %v3051
        %v3068 = vmax.f32 %v3036, %v3052
        %v3069 = vmax.f32 %v3037, %v3053
        %v3070 = vmax.f32 %v3038, %v3054
        %v3071 = vmax.f32 %v3039, %v3055
        %v3072 = vmax.f32 %v3040, %v3056
        %v3073 = vmax.f32 %v3041, %v3057
        %v3074 = vld [vmem:[%s827] sm:$0xff]
        %v3075 = vld [vmem:[%s827 + $0x8] sm:$0xff]
        %v3076 = vld [vmem:[%s827 + $0x10] sm:$0xff]
        %v3077 = vld [vmem:[%s827 + $0x18] sm:$0xff]
        %v3078 = vld [vmem:[%s827 + $0x20] sm:$0xff]
        %v3079 = vld [vmem:[%s827 + $0x28] sm:$0xff]
        %v3080 = vld [vmem:[%s827 + $0x30] sm:$0xff]
        %v3081 = vld [vmem:[%s827 + $0x38] sm:$0xff]
        %v3082 = vld [vmem:[%s827 + $0x40] sm:$0xff]
        %v3083 = vld [vmem:[%s827 + $0x48] sm:$0xff]
        %v3084 = vld [vmem:[%s827 + $0x50] sm:$0xff]
        %v3085 = vld [vmem:[%s827 + $0x58] sm:$0xff]
        %v3086 = vld [vmem:[%s827 + $0x60] sm:$0xff]
        %v3087 = vld [vmem:[%s827 + $0x68] sm:$0xff]
        %v3088 = vld [vmem:[%s827 + $0x70] sm:$0xff]
        %v3089 = vld [vmem:[%s827 + $0x78] sm:$0xff]
        %v3090 = vld [vmem:[%s827 + $0x80] sm:$0xff]
        %v3091 = vld [vmem:[%s827 + $0x88] sm:$0xff]
        %v3092 = vld [vmem:[%s827 + $0x90] sm:$0xff]
        %v3093 = vld [vmem:[%s827 + $0x98] sm:$0xff]
        %v3094 = vld [vmem:[%s827 + $0xa0] sm:$0xff]
        %v3095 = vld [vmem:[%s827 + $0xa8] sm:$0xff]
        %v3096 = vld [vmem:[%s827 + $0xb0] sm:$0xff]
        %v3097 = vld [vmem:[%s827 + $0xb8] sm:$0xff]
        %v3098 = vld [vmem:[%s827 + $0xc0] sm:$0xff]
        %v3099 = vld [vmem:[%s827 + $0xc8] sm:$0xff]
        %v3100 = vld [vmem:[%s827 + $0xd0] sm:$0xff]
        %v3101 = vld [vmem:[%s827 + $0xd8] sm:$0xff]
        %v3102 = vld [vmem:[%s827 + $0xe0] sm:$0xff]
        %v3103 = vld [vmem:[%s827 + $0xe8] sm:$0xff]
        %v3104 = vld [vmem:[%s827 + $0xf0] sm:$0xff]
        %v3105 = vld [vmem:[%s827 + $0xf8] sm:$0xff]
        %v3106 = vld [vmem:[%s827 + $0x100] sm:$0xff]
        %v3107 = vld [vmem:[%s827 + $0x108] sm:$0xff]
        %v3108 = vld [vmem:[%s827 + $0x110] sm:$0xff]
        %v3109 = vld [vmem:[%s827 + $0x118] sm:$0xff]
        %v3110 = vld [vmem:[%s827 + $0x120] sm:$0xff]
        %v3111 = vld [vmem:[%s827 + $0x128] sm:$0xff]
        %v3112 = vld [vmem:[%s827 + $0x130] sm:$0xff]
        %v3113 = vld [vmem:[%s827 + $0x138] sm:$0xff]
        %v3114 = vld [vmem:[%s827 + $0x140] sm:$0xff]
        %v3115 = vld [vmem:[%s827 + $0x148] sm:$0xff]
        %v3116 = vld [vmem:[%s827 + $0x150] sm:$0xff]
        %v3117 = vld [vmem:[%s827 + $0x158] sm:$0xff]
        %v3118 = vld [vmem:[%s827 + $0x160] sm:$0xff]
        %v3119 = vld [vmem:[%s827 + $0x168] sm:$0xff]
        %v3120 = vld [vmem:[%s827 + $0x170] sm:$0xff]
        %v3121 = vld [vmem:[%s827 + $0x178] sm:$0xff]
        %v3122 = vld [vmem:[%s827 + $0x180] sm:$0xff]
        %v3123 = vld [vmem:[%s827 + $0x188] sm:$0xff]
        %v3124 = vld [vmem:[%s827 + $0x190] sm:$0xff]
        %v3125 = vld [vmem:[%s827 + $0x198] sm:$0xff]
        %v3126 = vld [vmem:[%s827 + $0x1a0] sm:$0xff]
        %v3127 = vld [vmem:[%s827 + $0x1a8] sm:$0xff]
        %v3128 = vld [vmem:[%s827 + $0x1b0] sm:$0xff]
        %v3129 = vld [vmem:[%s827 + $0x1b8] sm:$0xff]
        %v3130 = vld [vmem:[%s827 + $0x1c0] sm:$0xff]
        %v3131 = vld [vmem:[%s827 + $0x1c8] sm:$0xff]
        %v3132 = vld [vmem:[%s827 + $0x1d0] sm:$0xff]
        %v3133 = vld [vmem:[%s827 + $0x1d8] sm:$0xff]
        %v3134 = vld [vmem:[%s827 + $0x1e0] sm:$0xff]
        %v3135 = vld [vmem:[%s827 + $0x1e8] sm:$0xff]
        %v3136 = vld [vmem:[%s827 + $0x1f0] sm:$0xff]
        %v3137 = vld [vmem:[%s827 + $0x1f8] sm:$0xff]
        %v3138 = vld [vmem:[%s827 + $0x200] sm:$0xff]
        %v3139 = vld [vmem:[%s827 + $0x208] sm:$0xff]
        %v3140 = vld [vmem:[%s827 + $0x210] sm:$0xff]
        %v3141 = vld [vmem:[%s827 + $0x218] sm:$0xff]
        %v3142 = vld [vmem:[%s827 + $0x220] sm:$0xff]
        %v3143 = vld [vmem:[%s827 + $0x228] sm:$0xff]
        %v3144 = vld [vmem:[%s827 + $0x230] sm:$0xff]
        %v3145 = vld [vmem:[%s827 + $0x238] sm:$0xff]
        %v3146 = vld [vmem:[%s827 + $0x240] sm:$0xff]
        %v3147 = vld [vmem:[%s827 + $0x248] sm:$0xff]
        %v3148 = vld [vmem:[%s827 + $0x250] sm:$0xff]
        %v3149 = vld [vmem:[%s827 + $0x258] sm:$0xff]
        %v3150 = vld [vmem:[%s827 + $0x260] sm:$0xff]
        %v3151 = vld [vmem:[%s827 + $0x268] sm:$0xff]
        %v3152 = vld [vmem:[%s827 + $0x270] sm:$0xff]
        %v3153 = vld [vmem:[%s827 + $0x278] sm:$0xff]
        %v3154 = vld [vmem:[%s827 + $0x280] sm:$0xff]
        %v3155 = vld [vmem:[%s827 + $0x288] sm:$0xff]
        %v3156 = vld [vmem:[%s827 + $0x290] sm:$0xff]
        %v3157 = vld [vmem:[%s827 + $0x298] sm:$0xff]
        %v3158 = vld [vmem:[%s827 + $0x2a0] sm:$0xff]
        %v3159 = vld [vmem:[%s827 + $0x2a8] sm:$0xff]
        %v3160 = vld [vmem:[%s827 + $0x2b0] sm:$0xff]
        %v3161 = vld [vmem:[%s827 + $0x2b8] sm:$0xff]
        %v3162 = vld [vmem:[%s827 + $0x2c0] sm:$0xff]
        %v3163 = vld [vmem:[%s827 + $0x2c8] sm:$0xff]
        %v3164 = vld [vmem:[%s827 + $0x2d0] sm:$0xff]
        %v3165 = vld [vmem:[%s827 + $0x2d8] sm:$0xff]
        %v3166 = vld [vmem:[%s827 + $0x2e0] sm:$0xff]
        %v3167 = vld [vmem:[%s827 + $0x2e8] sm:$0xff]
        %v3168 = vld [vmem:[%s827 + $0x2f0] sm:$0xff]
        %v3169 = vld [vmem:[%s827 + $0x2f8] sm:$0xff]
        %v3170 = vld [vmem:[%s827 + $0x300] sm:$0xff]
        %v3171 = vld [vmem:[%s827 + $0x308] sm:$0xff]
        %v3172 = vld [vmem:[%s827 + $0x310] sm:$0xff]
        %v3173 = vld [vmem:[%s827 + $0x318] sm:$0xff]
        %v3174 = vld [vmem:[%s827 + $0x320] sm:$0xff]
        %v3175 = vld [vmem:[%s827 + $0x328] sm:$0xff]
        %v3176 = vld [vmem:[%s827 + $0x330] sm:$0xff]
        %v3177 = vld [vmem:[%s827 + $0x338] sm:$0xff]
        %v3178 = vld [vmem:[%s827 + $0x340] sm:$0xff]
        %v3179 = vld [vmem:[%s827 + $0x348] sm:$0xff]
        %v3180 = vld [vmem:[%s827 + $0x350] sm:$0xff]
        %v3181 = vld [vmem:[%s827 + $0x358] sm:$0xff]
        %v3182 = vld [vmem:[%s827 + $0x360] sm:$0xff]
        %v3183 = vld [vmem:[%s827 + $0x368] sm:$0xff]
        %v3184 = vld [vmem:[%s827 + $0x370] sm:$0xff]
        %v3185 = vld [vmem:[%s827 + $0x378] sm:$0xff]
        %v3186 = vld [vmem:[%s827 + $0x380] sm:$0xff]
        %v3187 = vld [vmem:[%s827 + $0x388] sm:$0xff]
        %v3188 = vld [vmem:[%s827 + $0x390] sm:$0xff]
        %v3189 = vld [vmem:[%s827 + $0x398] sm:$0xff]
        %v3190 = vld [vmem:[%s827 + $0x3a0] sm:$0xff]
        %v3191 = vld [vmem:[%s827 + $0x3a8] sm:$0xff]
        %v3192 = vld [vmem:[%s827 + $0x3b0] sm:$0xff]
        %v3193 = vld [vmem:[%s827 + $0x3b8] sm:$0xff]
        %v3194 = vld [vmem:[%s827 + $0x3c0] sm:$0xff]
        %v3195 = vld [vmem:[%s827 + $0x3c8] sm:$0xff]
        %v3196 = vld [vmem:[%s827 + $0x3d0] sm:$0xff]
        %v3197 = vld [vmem:[%s827 + $0x3d8] sm:$0xff]
        %v3198 = vld [vmem:[%s827 + $0x3e0] sm:$0xff]
        %v3199 = vld [vmem:[%s827 + $0x3e8] sm:$0xff]
        %v3200 = vld [vmem:[%s827 + $0x3f0] sm:$0xff]
        %v3201 = vld [vmem:[%s827 + $0x3f8] sm:$0xff]
        %v3202 = vunpack.c.l.bf16 %v3074
        %v3203 = vunpack.c.h.bf16 %v3074
        %v3204 = vunpack.c.l.bf16 %v3075
        %v3205 = vunpack.c.h.bf16 %v3075
        %v3206 = vunpack.c.l.bf16 %v3076
        %v3207 = vunpack.c.h.bf16 %v3076
        %v3208 = vunpack.c.l.bf16 %v3077
        %v3209 = vunpack.c.h.bf16 %v3077
        %v3210 = vunpack.c.l.bf16 %v3078
        %v3211 = vunpack.c.h.bf16 %v3078
        %v3212 = vunpack.c.l.bf16 %v3079
        %v3213 = vunpack.c.h.bf16 %v3079
        %v3214 = vunpack.c.l.bf16 %v3080
        %v3215 = vunpack.c.h.bf16 %v3080
        %v3216 = vunpack.c.l.bf16 %v3081
        %v3217 = vunpack.c.h.bf16 %v3081
        %v3218 = vunpack.c.l.bf16 %v3082
        %v3219 = vunpack.c.h.bf16 %v3082
        %v3220 = vunpack.c.l.bf16 %v3083
        %v3221 = vunpack.c.h.bf16 %v3083
        %v3222 = vunpack.c.l.bf16 %v3084
        %v3223 = vunpack.c.h.bf16 %v3084
        %v3224 = vunpack.c.l.bf16 %v3085
        %v3225 = vunpack.c.h.bf16 %v3085
        %v3226 = vunpack.c.l.bf16 %v3086
        %v3227 = vunpack.c.h.bf16 %v3086
        %v3228 = vunpack.c.l.bf16 %v3087
        %v3229 = vunpack.c.h.bf16 %v3087
        %v3230 = vunpack.c.l.bf16 %v3088
        %v3231 = vunpack.c.h.bf16 %v3088
        %v3232 = vunpack.c.l.bf16 %v3089
        %v3233 = vunpack.c.h.bf16 %v3089
        %v3234 = vunpack.c.l.bf16 %v3090
        %v3235 = vunpack.c.h.bf16 %v3090
        %v3236 = vunpack.c.l.bf16 %v3091
        %v3237 = vunpack.c.h.bf16 %v3091
        %v3238 = vunpack.c.l.bf16 %v3092
        %v3239 = vunpack.c.h.bf16 %v3092
        %v3240 = vunpack.c.l.bf16 %v3093
        %v3241 = vunpack.c.h.bf16 %v3093
        %v3242 = vunpack.c.l.bf16 %v3094
        %v3243 = vunpack.c.h.bf16 %v3094
        %v3244 = vunpack.c.l.bf16 %v3095
        %v3245 = vunpack.c.h.bf16 %v3095
        %v3246 = vunpack.c.l.bf16 %v3096
        %v3247 = vunpack.c.h.bf16 %v3096
        %v3248 = vunpack.c.l.bf16 %v3097
        %v3249 = vunpack.c.h.bf16 %v3097
        %v3250 = vunpack.c.l.bf16 %v3098
        %v3251 = vunpack.c.h.bf16 %v3098
        %v3252 = vunpack.c.l.bf16 %v3099
        %v3253 = vunpack.c.h.bf16 %v3099
        %v3254 = vunpack.c.l.bf16 %v3100
        %v3255 = vunpack.c.h.bf16 %v3100
        %v3256 = vunpack.c.l.bf16 %v3101
        %v3257 = vunpack.c.h.bf16 %v3101
        %v3258 = vunpack.c.l.bf16 %v3102
        %v3259 = vunpack.c.h.bf16 %v3102
        %v3260 = vunpack.c.l.bf16 %v3103
        %v3261 = vunpack.c.h.bf16 %v3103
        %v3262 = vunpack.c.l.bf16 %v3104
        %v3263 = vunpack.c.h.bf16 %v3104
        %v3264 = vunpack.c.l.bf16 %v3105
        %v3265 = vunpack.c.h.bf16 %v3105
        %v3266 = vunpack.c.l.bf16 %v3106
        %v3267 = vunpack.c.h.bf16 %v3106
        %v3268 = vunpack.c.l.bf16 %v3107
        %v3269 = vunpack.c.h.bf16 %v3107
        %v3270 = vunpack.c.l.bf16 %v3108
        %v3271 = vunpack.c.h.bf16 %v3108
        %v3272 = vunpack.c.l.bf16 %v3109
        %v3273 = vunpack.c.h.bf16 %v3109
        %v3274 = vunpack.c.l.bf16 %v3110
        %v3275 = vunpack.c.h.bf16 %v3110
        %v3276 = vunpack.c.l.bf16 %v3111
        %v3277 = vunpack.c.h.bf16 %v3111
        %v3278 = vunpack.c.l.bf16 %v3112
        %v3279 = vunpack.c.h.bf16 %v3112
        %v3280 = vunpack.c.l.bf16 %v3113
        %v3281 = vunpack.c.h.bf16 %v3113
        %v3282 = vunpack.c.l.bf16 %v3114
        %v3283 = vunpack.c.h.bf16 %v3114
        %v3284 = vunpack.c.l.bf16 %v3115
        %v3285 = vunpack.c.h.bf16 %v3115
        %v3286 = vunpack.c.l.bf16 %v3116
        %v3287 = vunpack.c.h.bf16 %v3116
        %v3288 = vunpack.c.l.bf16 %v3117
        %v3289 = vunpack.c.h.bf16 %v3117
        %v3290 = vunpack.c.l.bf16 %v3118
        %v3291 = vunpack.c.h.bf16 %v3118
        %v3292 = vunpack.c.l.bf16 %v3119
        %v3293 = vunpack.c.h.bf16 %v3119
        %v3294 = vunpack.c.l.bf16 %v3120
        %v3295 = vunpack.c.h.bf16 %v3120
        %v3296 = vunpack.c.l.bf16 %v3121
        %v3297 = vunpack.c.h.bf16 %v3121
        %v3298 = vunpack.c.l.bf16 %v3122
        %v3299 = vunpack.c.h.bf16 %v3122
        %v3300 = vunpack.c.l.bf16 %v3123
        %v3301 = vunpack.c.h.bf16 %v3123
        %v3302 = vunpack.c.l.bf16 %v3124
        %v3303 = vunpack.c.h.bf16 %v3124
        %v3304 = vunpack.c.l.bf16 %v3125
        %v3305 = vunpack.c.h.bf16 %v3125
        %v3306 = vunpack.c.l.bf16 %v3126
        %v3307 = vunpack.c.h.bf16 %v3126
        %v3308 = vunpack.c.l.bf16 %v3127
        %v3309 = vunpack.c.h.bf16 %v3127
        %v3310 = vunpack.c.l.bf16 %v3128
        %v3311 = vunpack.c.h.bf16 %v3128
        %v3312 = vunpack.c.l.bf16 %v3129
        %v3313 = vunpack.c.h.bf16 %v3129
        %v3314 = vunpack.c.l.bf16 %v3130
        %v3315 = vunpack.c.h.bf16 %v3130
        %v3316 = vunpack.c.l.bf16 %v3131
        %v3317 = vunpack.c.h.bf16 %v3131
        %v3318 = vunpack.c.l.bf16 %v3132
        %v3319 = vunpack.c.h.bf16 %v3132
        %v3320 = vunpack.c.l.bf16 %v3133
        %v3321 = vunpack.c.h.bf16 %v3133
        %v3322 = vunpack.c.l.bf16 %v3134
        %v3323 = vunpack.c.h.bf16 %v3134
        %v3324 = vunpack.c.l.bf16 %v3135
        %v3325 = vunpack.c.h.bf16 %v3135
        %v3326 = vunpack.c.l.bf16 %v3136
        %v3327 = vunpack.c.h.bf16 %v3136
        %v3328 = vunpack.c.l.bf16 %v3137
        %v3329 = vunpack.c.h.bf16 %v3137
        %v3330 = vunpack.c.l.bf16 %v3138
        %v3331 = vunpack.c.h.bf16 %v3138
        %v3332 = vunpack.c.l.bf16 %v3139
        %v3333 = vunpack.c.h.bf16 %v3139
        %v3334 = vunpack.c.l.bf16 %v3140
        %v3335 = vunpack.c.h.bf16 %v3140
        %v3336 = vunpack.c.l.bf16 %v3141
        %v3337 = vunpack.c.h.bf16 %v3141
        %v3338 = vunpack.c.l.bf16 %v3142
        %v3339 = vunpack.c.h.bf16 %v3142
        %v3340 = vunpack.c.l.bf16 %v3143
        %v3341 = vunpack.c.h.bf16 %v3143
        %v3342 = vunpack.c.l.bf16 %v3144
        %v3343 = vunpack.c.h.bf16 %v3144
        %v3344 = vunpack.c.l.bf16 %v3145
        %v3345 = vunpack.c.h.bf16 %v3145
        %v3346 = vunpack.c.l.bf16 %v3146
        %v3347 = vunpack.c.h.bf16 %v3146
        %v3348 = vunpack.c.l.bf16 %v3147
        %v3349 = vunpack.c.h.bf16 %v3147
        %v3350 = vunpack.c.l.bf16 %v3148
        %v3351 = vunpack.c.h.bf16 %v3148
        %v3352 = vunpack.c.l.bf16 %v3149
        %v3353 = vunpack.c.h.bf16 %v3149
        %v3354 = vunpack.c.l.bf16 %v3150
        %v3355 = vunpack.c.h.bf16 %v3150
        %v3356 = vunpack.c.l.bf16 %v3151
        %v3357 = vunpack.c.h.bf16 %v3151
        %v3358 = vunpack.c.l.bf16 %v3152
        %v3359 = vunpack.c.h.bf16 %v3152
        %v3360 = vunpack.c.l.bf16 %v3153
        %v3361 = vunpack.c.h.bf16 %v3153
        %v3362 = vunpack.c.l.bf16 %v3154
        %v3363 = vunpack.c.h.bf16 %v3154
        %v3364 = vunpack.c.l.bf16 %v3155
        %v3365 = vunpack.c.h.bf16 %v3155
        %v3366 = vunpack.c.l.bf16 %v3156
        %v3367 = vunpack.c.h.bf16 %v3156
        %v3368 = vunpack.c.l.bf16 %v3157
        %v3369 = vunpack.c.h.bf16 %v3157
        %v3370 = vunpack.c.l.bf16 %v3158
        %v3371 = vunpack.c.h.bf16 %v3158
        %v3372 = vunpack.c.l.bf16 %v3159
        %v3373 = vunpack.c.h.bf16 %v3159
        %v3374 = vunpack.c.l.bf16 %v3160
        %v3375 = vunpack.c.h.bf16 %v3160
        %v3376 = vunpack.c.l.bf16 %v3161
        %v3377 = vunpack.c.h.bf16 %v3161
        %v3378 = vunpack.c.l.bf16 %v3162
        %v3379 = vunpack.c.h.bf16 %v3162
        %v3380 = vunpack.c.l.bf16 %v3163
        %v3381 = vunpack.c.h.bf16 %v3163
        %v3382 = vunpack.c.l.bf16 %v3164
        %v3383 = vunpack.c.h.bf16 %v3164
        %v3384 = vunpack.c.l.bf16 %v3165
        %v3385 = vunpack.c.h.bf16 %v3165
        %v3386 = vunpack.c.l.bf16 %v3166
        %v3387 = vunpack.c.h.bf16 %v3166
        %v3388 = vunpack.c.l.bf16 %v3167
        %v3389 = vunpack.c.h.bf16 %v3167
        %v3390 = vunpack.c.l.bf16 %v3168
        %v3391 = vunpack.c.h.bf16 %v3168
        %v3392 = vunpack.c.l.bf16 %v3169
        %v3393 = vunpack.c.h.bf16 %v3169
        %v3394 = vunpack.c.l.bf16 %v3170
        %v3395 = vunpack.c.h.bf16 %v3170
        %v3396 = vunpack.c.l.bf16 %v3171
        %v3397 = vunpack.c.h.bf16 %v3171
        %v3398 = vunpack.c.l.bf16 %v3172
        %v3399 = vunpack.c.h.bf16 %v3172
        %v3400 = vunpack.c.l.bf16 %v3173
        %v3401 = vunpack.c.h.bf16 %v3173
        %v3402 = vunpack.c.l.bf16 %v3174
        %v3403 = vunpack.c.h.bf16 %v3174
        %v3404 = vunpack.c.l.bf16 %v3175
        %v3405 = vunpack.c.h.bf16 %v3175
        %v3406 = vunpack.c.l.bf16 %v3176
        %v3407 = vunpack.c.h.bf16 %v3176
        %v3408 = vunpack.c.l.bf16 %v3177
        %v3409 = vunpack.c.h.bf16 %v3177
        %v3410 = vunpack.c.l.bf16 %v3178
        %v3411 = vunpack.c.h.bf16 %v3178
        %v3412 = vunpack.c.l.bf16 %v3179
        %v3413 = vunpack.c.h.bf16 %v3179
        %v3414 = vunpack.c.l.bf16 %v3180
        %v3415 = vunpack.c.h.bf16 %v3180
        %v3416 = vunpack.c.l.bf16 %v3181
        %v3417 = vunpack.c.h.bf16 %v3181
        %v3418 = vunpack.c.l.bf16 %v3182
        %v3419 = vunpack.c.h.bf16 %v3182
        %v3420 = vunpack.c.l.bf16 %v3183
        %v3421 = vunpack.c.h.bf16 %v3183
        %v3422 = vunpack.c.l.bf16 %v3184
        %v3423 = vunpack.c.h.bf16 %v3184
        %v3424 = vunpack.c.l.bf16 %v3185
        %v3425 = vunpack.c.h.bf16 %v3185
        %v3426 = vunpack.c.l.bf16 %v3186
        %v3427 = vunpack.c.h.bf16 %v3186
        %v3428 = vunpack.c.l.bf16 %v3187
        %v3429 = vunpack.c.h.bf16 %v3187
        %v3430 = vunpack.c.l.bf16 %v3188
        %v3431 = vunpack.c.h.bf16 %v3188
        %v3432 = vunpack.c.l.bf16 %v3189
        %v3433 = vunpack.c.h.bf16 %v3189
        %v3434 = vunpack.c.l.bf16 %v3190
        %v3435 = vunpack.c.h.bf16 %v3190
        %v3436 = vunpack.c.l.bf16 %v3191
        %v3437 = vunpack.c.h.bf16 %v3191
        %v3438 = vunpack.c.l.bf16 %v3192
        %v3439 = vunpack.c.h.bf16 %v3192
        %v3440 = vunpack.c.l.bf16 %v3193
        %v3441 = vunpack.c.h.bf16 %v3193
        %v3442 = vunpack.c.l.bf16 %v3194
        %v3443 = vunpack.c.h.bf16 %v3194
        %v3444 = vunpack.c.l.bf16 %v3195
        %v3445 = vunpack.c.h.bf16 %v3195
        %v3446 = vunpack.c.l.bf16 %v3196
        %v3447 = vunpack.c.h.bf16 %v3196
        %v3448 = vunpack.c.l.bf16 %v3197
        %v3449 = vunpack.c.h.bf16 %v3197
        %v3450 = vunpack.c.l.bf16 %v3198
        %v3451 = vunpack.c.h.bf16 %v3198
        %v3452 = vunpack.c.l.bf16 %v3199
        %v3453 = vunpack.c.h.bf16 %v3199
        %v3454 = vunpack.c.l.bf16 %v3200
        %v3455 = vunpack.c.h.bf16 %v3200
        %v3456 = vunpack.c.l.bf16 %v3201
        %v3457 = vunpack.c.h.bf16 %v3201
        %v3458 = vmul.f32 %v3058, %v3202
        %v3459 = vmul.f32 %v3059, %v3203
        %v3460 = vmul.f32 %v3060, %v3204
        %v3461 = vmul.f32 %v3061, %v3205
        %v3462 = vmul.f32 %v3062, %v3206
        %v3463 = vmul.f32 %v3063, %v3207
        %v3464 = vmul.f32 %v3064, %v3208
        %v3465 = vmul.f32 %v3065, %v3209
        %v3466 = vmul.f32 %v3066, %v3210
        %v3467 = vmul.f32 %v3067, %v3211
        %v3468 = vmul.f32 %v3068, %v3212
        %v3469 = vmul.f32 %v3069, %v3213
        %v3470 = vmul.f32 %v3070, %v3214
        %v3471 = vmul.f32 %v3071, %v3215
        %v3472 = vmul.f32 %v3072, %v3216
        %v3473 = vmul.f32 %v3073, %v3217
        %v3474 = vmul.f32 %v3058, %v3218
        %v3475 = vmul.f32 %v3059, %v3219
        %v3476 = vmul.f32 %v3060, %v3220
        %v3477 = vmul.f32 %v3061, %v3221
        %v3478 = vmul.f32 %v3062, %v3222
        %v3479 = vmul.f32 %v3063, %v3223
        %v3480 = vmul.f32 %v3064, %v3224
        %v3481 = vmul.f32 %v3065, %v3225
        %v3482 = vmul.f32 %v3066, %v3226
        %v3483 = vmul.f32 %v3067, %v3227
        %v3484 = vmul.f32 %v3068, %v3228
        %v3485 = vmul.f32 %v3069, %v3229
        %v3486 = vmul.f32 %v3070, %v3230
        %v3487 = vmul.f32 %v3071, %v3231
        %v3488 = vmul.f32 %v3072, %v3232
        %v3489 = vmul.f32 %v3073, %v3233
        %v3490 = vmul.f32 %v3058, %v3234
        %v3491 = vmul.f32 %v3059, %v3235
        %v3492 = vmul.f32 %v3060, %v3236
        %v3493 = vmul.f32 %v3061, %v3237
        %v3494 = vmul.f32 %v3062, %v3238
        %v3495 = vmul.f32 %v3063, %v3239
        %v3496 = vmul.f32 %v3064, %v3240
        %v3497 = vmul.f32 %v3065, %v3241
        %v3498 = vmul.f32 %v3066, %v3242
        %v3499 = vmul.f32 %v3067, %v3243
        %v3500 = vmul.f32 %v3068, %v3244
        %v3501 = vmul.f32 %v3069, %v3245
        %v3502 = vmul.f32 %v3070, %v3246
        %v3503 = vmul.f32 %v3071, %v3247
        %v3504 = vmul.f32 %v3072, %v3248
        %v3505 = vmul.f32 %v3073, %v3249
        %v3506 = vmul.f32 %v3058, %v3250
        %v3507 = vmul.f32 %v3059, %v3251
        %v3508 = vmul.f32 %v3060, %v3252
        %v3509 = vmul.f32 %v3061, %v3253
        %v3510 = vmul.f32 %v3062, %v3254
        %v3511 = vmul.f32 %v3063, %v3255
        %v3512 = vmul.f32 %v3064, %v3256
        %v3513 = vmul.f32 %v3065, %v3257
        %v3514 = vmul.f32 %v3066, %v3258
        %v3515 = vmul.f32 %v3067, %v3259
        %v3516 = vmul.f32 %v3068, %v3260
        %v3517 = vmul.f32 %v3069, %v3261
        %v3518 = vmul.f32 %v3070, %v3262
        %v3519 = vmul.f32 %v3071, %v3263
        %v3520 = vmul.f32 %v3072, %v3264
        %v3521 = vmul.f32 %v3073, %v3265
        %v3522 = vmul.f32 %v3058, %v3266
        %v3523 = vmul.f32 %v3059, %v3267
        %v3524 = vmul.f32 %v3060, %v3268
        %v3525 = vmul.f32 %v3061, %v3269
        %v3526 = vmul.f32 %v3062, %v3270
        %v3527 = vmul.f32 %v3063, %v3271
        %v3528 = vmul.f32 %v3064, %v3272
        %v3529 = vmul.f32 %v3065, %v3273
        %v3530 = vmul.f32 %v3066, %v3274
        %v3531 = vmul.f32 %v3067, %v3275
        %v3532 = vmul.f32 %v3068, %v3276
        %v3533 = vmul.f32 %v3069, %v3277
        %v3534 = vmul.f32 %v3070, %v3278
        %v3535 = vmul.f32 %v3071, %v3279
        %v3536 = vmul.f32 %v3072, %v3280
        %v3537 = vmul.f32 %v3073, %v3281
        %v3538 = vmul.f32 %v3058, %v3282
        %v3539 = vmul.f32 %v3059, %v3283
        %v3540 = vmul.f32 %v3060, %v3284
        %v3541 = vmul.f32 %v3061, %v3285
        %v3542 = vmul.f32 %v3062, %v3286
        %v3543 = vmul.f32 %v3063, %v3287
        %v3544 = vmul.f32 %v3064, %v3288
        %v3545 = vmul.f32 %v3065, %v3289
        %v3546 = vmul.f32 %v3066, %v3290
        %v3547 = vmul.f32 %v3067, %v3291
        %v3548 = vmul.f32 %v3068, %v3292
        %v3549 = vmul.f32 %v3069, %v3293
        %v3550 = vmul.f32 %v3070, %v3294
        %v3551 = vmul.f32 %v3071, %v3295
        %v3552 = vmul.f32 %v3072, %v3296
        %v3553 = vmul.f32 %v3073, %v3297
        %v3554 = vmul.f32 %v3058, %v3298
        %v3555 = vmul.f32 %v3059, %v3299
        %v3556 = vmul.f32 %v3060, %v3300
        %v3557 = vmul.f32 %v3061, %v3301
        %v3558 = vmul.f32 %v3062, %v3302
        %v3559 = vmul.f32 %v3063, %v3303
        %v3560 = vmul.f32 %v3064, %v3304
        %v3561 = vmul.f32 %v3065, %v3305
        %v3562 = vmul.f32 %v3066, %v3306
        %v3563 = vmul.f32 %v3067, %v3307
        %v3564 = vmul.f32 %v3068, %v3308
        %v3565 = vmul.f32 %v3069, %v3309
        %v3566 = vmul.f32 %v3070, %v3310
        %v3567 = vmul.f32 %v3071, %v3311
        %v3568 = vmul.f32 %v3072, %v3312
        %v3569 = vmul.f32 %v3073, %v3313
        %v3570 = vmul.f32 %v3058, %v3314
        %v3571 = vmul.f32 %v3059, %v3315
        %v3572 = vmul.f32 %v3060, %v3316
        %v3573 = vmul.f32 %v3061, %v3317
        %v3574 = vmul.f32 %v3062, %v3318
        %v3575 = vmul.f32 %v3063, %v3319
        %v3576 = vmul.f32 %v3064, %v3320
        %v3577 = vmul.f32 %v3065, %v3321
        %v3578 = vmul.f32 %v3066, %v3322
        %v3579 = vmul.f32 %v3067, %v3323
        %v3580 = vmul.f32 %v3068, %v3324
        %v3581 = vmul.f32 %v3069, %v3325
        %v3582 = vmul.f32 %v3070, %v3326
        %v3583 = vmul.f32 %v3071, %v3327
        %v3584 = vmul.f32 %v3072, %v3328
        %v3585 = vmul.f32 %v3073, %v3329
        %v3586 = vmul.f32 %v3058, %v3330
        %v3587 = vmul.f32 %v3059, %v3331
        %v3588 = vmul.f32 %v3060, %v3332
        %v3589 = vmul.f32 %v3061, %v3333
        %v3590 = vmul.f32 %v3062, %v3334
        %v3591 = vmul.f32 %v3063, %v3335
        %v3592 = vmul.f32 %v3064, %v3336
        %v3593 = vmul.f32 %v3065, %v3337
        %v3594 = vmul.f32 %v3066, %v3338
        %v3595 = vmul.f32 %v3067, %v3339
        %v3596 = vmul.f32 %v3068, %v3340
        %v3597 = vmul.f32 %v3069, %v3341
        %v3598 = vmul.f32 %v3070, %v3342
        %v3599 = vmul.f32 %v3071, %v3343
        %v3600 = vmul.f32 %v3072, %v3344
        %v3601 = vmul.f32 %v3073, %v3345
        %v3602 = vmul.f32 %v3058, %v3346
        %v3603 = vmul.f32 %v3059, %v3347
        %v3604 = vmul.f32 %v3060, %v3348
        %v3605 = vmul.f32 %v3061, %v3349
        %v3606 = vmul.f32 %v3062, %v3350
        %v3607 = vmul.f32 %v3063, %v3351
        %v3608 = vmul.f32 %v3064, %v3352
        %v3609 = vmul.f32 %v3065, %v3353
        %v3610 = vmul.f32 %v3066, %v3354
        %v3611 = vmul.f32 %v3067, %v3355
        %v3612 = vmul.f32 %v3068, %v3356
        %v3613 = vmul.f32 %v3069, %v3357
        %v3614 = vmul.f32 %v3070, %v3358
        %v3615 = vmul.f32 %v3071, %v3359
        %v3616 = vmul.f32 %v3072, %v3360
        %v3617 = vmul.f32 %v3073, %v3361
        %v3618 = vmul.f32 %v3058, %v3362
        %v3619 = vmul.f32 %v3059, %v3363
        %v3620 = vmul.f32 %v3060, %v3364
        %v3621 = vmul.f32 %v3061, %v3365
        %v3622 = vmul.f32 %v3062, %v3366
        %v3623 = vmul.f32 %v3063, %v3367
        %v3624 = vmul.f32 %v3064, %v3368
        %v3625 = vmul.f32 %v3065, %v3369
        %v3626 = vmul.f32 %v3066, %v3370
        %v3627 = vmul.f32 %v3067, %v3371
        %v3628 = vmul.f32 %v3068, %v3372
        %v3629 = vmul.f32 %v3069, %v3373
        %v3630 = vmul.f32 %v3070, %v3374
        %v3631 = vmul.f32 %v3071, %v3375
        %v3632 = vmul.f32 %v3072, %v3376
        %v3633 = vmul.f32 %v3073, %v3377
        %v3634 = vmul.f32 %v3058, %v3378
        %v3635 = vmul.f32 %v3059, %v3379
        %v3636 = vmul.f32 %v3060, %v3380
        %v3637 = vmul.f32 %v3061, %v3381
        %v3638 = vmul.f32 %v3062, %v3382
        %v3639 = vmul.f32 %v3063, %v3383
        %v3640 = vmul.f32 %v3064, %v3384
        %v3641 = vmul.f32 %v3065, %v3385
        %v3642 = vmul.f32 %v3066, %v3386
        %v3643 = vmul.f32 %v3067, %v3387
        %v3644 = vmul.f32 %v3068, %v3388
        %v3645 = vmul.f32 %v3069, %v3389
        %v3646 = vmul.f32 %v3070, %v3390
        %v3647 = vmul.f32 %v3071, %v3391
        %v3648 = vmul.f32 %v3072, %v3392
        %v3649 = vmul.f32 %v3073, %v3393
        %v3650 = vmul.f32 %v3058, %v3394
        %v3651 = vmul.f32 %v3059, %v3395
        %v3652 = vmul.f32 %v3060, %v3396
        %v3653 = vmul.f32 %v3061, %v3397
        %v3654 = vmul.f32 %v3062, %v3398
        %v3655 = vmul.f32 %v3063, %v3399
        %v3656 = vmul.f32 %v3064, %v3400
        %v3657 = vmul.f32 %v3065, %v3401
        %v3658 = vmul.f32 %v3066, %v3402
        %v3659 = vmul.f32 %v3067, %v3403
        %v3660 = vmul.f32 %v3068, %v3404
        %v3661 = vmul.f32 %v3069, %v3405
        %v3662 = vmul.f32 %v3070, %v3406
        %v3663 = vmul.f32 %v3071, %v3407
        %v3664 = vmul.f32 %v3072, %v3408
        %v3665 = vmul.f32 %v3073, %v3409
        %v3666 = vmul.f32 %v3058, %v3410
        %v3667 = vmul.f32 %v3059, %v3411
        %v3668 = vmul.f32 %v3060, %v3412
        %v3669 = vmul.f32 %v3061, %v3413
        %v3670 = vmul.f32 %v3062, %v3414
        %v3671 = vmul.f32 %v3063, %v3415
        %v3672 = vmul.f32 %v3064, %v3416
        %v3673 = vmul.f32 %v3065, %v3417
        %v3674 = vmul.f32 %v3066, %v3418
        %v3675 = vmul.f32 %v3067, %v3419
        %v3676 = vmul.f32 %v3068, %v3420
        %v3677 = vmul.f32 %v3069, %v3421
        %v3678 = vmul.f32 %v3070, %v3422
        %v3679 = vmul.f32 %v3071, %v3423
        %v3680 = vmul.f32 %v3072, %v3424
        %v3681 = vmul.f32 %v3073, %v3425
        %v3682 = vmul.f32 %v3058, %v3426
        %v3683 = vmul.f32 %v3059, %v3427
        %v3684 = vmul.f32 %v3060, %v3428
        %v3685 = vmul.f32 %v3061, %v3429
        %v3686 = vmul.f32 %v3062, %v3430
        %v3687 = vmul.f32 %v3063, %v3431
        %v3688 = vmul.f32 %v3064, %v3432
        %v3689 = vmul.f32 %v3065, %v3433
        %v3690 = vmul.f32 %v3066, %v3434
        %v3691 = vmul.f32 %v3067, %v3435
        %v3692 = vmul.f32 %v3068, %v3436
        %v3693 = vmul.f32 %v3069, %v3437
        %v3694 = vmul.f32 %v3070, %v3438
        %v3695 = vmul.f32 %v3071, %v3439
        %v3696 = vmul.f32 %v3072, %v3440
        %v3697 = vmul.f32 %v3073, %v3441
        %v3698 = vmul.f32 %v3058, %v3442
        %v3699 = vmul.f32 %v3059, %v3443
        %v3700 = vmul.f32 %v3060, %v3444
        %v3701 = vmul.f32 %v3061, %v3445
        %v3702 = vmul.f32 %v3062, %v3446
        %v3703 = vmul.f32 %v3063, %v3447
        %v3704 = vmul.f32 %v3064, %v3448
        %v3705 = vmul.f32 %v3065, %v3449
        %v3706 = vmul.f32 %v3066, %v3450
        %v3707 = vmul.f32 %v3067, %v3451
        %v3708 = vmul.f32 %v3068, %v3452
        %v3709 = vmul.f32 %v3069, %v3453
        %v3710 = vmul.f32 %v3070, %v3454
        %v3711 = vmul.f32 %v3071, %v3455
        %v3712 = vmul.f32 %v3072, %v3456
        %v3713 = vmul.f32 %v3073, %v3457
        %v3714 = vrot.slane %v3458, 4
        %v3715 = vadd.f32 %v3458, %v3714
        %v3716 = vrot.slane %v3715, 2
        %v3717 = vadd.f32 %v3715, %v3716
        %v3718 = vrot.slane %v3717, 1
        %v3719 = vadd.f32 %v3717, %v3718
        %v3720 = vrot.slane %v3459, 4
        %v3721 = vadd.f32 %v3459, %v3720
        %v3722 = vrot.slane %v3721, 2
        %v3723 = vadd.f32 %v3721, %v3722
        %v3724 = vrot.slane %v3723, 1
        %v3725 = vadd.f32 %v3723, %v3724
        %v3726 = vrot.slane %v3460, 4
        %v3727 = vadd.f32 %v3460, %v3726
        %v3728 = vrot.slane %v3727, 2
        %v3729 = vadd.f32 %v3727, %v3728
        %v3730 = vrot.slane %v3729, 1
        %v3731 = vadd.f32 %v3729, %v3730
        %v3732 = vrot.slane %v3461, 4
        %v3733 = vadd.f32 %v3461, %v3732
        %v3734 = vrot.slane %v3733, 2
        %v3735 = vadd.f32 %v3733, %v3734
        %v3736 = vrot.slane %v3735, 1
        %v3737 = vadd.f32 %v3735, %v3736
        %v3738 = vrot.slane %v3462, 4
        %v3739 = vadd.f32 %v3462, %v3738
        %v3740 = vrot.slane %v3739, 2
        %v3741 = vadd.f32 %v3739, %v3740
        %v3742 = vrot.slane %v3741, 1
        %v3743 = vadd.f32 %v3741, %v3742
        %v3744 = vrot.slane %v3463, 4
        %v3745 = vadd.f32 %v3463, %v3744
        %v3746 = vrot.slane %v3745, 2
        %v3747 = vadd.f32 %v3745, %v3746
        %v3748 = vrot.slane %v3747, 1
        %v3749 = vadd.f32 %v3747, %v3748
        %v3750 = vrot.slane %v3464, 4
        %v3751 = vadd.f32 %v3464, %v3750
        %v3752 = vrot.slane %v3751, 2
        %v3753 = vadd.f32 %v3751, %v3752
        %v3754 = vrot.slane %v3753, 1
        %v3755 = vadd.f32 %v3753, %v3754
        %v3756 = vrot.slane %v3465, 4
        %v3757 = vadd.f32 %v3465, %v3756
        %v3758 = vrot.slane %v3757, 2
        %v3759 = vadd.f32 %v3757, %v3758
        %v3760 = vrot.slane %v3759, 1
        %v3761 = vadd.f32 %v3759, %v3760
        %v3762 = vrot.slane %v3466, 4
        %v3763 = vadd.f32 %v3466, %v3762
        %v3764 = vrot.slane %v3763, 2
        %v3765 = vadd.f32 %v3763, %v3764
        %v3766 = vrot.slane %v3765, 1
        %v3767 = vadd.f32 %v3765, %v3766
        %v3768 = vrot.slane %v3467, 4
        %v3769 = vadd.f32 %v3467, %v3768
        %v3770 = vrot.slane %v3769, 2
        %v3771 = vadd.f32 %v3769, %v3770
        %v3772 = vrot.slane %v3771, 1
        %v3773 = vadd.f32 %v3771, %v3772
        %v3774 = vrot.slane %v3468, 4
        %v3775 = vadd.f32 %v3468, %v3774
        %v3776 = vrot.slane %v3775, 2
        %v3777 = vadd.f32 %v3775, %v3776
        %v3778 = vrot.slane %v3777, 1
        %v3779 = vadd.f32 %v3777, %v3778
        %v3780 = vrot.slane %v3469, 4
        %v3781 = vadd.f32 %v3469, %v3780
        %v3782 = vrot.slane %v3781, 2
        %v3783 = vadd.f32 %v3781, %v3782
        %v3784 = vrot.slane %v3783, 1
        %v3785 = vadd.f32 %v3783, %v3784
        %v3786 = vrot.slane %v3470, 4
        %v3787 = vadd.f32 %v3470, %v3786
        %v3788 = vrot.slane %v3787, 2
        %v3789 = vadd.f32 %v3787, %v3788
        %v3790 = vrot.slane %v3789, 1
        %v3791 = vadd.f32 %v3789, %v3790
        %v3792 = vrot.slane %v3471, 4
        %v3793 = vadd.f32 %v3471, %v3792
        %v3794 = vrot.slane %v3793, 2
        %v3795 = vadd.f32 %v3793, %v3794
        %v3796 = vrot.slane %v3795, 1
        %v3797 = vadd.f32 %v3795, %v3796
        %v3798 = vrot.slane %v3472, 4
        %v3799 = vadd.f32 %v3472, %v3798
        %v3800 = vrot.slane %v3799, 2
        %v3801 = vadd.f32 %v3799, %v3800
        %v3802 = vrot.slane %v3801, 1
        %v3803 = vadd.f32 %v3801, %v3802
        %v3804 = vrot.slane %v3473, 4
        %v3805 = vadd.f32 %v3473, %v3804
        %v3806 = vrot.slane %v3805, 2
        %v3807 = vadd.f32 %v3805, %v3806
        %v3808 = vrot.slane %v3807, 1
        %v3809 = vadd.f32 %v3807, %v3808
        %v3810 = vrot.slane %v3474, 4
        %v3811 = vadd.f32 %v3474, %v3810
        %v3812 = vrot.slane %v3811, 2
        %v3813 = vadd.f32 %v3811, %v3812
        %v3814 = vrot.slane %v3813, 1
        %v3815 = vadd.f32 %v3813, %v3814
        %v3816 = vrot.slane %v3475, 4
        %v3817 = vadd.f32 %v3475, %v3816
        %v3818 = vrot.slane %v3817, 2
        %v3819 = vadd.f32 %v3817, %v3818
        %v3820 = vrot.slane %v3819, 1
        %v3821 = vadd.f32 %v3819, %v3820
        %v3822 = vrot.slane %v3476, 4
        %v3823 = vadd.f32 %v3476, %v3822
        %v3824 = vrot.slane %v3823, 2
        %v3825 = vadd.f32 %v3823, %v3824
        %v3826 = vrot.slane %v3825, 1
        %v3827 = vadd.f32 %v3825, %v3826
        %v3828 = vrot.slane %v3477, 4
        %v3829 = vadd.f32 %v3477, %v3828
        %v3830 = vrot.slane %v3829, 2
        %v3831 = vadd.f32 %v3829, %v3830
        %v3832 = vrot.slane %v3831, 1
        %v3833 = vadd.f32 %v3831, %v3832
        %v3834 = vrot.slane %v3478, 4
        %v3835 = vadd.f32 %v3478, %v3834
        %v3836 = vrot.slane %v3835, 2
        %v3837 = vadd.f32 %v3835, %v3836
        %v3838 = vrot.slane %v3837, 1
        %v3839 = vadd.f32 %v3837, %v3838
        %v3840 = vrot.slane %v3479, 4
        %v3841 = vadd.f32 %v3479, %v3840
        %v3842 = vrot.slane %v3841, 2
        %v3843 = vadd.f32 %v3841, %v3842
        %v3844 = vrot.slane %v3843, 1
        %v3845 = vadd.f32 %v3843, %v3844
        %v3846 = vrot.slane %v3480, 4
        %v3847 = vadd.f32 %v3480, %v3846
        %v3848 = vrot.slane %v3847, 2
        %v3849 = vadd.f32 %v3847, %v3848
        %v3850 = vrot.slane %v3849, 1
        %v3851 = vadd.f32 %v3849, %v3850
        %v3852 = vrot.slane %v3481, 4
        %v3853 = vadd.f32 %v3481, %v3852
        %v3854 = vrot.slane %v3853, 2
        %v3855 = vadd.f32 %v3853, %v3854
        %v3856 = vrot.slane %v3855, 1
        %v3857 = vadd.f32 %v3855, %v3856
        %v3858 = vrot.slane %v3482, 4
        %v3859 = vadd.f32 %v3482, %v3858
        %v3860 = vrot.slane %v3859, 2
        %v3861 = vadd.f32 %v3859, %v3860
        %v3862 = vrot.slane %v3861, 1
        %v3863 = vadd.f32 %v3861, %v3862
        %v3864 = vrot.slane %v3483, 4
        %v3865 = vadd.f32 %v3483, %v3864
        %v3866 = vrot.slane %v3865, 2
        %v3867 = vadd.f32 %v3865, %v3866
        %v3868 = vrot.slane %v3867, 1
        %v3869 = vadd.f32 %v3867, %v3868
        %v3870 = vrot.slane %v3484, 4
        %v3871 = vadd.f32 %v3484, %v3870
        %v3872 = vrot.slane %v3871, 2
        %v3873 = vadd.f32 %v3871, %v3872
        %v3874 = vrot.slane %v3873, 1
        %v3875 = vadd.f32 %v3873, %v3874
        %v3876 = vrot.slane %v3485, 4
        %v3877 = vadd.f32 %v3485, %v3876
        %v3878 = vrot.slane %v3877, 2
        %v3879 = vadd.f32 %v3877, %v3878
        %v3880 = vrot.slane %v3879, 1
        %v3881 = vadd.f32 %v3879, %v3880
        %v3882 = vrot.slane %v3486, 4
        %v3883 = vadd.f32 %v3486, %v3882
        %v3884 = vrot.slane %v3883, 2
        %v3885 = vadd.f32 %v3883, %v3884
        %v3886 = vrot.slane %v3885, 1
        %v3887 = vadd.f32 %v3885, %v3886
        %v3888 = vrot.slane %v3487, 4
        %v3889 = vadd.f32 %v3487, %v3888
        %v3890 = vrot.slane %v3889, 2
        %v3891 = vadd.f32 %v3889, %v3890
        %v3892 = vrot.slane %v3891, 1
        %v3893 = vadd.f32 %v3891, %v3892
        %v3894 = vrot.slane %v3488, 4
        %v3895 = vadd.f32 %v3488, %v3894
        %v3896 = vrot.slane %v3895, 2
        %v3897 = vadd.f32 %v3895, %v3896
        %v3898 = vrot.slane %v3897, 1
        %v3899 = vadd.f32 %v3897, %v3898
        %v3900 = vrot.slane %v3489, 4
        %v3901 = vadd.f32 %v3489, %v3900
        %v3902 = vrot.slane %v3901, 2
        %v3903 = vadd.f32 %v3901, %v3902
        %v3904 = vrot.slane %v3903, 1
        %v3905 = vadd.f32 %v3903, %v3904
        %v3906 = vrot.slane %v3490, 4
        %v3907 = vadd.f32 %v3490, %v3906
        %v3908 = vrot.slane %v3907, 2
        %v3909 = vadd.f32 %v3907, %v3908
        %v3910 = vrot.slane %v3909, 1
        %v3911 = vadd.f32 %v3909, %v3910
        %v3912 = vrot.slane %v3491, 4
        %v3913 = vadd.f32 %v3491, %v3912
        %v3914 = vrot.slane %v3913, 2
        %v3915 = vadd.f32 %v3913, %v3914
        %v3916 = vrot.slane %v3915, 1
        %v3917 = vadd.f32 %v3915, %v3916
        %v3918 = vrot.slane %v3492, 4
        %v3919 = vadd.f32 %v3492, %v3918
        %v3920 = vrot.slane %v3919, 2
        %v3921 = vadd.f32 %v3919, %v3920
        %v3922 = vrot.slane %v3921, 1
        %v3923 = vadd.f32 %v3921, %v3922
        %v3924 = vrot.slane %v3493, 4
        %v3925 = vadd.f32 %v3493, %v3924
        %v3926 = vrot.slane %v3925, 2
        %v3927 = vadd.f32 %v3925, %v3926
        %v3928 = vrot.slane %v3927, 1
        %v3929 = vadd.f32 %v3927, %v3928
        %v3930 = vrot.slane %v3494, 4
        %v3931 = vadd.f32 %v3494, %v3930
        %v3932 = vrot.slane %v3931, 2
        %v3933 = vadd.f32 %v3931, %v3932
        %v3934 = vrot.slane %v3933, 1
        %v3935 = vadd.f32 %v3933, %v3934
        %v3936 = vrot.slane %v3495, 4
        %v3937 = vadd.f32 %v3495, %v3936
        %v3938 = vrot.slane %v3937, 2
        %v3939 = vadd.f32 %v3937, %v3938
        %v3940 = vrot.slane %v3939, 1
        %v3941 = vadd.f32 %v3939, %v3940
        %v3942 = vrot.slane %v3496, 4
        %v3943 = vadd.f32 %v3496, %v3942
        %v3944 = vrot.slane %v3943, 2
        %v3945 = vadd.f32 %v3943, %v3944
        %v3946 = vrot.slane %v3945, 1
        %v3947 = vadd.f32 %v3945, %v3946
        %v3948 = vrot.slane %v3497, 4
        %v3949 = vadd.f32 %v3497, %v3948
        %v3950 = vrot.slane %v3949, 2
        %v3951 = vadd.f32 %v3949, %v3950
        %v3952 = vrot.slane %v3951, 1
        %v3953 = vadd.f32 %v3951, %v3952
        %v3954 = vrot.slane %v3498, 4
        %v3955 = vadd.f32 %v3498, %v3954
        %v3956 = vrot.slane %v3955, 2
        %v3957 = vadd.f32 %v3955, %v3956
        %v3958 = vrot.slane %v3957, 1
        %v3959 = vadd.f32 %v3957, %v3958
        %v3960 = vrot.slane %v3499, 4
        %v3961 = vadd.f32 %v3499, %v3960
        %v3962 = vrot.slane %v3961, 2
        %v3963 = vadd.f32 %v3961, %v3962
        %v3964 = vrot.slane %v3963, 1
        %v3965 = vadd.f32 %v3963, %v3964
        %v3966 = vrot.slane %v3500, 4
        %v3967 = vadd.f32 %v3500, %v3966
        %v3968 = vrot.slane %v3967, 2
        %v3969 = vadd.f32 %v3967, %v3968
        %v3970 = vrot.slane %v3969, 1
        %v3971 = vadd.f32 %v3969, %v3970
        %v3972 = vrot.slane %v3501, 4
        %v3973 = vadd.f32 %v3501, %v3972
        %v3974 = vrot.slane %v3973, 2
        %v3975 = vadd.f32 %v3973, %v3974
        %v3976 = vrot.slane %v3975, 1
        %v3977 = vadd.f32 %v3975, %v3976
        %v3978 = vrot.slane %v3502, 4
        %v3979 = vadd.f32 %v3502, %v3978
        %v3980 = vrot.slane %v3979, 2
        %v3981 = vadd.f32 %v3979, %v3980
        %v3982 = vrot.slane %v3981, 1
        %v3983 = vadd.f32 %v3981, %v3982
        %v3984 = vrot.slane %v3503, 4
        %v3985 = vadd.f32 %v3503, %v3984
        %v3986 = vrot.slane %v3985, 2
        %v3987 = vadd.f32 %v3985, %v3986
        %v3988 = vrot.slane %v3987, 1
        %v3989 = vadd.f32 %v3987, %v3988
        %v3990 = vrot.slane %v3504, 4
        %v3991 = vadd.f32 %v3504, %v3990
        %v3992 = vrot.slane %v3991, 2
        %v3993 = vadd.f32 %v3991, %v3992
        %v3994 = vrot.slane %v3993, 1
        %v3995 = vadd.f32 %v3993, %v3994
        %v3996 = vrot.slane %v3505, 4
        %v3997 = vadd.f32 %v3505, %v3996
        %v3998 = vrot.slane %v3997, 2
        %v3999 = vadd.f32 %v3997, %v3998
        %v4000 = vrot.slane %v3999, 1
        %v4001 = vadd.f32 %v3999, %v4000
        %v4002 = vrot.slane %v3506, 4
        %v4003 = vadd.f32 %v3506, %v4002
        %v4004 = vrot.slane %v4003, 2
        %v4005 = vadd.f32 %v4003, %v4004
        %v4006 = vrot.slane %v4005, 1
        %v4007 = vadd.f32 %v4005, %v4006
        %v4008 = vrot.slane %v3507, 4
        %v4009 = vadd.f32 %v3507, %v4008
        %v4010 = vrot.slane %v4009, 2
        %v4011 = vadd.f32 %v4009, %v4010
        %v4012 = vrot.slane %v4011, 1
        %v4013 = vadd.f32 %v4011, %v4012
        %v4014 = vrot.slane %v3508, 4
        %v4015 = vadd.f32 %v3508, %v4014
        %v4016 = vrot.slane %v4015, 2
        %v4017 = vadd.f32 %v4015, %v4016
        %v4018 = vrot.slane %v4017, 1
        %v4019 = vadd.f32 %v4017, %v4018
        %v4020 = vrot.slane %v3509, 4
        %v4021 = vadd.f32 %v3509, %v4020
        %v4022 = vrot.slane %v4021, 2
        %v4023 = vadd.f32 %v4021, %v4022
        %v4024 = vrot.slane %v4023, 1
        %v4025 = vadd.f32 %v4023, %v4024
        %v4026 = vrot.slane %v3510, 4
        %v4027 = vadd.f32 %v3510, %v4026
        %v4028 = vrot.slane %v4027, 2
        %v4029 = vadd.f32 %v4027, %v4028
        %v4030 = vrot.slane %v4029, 1
        %v4031 = vadd.f32 %v4029, %v4030
        %v4032 = vrot.slane %v3511, 4
        %v4033 = vadd.f32 %v3511, %v4032
        %v4034 = vrot.slane %v4033, 2
        %v4035 = vadd.f32 %v4033, %v4034
        %v4036 = vrot.slane %v4035, 1
        %v4037 = vadd.f32 %v4035, %v4036
        %v4038 = vrot.slane %v3512, 4
        %v4039 = vadd.f32 %v3512, %v4038
        %v4040 = vrot.slane %v4039, 2
        %v4041 = vadd.f32 %v4039, %v4040
        %v4042 = vrot.slane %v4041, 1
        %v4043 = vadd.f32 %v4041, %v4042
        %v4044 = vrot.slane %v3513, 4
        %v4045 = vadd.f32 %v3513, %v4044
        %v4046 = vrot.slane %v4045, 2
        %v4047 = vadd.f32 %v4045, %v4046
        %v4048 = vrot.slane %v4047, 1
        %v4049 = vadd.f32 %v4047, %v4048
        %v4050 = vrot.slane %v3514, 4
        %v4051 = vadd.f32 %v3514, %v4050
        %v4052 = vrot.slane %v4051, 2
        %v4053 = vadd.f32 %v4051, %v4052
        %v4054 = vrot.slane %v4053, 1
        %v4055 = vadd.f32 %v4053, %v4054
        %v4056 = vrot.slane %v3515, 4
        %v4057 = vadd.f32 %v3515, %v4056
        %v4058 = vrot.slane %v4057, 2
        %v4059 = vadd.f32 %v4057, %v4058
        %v4060 = vrot.slane %v4059, 1
        %v4061 = vadd.f32 %v4059, %v4060
        %v4062 = vrot.slane %v3516, 4
        %v4063 = vadd.f32 %v3516, %v4062
        %v4064 = vrot.slane %v4063, 2
        %v4065 = vadd.f32 %v4063, %v4064
        %v4066 = vrot.slane %v4065, 1
        %v4067 = vadd.f32 %v4065, %v4066
        %v4068 = vrot.slane %v3517, 4
        %v4069 = vadd.f32 %v3517, %v4068
        %v4070 = vrot.slane %v4069, 2
        %v4071 = vadd.f32 %v4069, %v4070
        %v4072 = vrot.slane %v4071, 1
        %v4073 = vadd.f32 %v4071, %v4072
        %v4074 = vrot.slane %v3518, 4
        %v4075 = vadd.f32 %v3518, %v4074
        %v4076 = vrot.slane %v4075, 2
        %v4077 = vadd.f32 %v4075, %v4076
        %v4078 = vrot.slane %v4077, 1
        %v4079 = vadd.f32 %v4077, %v4078
        %v4080 = vrot.slane %v3519, 4
        %v4081 = vadd.f32 %v3519, %v4080
        %v4082 = vrot.slane %v4081, 2
        %v4083 = vadd.f32 %v4081, %v4082
        %v4084 = vrot.slane %v4083, 1
        %v4085 = vadd.f32 %v4083, %v4084
        %v4086 = vrot.slane %v3520, 4
        %v4087 = vadd.f32 %v3520, %v4086
        %v4088 = vrot.slane %v4087, 2
        %v4089 = vadd.f32 %v4087, %v4088
        %v4090 = vrot.slane %v4089, 1
        %v4091 = vadd.f32 %v4089, %v4090
        %v4092 = vrot.slane %v3521, 4
        %v4093 = vadd.f32 %v3521, %v4092
        %v4094 = vrot.slane %v4093, 2
        %v4095 = vadd.f32 %v4093, %v4094
        %v4096 = vrot.slane %v4095, 1
        %v4097 = vadd.f32 %v4095, %v4096
        %v4098 = vrot.slane %v3522, 4
        %v4099 = vadd.f32 %v3522, %v4098
        %v4100 = vrot.slane %v4099, 2
        %v4101 = vadd.f32 %v4099, %v4100
        %v4102 = vrot.slane %v4101, 1
        %v4103 = vadd.f32 %v4101, %v4102
        %v4104 = vrot.slane %v3523, 4
        %v4105 = vadd.f32 %v3523, %v4104
        %v4106 = vrot.slane %v4105, 2
        %v4107 = vadd.f32 %v4105, %v4106
        %v4108 = vrot.slane %v4107, 1
        %v4109 = vadd.f32 %v4107, %v4108
        %v4110 = vrot.slane %v3524, 4
        %v4111 = vadd.f32 %v3524, %v4110
        %v4112 = vrot.slane %v4111, 2
        %v4113 = vadd.f32 %v4111, %v4112
        %v4114 = vrot.slane %v4113, 1
        %v4115 = vadd.f32 %v4113, %v4114
        %v4116 = vrot.slane %v3525, 4
        %v4117 = vadd.f32 %v3525, %v4116
        %v4118 = vrot.slane %v4117, 2
        %v4119 = vadd.f32 %v4117, %v4118
        %v4120 = vrot.slane %v4119, 1
        %v4121 = vadd.f32 %v4119, %v4120
        %v4122 = vrot.slane %v3526, 4
        %v4123 = vadd.f32 %v3526, %v4122
        %v4124 = vrot.slane %v4123, 2
        %v4125 = vadd.f32 %v4123, %v4124
        %v4126 = vrot.slane %v4125, 1
        %v4127 = vadd.f32 %v4125, %v4126
        %v4128 = vrot.slane %v3527, 4
        %v4129 = vadd.f32 %v3527, %v4128
        %v4130 = vrot.slane %v4129, 2
        %v4131 = vadd.f32 %v4129, %v4130
        %v4132 = vrot.slane %v4131, 1
        %v4133 = vadd.f32 %v4131, %v4132
        %v4134 = vrot.slane %v3528, 4
        %v4135 = vadd.f32 %v3528, %v4134
        %v4136 = vrot.slane %v4135, 2
        %v4137 = vadd.f32 %v4135, %v4136
        %v4138 = vrot.slane %v4137, 1
        %v4139 = vadd.f32 %v4137, %v4138
        %v4140 = vrot.slane %v3529, 4
        %v4141 = vadd.f32 %v3529, %v4140
        %v4142 = vrot.slane %v4141, 2
        %v4143 = vadd.f32 %v4141, %v4142
        %v4144 = vrot.slane %v4143, 1
        %v4145 = vadd.f32 %v4143, %v4144
        %v4146 = vrot.slane %v3530, 4
        %v4147 = vadd.f32 %v3530, %v4146
        %v4148 = vrot.slane %v4147, 2
        %v4149 = vadd.f32 %v4147, %v4148
        %v4150 = vrot.slane %v4149, 1
        %v4151 = vadd.f32 %v4149, %v4150
        %v4152 = vrot.slane %v3531, 4
        %v4153 = vadd.f32 %v3531, %v4152
        %v4154 = vrot.slane %v4153, 2
        %v4155 = vadd.f32 %v4153, %v4154
        %v4156 = vrot.slane %v4155, 1
        %v4157 = vadd.f32 %v4155, %v4156
        %v4158 = vrot.slane %v3532, 4
        %v4159 = vadd.f32 %v3532, %v4158
        %v4160 = vrot.slane %v4159, 2
        %v4161 = vadd.f32 %v4159, %v4160
        %v4162 = vrot.slane %v4161, 1
        %v4163 = vadd.f32 %v4161, %v4162
        %v4164 = vrot.slane %v3533, 4
        %v4165 = vadd.f32 %v3533, %v4164
        %v4166 = vrot.slane %v4165, 2
        %v4167 = vadd.f32 %v4165, %v4166
        %v4168 = vrot.slane %v4167, 1
        %v4169 = vadd.f32 %v4167, %v4168
        %v4170 = vrot.slane %v3534, 4
        %v4171 = vadd.f32 %v3534, %v4170
        %v4172 = vrot.slane %v4171, 2
        %v4173 = vadd.f32 %v4171, %v4172
        %v4174 = vrot.slane %v4173, 1
        %v4175 = vadd.f32 %v4173, %v4174
        %v4176 = vrot.slane %v3535, 4
        %v4177 = vadd.f32 %v3535, %v4176
        %v4178 = vrot.slane %v4177, 2
        %v4179 = vadd.f32 %v4177, %v4178
        %v4180 = vrot.slane %v4179, 1
        %v4181 = vadd.f32 %v4179, %v4180
        %v4182 = vrot.slane %v3536, 4
        %v4183 = vadd.f32 %v3536, %v4182
        %v4184 = vrot.slane %v4183, 2
        %v4185 = vadd.f32 %v4183, %v4184
        %v4186 = vrot.slane %v4185, 1
        %v4187 = vadd.f32 %v4185, %v4186
        %v4188 = vrot.slane %v3537, 4
        %v4189 = vadd.f32 %v3537, %v4188
        %v4190 = vrot.slane %v4189, 2
        %v4191 = vadd.f32 %v4189, %v4190
        %v4192 = vrot.slane %v4191, 1
        %v4193 = vadd.f32 %v4191, %v4192
        %v4194 = vrot.slane %v3538, 4
        %v4195 = vadd.f32 %v3538, %v4194
        %v4196 = vrot.slane %v4195, 2
        %v4197 = vadd.f32 %v4195, %v4196
        %v4198 = vrot.slane %v4197, 1
        %v4199 = vadd.f32 %v4197, %v4198
        %v4200 = vrot.slane %v3539, 4
        %v4201 = vadd.f32 %v3539, %v4200
        %v4202 = vrot.slane %v4201, 2
        %v4203 = vadd.f32 %v4201, %v4202
        %v4204 = vrot.slane %v4203, 1
        %v4205 = vadd.f32 %v4203, %v4204
        %v4206 = vrot.slane %v3540, 4
        %v4207 = vadd.f32 %v3540, %v4206
        %v4208 = vrot.slane %v4207, 2
        %v4209 = vadd.f32 %v4207, %v4208
        %v4210 = vrot.slane %v4209, 1
        %v4211 = vadd.f32 %v4209, %v4210
        %v4212 = vrot.slane %v3541, 4
        %v4213 = vadd.f32 %v3541, %v4212
        %v4214 = vrot.slane %v4213, 2
        %v4215 = vadd.f32 %v4213, %v4214
        %v4216 = vrot.slane %v4215, 1
        %v4217 = vadd.f32 %v4215, %v4216
        %v4218 = vrot.slane %v3542, 4
        %v4219 = vadd.f32 %v3542, %v4218
        %v4220 = vrot.slane %v4219, 2
        %v4221 = vadd.f32 %v4219, %v4220
        %v4222 = vrot.slane %v4221, 1
        %v4223 = vadd.f32 %v4221, %v4222
        %v4224 = vrot.slane %v3543, 4
        %v4225 = vadd.f32 %v3543, %v4224
        %v4226 = vrot.slane %v4225, 2
        %v4227 = vadd.f32 %v4225, %v4226
        %v4228 = vrot.slane %v4227, 1
        %v4229 = vadd.f32 %v4227, %v4228
        %v4230 = vrot.slane %v3544, 4
        %v4231 = vadd.f32 %v3544, %v4230
        %v4232 = vrot.slane %v4231, 2
        %v4233 = vadd.f32 %v4231, %v4232
        %v4234 = vrot.slane %v4233, 1
        %v4235 = vadd.f32 %v4233, %v4234
        %v4236 = vrot.slane %v3545, 4
        %v4237 = vadd.f32 %v3545, %v4236
        %v4238 = vrot.slane %v4237, 2
        %v4239 = vadd.f32 %v4237, %v4238
        %v4240 = vrot.slane %v4239, 1
        %v4241 = vadd.f32 %v4239, %v4240
        %v4242 = vrot.slane %v3546, 4
        %v4243 = vadd.f32 %v3546, %v4242
        %v4244 = vrot.slane %v4243, 2
        %v4245 = vadd.f32 %v4243, %v4244
        %v4246 = vrot.slane %v4245, 1
        %v4247 = vadd.f32 %v4245, %v4246
        %v4248 = vrot.slane %v3547, 4
        %v4249 = vadd.f32 %v3547, %v4248
        %v4250 = vrot.slane %v4249, 2
        %v4251 = vadd.f32 %v4249, %v4250
        %v4252 = vrot.slane %v4251, 1
        %v4253 = vadd.f32 %v4251, %v4252
        %v4254 = vrot.slane %v3548, 4
        %v4255 = vadd.f32 %v3548, %v4254
        %v4256 = vrot.slane %v4255, 2
        %v4257 = vadd.f32 %v4255, %v4256
        %v4258 = vrot.slane %v4257, 1
        %v4259 = vadd.f32 %v4257, %v4258
        %v4260 = vrot.slane %v3549, 4
        %v4261 = vadd.f32 %v3549, %v4260
        %v4262 = vrot.slane %v4261, 2
        %v4263 = vadd.f32 %v4261, %v4262
        %v4264 = vrot.slane %v4263, 1
        %v4265 = vadd.f32 %v4263, %v4264
        %v4266 = vrot.slane %v3550, 4
        %v4267 = vadd.f32 %v3550, %v4266
        %v4268 = vrot.slane %v4267, 2
        %v4269 = vadd.f32 %v4267, %v4268
        %v4270 = vrot.slane %v4269, 1
        %v4271 = vadd.f32 %v4269, %v4270
        %v4272 = vrot.slane %v3551, 4
        %v4273 = vadd.f32 %v3551, %v4272
        %v4274 = vrot.slane %v4273, 2
        %v4275 = vadd.f32 %v4273, %v4274
        %v4276 = vrot.slane %v4275, 1
        %v4277 = vadd.f32 %v4275, %v4276
        %v4278 = vrot.slane %v3552, 4
        %v4279 = vadd.f32 %v3552, %v4278
        %v4280 = vrot.slane %v4279, 2
        %v4281 = vadd.f32 %v4279, %v4280
        %v4282 = vrot.slane %v4281, 1
        %v4283 = vadd.f32 %v4281, %v4282
        %v4284 = vrot.slane %v3553, 4
        %v4285 = vadd.f32 %v3553, %v4284
        %v4286 = vrot.slane %v4285, 2
        %v4287 = vadd.f32 %v4285, %v4286
        %v4288 = vrot.slane %v4287, 1
        %v4289 = vadd.f32 %v4287, %v4288
        %v4290 = vrot.slane %v3554, 4
        %v4291 = vadd.f32 %v3554, %v4290
        %v4292 = vrot.slane %v4291, 2
        %v4293 = vadd.f32 %v4291, %v4292
        %v4294 = vrot.slane %v4293, 1
        %v4295 = vadd.f32 %v4293, %v4294
        %v4296 = vrot.slane %v3555, 4
        %v4297 = vadd.f32 %v3555, %v4296
        %v4298 = vrot.slane %v4297, 2
        %v4299 = vadd.f32 %v4297, %v4298
        %v4300 = vrot.slane %v4299, 1
        %v4301 = vadd.f32 %v4299, %v4300
        %v4302 = vrot.slane %v3556, 4
        %v4303 = vadd.f32 %v3556, %v4302
        %v4304 = vrot.slane %v4303, 2
        %v4305 = vadd.f32 %v4303, %v4304
        %v4306 = vrot.slane %v4305, 1
        %v4307 = vadd.f32 %v4305, %v4306
        %v4308 = vrot.slane %v3557, 4
        %v4309 = vadd.f32 %v3557, %v4308
        %v4310 = vrot.slane %v4309, 2
        %v4311 = vadd.f32 %v4309, %v4310
        %v4312 = vrot.slane %v4311, 1
        %v4313 = vadd.f32 %v4311, %v4312
        %v4314 = vrot.slane %v3558, 4
        %v4315 = vadd.f32 %v3558, %v4314
        %v4316 = vrot.slane %v4315, 2
        %v4317 = vadd.f32 %v4315, %v4316
        %v4318 = vrot.slane %v4317, 1
        %v4319 = vadd.f32 %v4317, %v4318
        %v4320 = vrot.slane %v3559, 4
        %v4321 = vadd.f32 %v3559, %v4320
        %v4322 = vrot.slane %v4321, 2
        %v4323 = vadd.f32 %v4321, %v4322
        %v4324 = vrot.slane %v4323, 1
        %v4325 = vadd.f32 %v4323, %v4324
        %v4326 = vrot.slane %v3560, 4
        %v4327 = vadd.f32 %v3560, %v4326
        %v4328 = vrot.slane %v4327, 2
        %v4329 = vadd.f32 %v4327, %v4328
        %v4330 = vrot.slane %v4329, 1
        %v4331 = vadd.f32 %v4329, %v4330
        %v4332 = vrot.slane %v3561, 4
        %v4333 = vadd.f32 %v3561, %v4332
        %v4334 = vrot.slane %v4333, 2
        %v4335 = vadd.f32 %v4333, %v4334
        %v4336 = vrot.slane %v4335, 1
        %v4337 = vadd.f32 %v4335, %v4336
        %v4338 = vrot.slane %v3562, 4
        %v4339 = vadd.f32 %v3562, %v4338
        %v4340 = vrot.slane %v4339, 2
        %v4341 = vadd.f32 %v4339, %v4340
        %v4342 = vrot.slane %v4341, 1
        %v4343 = vadd.f32 %v4341, %v4342
        %v4344 = vrot.slane %v3563, 4
        %v4345 = vadd.f32 %v3563, %v4344
        %v4346 = vrot.slane %v4345, 2
        %v4347 = vadd.f32 %v4345, %v4346
        %v4348 = vrot.slane %v4347, 1
        %v4349 = vadd.f32 %v4347, %v4348
        %v4350 = vrot.slane %v3564, 4
        %v4351 = vadd.f32 %v3564, %v4350
        %v4352 = vrot.slane %v4351, 2
        %v4353 = vadd.f32 %v4351, %v4352
        %v4354 = vrot.slane %v4353, 1
        %v4355 = vadd.f32 %v4353, %v4354
        %v4356 = vrot.slane %v3565, 4
        %v4357 = vadd.f32 %v3565, %v4356
        %v4358 = vrot.slane %v4357, 2
        %v4359 = vadd.f32 %v4357, %v4358
        %v4360 = vrot.slane %v4359, 1
        %v4361 = vadd.f32 %v4359, %v4360
        %v4362 = vrot.slane %v3566, 4
        %v4363 = vadd.f32 %v3566, %v4362
        %v4364 = vrot.slane %v4363, 2
        %v4365 = vadd.f32 %v4363, %v4364
        %v4366 = vrot.slane %v4365, 1
        %v4367 = vadd.f32 %v4365, %v4366
        %v4368 = vrot.slane %v3567, 4
        %v4369 = vadd.f32 %v3567, %v4368
        %v4370 = vrot.slane %v4369, 2
        %v4371 = vadd.f32 %v4369, %v4370
        %v4372 = vrot.slane %v4371, 1
        %v4373 = vadd.f32 %v4371, %v4372
        %v4374 = vrot.slane %v3568, 4
        %v4375 = vadd.f32 %v3568, %v4374
        %v4376 = vrot.slane %v4375, 2
        %v4377 = vadd.f32 %v4375, %v4376
        %v4378 = vrot.slane %v4377, 1
        %v4379 = vadd.f32 %v4377, %v4378
        %v4380 = vrot.slane %v3569, 4
        %v4381 = vadd.f32 %v3569, %v4380
        %v4382 = vrot.slane %v4381, 2
        %v4383 = vadd.f32 %v4381, %v4382
        %v4384 = vrot.slane %v4383, 1
        %v4385 = vadd.f32 %v4383, %v4384
        %v4386 = vrot.slane %v3570, 4
        %v4387 = vadd.f32 %v3570, %v4386
        %v4388 = vrot.slane %v4387, 2
        %v4389 = vadd.f32 %v4387, %v4388
        %v4390 = vrot.slane %v4389, 1
        %v4391 = vadd.f32 %v4389, %v4390
        %v4392 = vrot.slane %v3571, 4
        %v4393 = vadd.f32 %v3571, %v4392
        %v4394 = vrot.slane %v4393, 2
        %v4395 = vadd.f32 %v4393, %v4394
        %v4396 = vrot.slane %v4395, 1
        %v4397 = vadd.f32 %v4395, %v4396
        %v4398 = vrot.slane %v3572, 4
        %v4399 = vadd.f32 %v3572, %v4398
        %v4400 = vrot.slane %v4399, 2
        %v4401 = vadd.f32 %v4399, %v4400
        %v4402 = vrot.slane %v4401, 1
        %v4403 = vadd.f32 %v4401, %v4402
        %v4404 = vrot.slane %v3573, 4
        %v4405 = vadd.f32 %v3573, %v4404
        %v4406 = vrot.slane %v4405, 2
        %v4407 = vadd.f32 %v4405, %v4406
        %v4408 = vrot.slane %v4407, 1
        %v4409 = vadd.f32 %v4407, %v4408
        %v4410 = vrot.slane %v3574, 4
        %v4411 = vadd.f32 %v3574, %v4410
        %v4412 = vrot.slane %v4411, 2
        %v4413 = vadd.f32 %v4411, %v4412
        %v4414 = vrot.slane %v4413, 1
        %v4415 = vadd.f32 %v4413, %v4414
        %v4416 = vrot.slane %v3575, 4
        %v4417 = vadd.f32 %v3575, %v4416
        %v4418 = vrot.slane %v4417, 2
        %v4419 = vadd.f32 %v4417, %v4418
        %v4420 = vrot.slane %v4419, 1
        %v4421 = vadd.f32 %v4419, %v4420
        %v4422 = vrot.slane %v3576, 4
        %v4423 = vadd.f32 %v3576, %v4422
        %v4424 = vrot.slane %v4423, 2
        %v4425 = vadd.f32 %v4423, %v4424
        %v4426 = vrot.slane %v4425, 1
        %v4427 = vadd.f32 %v4425, %v4426
        %v4428 = vrot.slane %v3577, 4
        %v4429 = vadd.f32 %v3577, %v4428
        %v4430 = vrot.slane %v4429, 2
        %v4431 = vadd.f32 %v4429, %v4430
        %v4432 = vrot.slane %v4431, 1
        %v4433 = vadd.f32 %v4431, %v4432
        %v4434 = vrot.slane %v3578, 4
        %v4435 = vadd.f32 %v3578, %v4434
        %v4436 = vrot.slane %v4435, 2
        %v4437 = vadd.f32 %v4435, %v4436
        %v4438 = vrot.slane %v4437, 1
        %v4439 = vadd.f32 %v4437, %v4438
        %v4440 = vrot.slane %v3579, 4
        %v4441 = vadd.f32 %v3579, %v4440
        %v4442 = vrot.slane %v4441, 2
        %v4443 = vadd.f32 %v4441, %v4442
        %v4444 = vrot.slane %v4443, 1
        %v4445 = vadd.f32 %v4443, %v4444
        %v4446 = vrot.slane %v3580, 4
        %v4447 = vadd.f32 %v3580, %v4446
        %v4448 = vrot.slane %v4447, 2
        %v4449 = vadd.f32 %v4447, %v4448
        %v4450 = vrot.slane %v4449, 1
        %v4451 = vadd.f32 %v4449, %v4450
        %v4452 = vrot.slane %v3581, 4
        %v4453 = vadd.f32 %v3581, %v4452
        %v4454 = vrot.slane %v4453, 2
        %v4455 = vadd.f32 %v4453, %v4454
        %v4456 = vrot.slane %v4455, 1
        %v4457 = vadd.f32 %v4455, %v4456
        %v4458 = vrot.slane %v3582, 4
        %v4459 = vadd.f32 %v3582, %v4458
        %v4460 = vrot.slane %v4459, 2
        %v4461 = vadd.f32 %v4459, %v4460
        %v4462 = vrot.slane %v4461, 1
        %v4463 = vadd.f32 %v4461, %v4462
        %v4464 = vrot.slane %v3583, 4
        %v4465 = vadd.f32 %v3583, %v4464
        %v4466 = vrot.slane %v4465, 2
        %v4467 = vadd.f32 %v4465, %v4466
        %v4468 = vrot.slane %v4467, 1
        %v4469 = vadd.f32 %v4467, %v4468
        %v4470 = vrot.slane %v3584, 4
        %v4471 = vadd.f32 %v3584, %v4470
        %v4472 = vrot.slane %v4471, 2
        %v4473 = vadd.f32 %v4471, %v4472
        %v4474 = vrot.slane %v4473, 1
        %v4475 = vadd.f32 %v4473, %v4474
        %v4476 = vrot.slane %v3585, 4
        %v4477 = vadd.f32 %v3585, %v4476
        %v4478 = vrot.slane %v4477, 2
        %v4479 = vadd.f32 %v4477, %v4478
        %v4480 = vrot.slane %v4479, 1
        %v4481 = vadd.f32 %v4479, %v4480
        %v4482 = vrot.slane %v3586, 4
        %v4483 = vadd.f32 %v3586, %v4482
        %v4484 = vrot.slane %v4483, 2
        %v4485 = vadd.f32 %v4483, %v4484
        %v4486 = vrot.slane %v4485, 1
        %v4487 = vadd.f32 %v4485, %v4486
        %v4488 = vrot.slane %v3587, 4
        %v4489 = vadd.f32 %v3587, %v4488
        %v4490 = vrot.slane %v4489, 2
        %v4491 = vadd.f32 %v4489, %v4490
        %v4492 = vrot.slane %v4491, 1
        %v4493 = vadd.f32 %v4491, %v4492
        %v4494 = vrot.slane %v3588, 4
        %v4495 = vadd.f32 %v3588, %v4494
        %v4496 = vrot.slane %v4495, 2
        %v4497 = vadd.f32 %v4495, %v4496
        %v4498 = vrot.slane %v4497, 1
        %v4499 = vadd.f32 %v4497, %v4498
        %v4500 = vrot.slane %v3589, 4
        %v4501 = vadd.f32 %v3589, %v4500
        %v4502 = vrot.slane %v4501, 2
        %v4503 = vadd.f32 %v4501, %v4502
        %v4504 = vrot.slane %v4503, 1
        %v4505 = vadd.f32 %v4503, %v4504
        %v4506 = vrot.slane %v3590, 4
        %v4507 = vadd.f32 %v3590, %v4506
        %v4508 = vrot.slane %v4507, 2
        %v4509 = vadd.f32 %v4507, %v4508
        %v4510 = vrot.slane %v4509, 1
        %v4511 = vadd.f32 %v4509, %v4510
        %v4512 = vrot.slane %v3591, 4
        %v4513 = vadd.f32 %v3591, %v4512
        %v4514 = vrot.slane %v4513, 2
        %v4515 = vadd.f32 %v4513, %v4514
        %v4516 = vrot.slane %v4515, 1
        %v4517 = vadd.f32 %v4515, %v4516
        %v4518 = vrot.slane %v3592, 4
        %v4519 = vadd.f32 %v3592, %v4518
        %v4520 = vrot.slane %v4519, 2
        %v4521 = vadd.f32 %v4519, %v4520
        %v4522 = vrot.slane %v4521, 1
        %v4523 = vadd.f32 %v4521, %v4522
        %v4524 = vrot.slane %v3593, 4
        %v4525 = vadd.f32 %v3593, %v4524
        %v4526 = vrot.slane %v4525, 2
        %v4527 = vadd.f32 %v4525, %v4526
        %v4528 = vrot.slane %v4527, 1
        %v4529 = vadd.f32 %v4527, %v4528
        %v4530 = vrot.slane %v3594, 4
        %v4531 = vadd.f32 %v3594, %v4530
        %v4532 = vrot.slane %v4531, 2
        %v4533 = vadd.f32 %v4531, %v4532
        %v4534 = vrot.slane %v4533, 1
        %v4535 = vadd.f32 %v4533, %v4534
        %v4536 = vrot.slane %v3595, 4
        %v4537 = vadd.f32 %v3595, %v4536
        %v4538 = vrot.slane %v4537, 2
        %v4539 = vadd.f32 %v4537, %v4538
        %v4540 = vrot.slane %v4539, 1
        %v4541 = vadd.f32 %v4539, %v4540
        %v4542 = vrot.slane %v3596, 4
        %v4543 = vadd.f32 %v3596, %v4542
        %v4544 = vrot.slane %v4543, 2
        %v4545 = vadd.f32 %v4543, %v4544
        %v4546 = vrot.slane %v4545, 1
        %v4547 = vadd.f32 %v4545, %v4546
        %v4548 = vrot.slane %v3597, 4
        %v4549 = vadd.f32 %v3597, %v4548
        %v4550 = vrot.slane %v4549, 2
        %v4551 = vadd.f32 %v4549, %v4550
        %v4552 = vrot.slane %v4551, 1
        %v4553 = vadd.f32 %v4551, %v4552
        %v4554 = vrot.slane %v3598, 4
        %v4555 = vadd.f32 %v3598, %v4554
        %v4556 = vrot.slane %v4555, 2
        %v4557 = vadd.f32 %v4555, %v4556
        %v4558 = vrot.slane %v4557, 1
        %v4559 = vadd.f32 %v4557, %v4558
        %v4560 = vrot.slane %v3599, 4
        %v4561 = vadd.f32 %v3599, %v4560
        %v4562 = vrot.slane %v4561, 2
        %v4563 = vadd.f32 %v4561, %v4562
        %v4564 = vrot.slane %v4563, 1
        %v4565 = vadd.f32 %v4563, %v4564
        %v4566 = vrot.slane %v3600, 4
        %v4567 = vadd.f32 %v3600, %v4566
        %v4568 = vrot.slane %v4567, 2
        %v4569 = vadd.f32 %v4567, %v4568
        %v4570 = vrot.slane %v4569, 1
        %v4571 = vadd.f32 %v4569, %v4570
        %v4572 = vrot.slane %v3601, 4
        %v4573 = vadd.f32 %v3601, %v4572
        %v4574 = vrot.slane %v4573, 2
        %v4575 = vadd.f32 %v4573, %v4574
        %v4576 = vrot.slane %v4575, 1
        %v4577 = vadd.f32 %v4575, %v4576
        %v4578 = vrot.slane %v3602, 4
        %v4579 = vadd.f32 %v3602, %v4578
        %v4580 = vrot.slane %v4579, 2
        %v4581 = vadd.f32 %v4579, %v4580
        %v4582 = vrot.slane %v4581, 1
        %v4583 = vadd.f32 %v4581, %v4582
        %v4584 = vrot.slane %v3603, 4
        %v4585 = vadd.f32 %v3603, %v4584
        %v4586 = vrot.slane %v4585, 2
        %v4587 = vadd.f32 %v4585, %v4586
        %v4588 = vrot.slane %v4587, 1
        %v4589 = vadd.f32 %v4587, %v4588
        %v4590 = vrot.slane %v3604, 4
        %v4591 = vadd.f32 %v3604, %v4590
        %v4592 = vrot.slane %v4591, 2
        %v4593 = vadd.f32 %v4591, %v4592
        %v4594 = vrot.slane %v4593, 1
        %v4595 = vadd.f32 %v4593, %v4594
        %v4596 = vrot.slane %v3605, 4
        %v4597 = vadd.f32 %v3605, %v4596
        %v4598 = vrot.slane %v4597, 2
        %v4599 = vadd.f32 %v4597, %v4598
        %v4600 = vrot.slane %v4599, 1
        %v4601 = vadd.f32 %v4599, %v4600
        %v4602 = vrot.slane %v3606, 4
        %v4603 = vadd.f32 %v3606, %v4602
        %v4604 = vrot.slane %v4603, 2
        %v4605 = vadd.f32 %v4603, %v4604
        %v4606 = vrot.slane %v4605, 1
        %v4607 = vadd.f32 %v4605, %v4606
        %v4608 = vrot.slane %v3607, 4
        %v4609 = vadd.f32 %v3607, %v4608
        %v4610 = vrot.slane %v4609, 2
        %v4611 = vadd.f32 %v4609, %v4610
        %v4612 = vrot.slane %v4611, 1
        %v4613 = vadd.f32 %v4611, %v4612
        %v4614 = vrot.slane %v3608, 4
        %v4615 = vadd.f32 %v3608, %v4614
        %v4616 = vrot.slane %v4615, 2
        %v4617 = vadd.f32 %v4615, %v4616
        %v4618 = vrot.slane %v4617, 1
        %v4619 = vadd.f32 %v4617, %v4618
        %v4620 = vrot.slane %v3609, 4
        %v4621 = vadd.f32 %v3609, %v4620
        %v4622 = vrot.slane %v4621, 2
        %v4623 = vadd.f32 %v4621, %v4622
        %v4624 = vrot.slane %v4623, 1
        %v4625 = vadd.f32 %v4623, %v4624
        %v4626 = vrot.slane %v3610, 4
        %v4627 = vadd.f32 %v3610, %v4626
        %v4628 = vrot.slane %v4627, 2
        %v4629 = vadd.f32 %v4627, %v4628
        %v4630 = vrot.slane %v4629, 1
        %v4631 = vadd.f32 %v4629, %v4630
        %v4632 = vrot.slane %v3611, 4
        %v4633 = vadd.f32 %v3611, %v4632
        %v4634 = vrot.slane %v4633, 2
        %v4635 = vadd.f32 %v4633, %v4634
        %v4636 = vrot.slane %v4635, 1
        %v4637 = vadd.f32 %v4635, %v4636
        %v4638 = vrot.slane %v3612, 4
        %v4639 = vadd.f32 %v3612, %v4638
        %v4640 = vrot.slane %v4639, 2
        %v4641 = vadd.f32 %v4639, %v4640
        %v4642 = vrot.slane %v4641, 1
        %v4643 = vadd.f32 %v4641, %v4642
        %v4644 = vrot.slane %v3613, 4
        %v4645 = vadd.f32 %v3613, %v4644
        %v4646 = vrot.slane %v4645, 2
        %v4647 = vadd.f32 %v4645, %v4646
        %v4648 = vrot.slane %v4647, 1
        %v4649 = vadd.f32 %v4647, %v4648
        %v4650 = vrot.slane %v3614, 4
        %v4651 = vadd.f32 %v3614, %v4650
        %v4652 = vrot.slane %v4651, 2
        %v4653 = vadd.f32 %v4651, %v4652
        %v4654 = vrot.slane %v4653, 1
        %v4655 = vadd.f32 %v4653, %v4654
        %v4656 = vrot.slane %v3615, 4
        %v4657 = vadd.f32 %v3615, %v4656
        %v4658 = vrot.slane %v4657, 2
        %v4659 = vadd.f32 %v4657, %v4658
        %v4660 = vrot.slane %v4659, 1
        %v4661 = vadd.f32 %v4659, %v4660
        %v4662 = vrot.slane %v3616, 4
        %v4663 = vadd.f32 %v3616, %v4662
        %v4664 = vrot.slane %v4663, 2
        %v4665 = vadd.f32 %v4663, %v4664
        %v4666 = vrot.slane %v4665, 1
        %v4667 = vadd.f32 %v4665, %v4666
        %v4668 = vrot.slane %v3617, 4
        %v4669 = vadd.f32 %v3617, %v4668
        %v4670 = vrot.slane %v4669, 2
        %v4671 = vadd.f32 %v4669, %v4670
        %v4672 = vrot.slane %v4671, 1
        %v4673 = vadd.f32 %v4671, %v4672
        %v4674 = vrot.slane %v3618, 4
        %v4675 = vadd.f32 %v3618, %v4674
        %v4676 = vrot.slane %v4675, 2
        %v4677 = vadd.f32 %v4675, %v4676
        %v4678 = vrot.slane %v4677, 1
        %v4679 = vadd.f32 %v4677, %v4678
        %v4680 = vrot.slane %v3619, 4
        %v4681 = vadd.f32 %v3619, %v4680
        %v4682 = vrot.slane %v4681, 2
        %v4683 = vadd.f32 %v4681, %v4682
        %v4684 = vrot.slane %v4683, 1
        %v4685 = vadd.f32 %v4683, %v4684
        %v4686 = vrot.slane %v3620, 4
        %v4687 = vadd.f32 %v3620, %v4686
        %v4688 = vrot.slane %v4687, 2
        %v4689 = vadd.f32 %v4687, %v4688
        %v4690 = vrot.slane %v4689, 1
        %v4691 = vadd.f32 %v4689, %v4690
        %v4692 = vrot.slane %v3621, 4
        %v4693 = vadd.f32 %v3621, %v4692
        %v4694 = vrot.slane %v4693, 2
        %v4695 = vadd.f32 %v4693, %v4694
        %v4696 = vrot.slane %v4695, 1
        %v4697 = vadd.f32 %v4695, %v4696
        %v4698 = vrot.slane %v3622, 4
        %v4699 = vadd.f32 %v3622, %v4698
        %v4700 = vrot.slane %v4699, 2
        %v4701 = vadd.f32 %v4699, %v4700
        %v4702 = vrot.slane %v4701, 1
        %v4703 = vadd.f32 %v4701, %v4702
        %v4704 = vrot.slane %v3623, 4
        %v4705 = vadd.f32 %v3623, %v4704
        %v4706 = vrot.slane %v4705, 2
        %v4707 = vadd.f32 %v4705, %v4706
        %v4708 = vrot.slane %v4707, 1
        %v4709 = vadd.f32 %v4707, %v4708
        %v4710 = vrot.slane %v3624, 4
        %v4711 = vadd.f32 %v3624, %v4710
        %v4712 = vrot.slane %v4711, 2
        %v4713 = vadd.f32 %v4711, %v4712
        %v4714 = vrot.slane %v4713, 1
        %v4715 = vadd.f32 %v4713, %v4714
        %v4716 = vrot.slane %v3625, 4
        %v4717 = vadd.f32 %v3625, %v4716
        %v4718 = vrot.slane %v4717, 2
        %v4719 = vadd.f32 %v4717, %v4718
        %v4720 = vrot.slane %v4719, 1
        %v4721 = vadd.f32 %v4719, %v4720
        %v4722 = vrot.slane %v3626, 4
        %v4723 = vadd.f32 %v3626, %v4722
        %v4724 = vrot.slane %v4723, 2
        %v4725 = vadd.f32 %v4723, %v4724
        %v4726 = vrot.slane %v4725, 1
        %v4727 = vadd.f32 %v4725, %v4726
        %v4728 = vrot.slane %v3627, 4
        %v4729 = vadd.f32 %v3627, %v4728
        %v4730 = vrot.slane %v4729, 2
        %v4731 = vadd.f32 %v4729, %v4730
        %v4732 = vrot.slane %v4731, 1
        %v4733 = vadd.f32 %v4731, %v4732
        %v4734 = vrot.slane %v3628, 4
        %v4735 = vadd.f32 %v3628, %v4734
        %v4736 = vrot.slane %v4735, 2
        %v4737 = vadd.f32 %v4735, %v4736
        %v4738 = vrot.slane %v4737, 1
        %v4739 = vadd.f32 %v4737, %v4738
        %v4740 = vrot.slane %v3629, 4
        %v4741 = vadd.f32 %v3629, %v4740
        %v4742 = vrot.slane %v4741, 2
        %v4743 = vadd.f32 %v4741, %v4742
        %v4744 = vrot.slane %v4743, 1
        %v4745 = vadd.f32 %v4743, %v4744
        %v4746 = vrot.slane %v3630, 4
        %v4747 = vadd.f32 %v3630, %v4746
        %v4748 = vrot.slane %v4747, 2
        %v4749 = vadd.f32 %v4747, %v4748
        %v4750 = vrot.slane %v4749, 1
        %v4751 = vadd.f32 %v4749, %v4750
        %v4752 = vrot.slane %v3631, 4
        %v4753 = vadd.f32 %v3631, %v4752
        %v4754 = vrot.slane %v4753, 2
        %v4755 = vadd.f32 %v4753, %v4754
        %v4756 = vrot.slane %v4755, 1
        %v4757 = vadd.f32 %v4755, %v4756
        %v4758 = vrot.slane %v3632, 4
        %v4759 = vadd.f32 %v3632, %v4758
        %v4760 = vrot.slane %v4759, 2
        %v4761 = vadd.f32 %v4759, %v4760
        %v4762 = vrot.slane %v4761, 1
        %v4763 = vadd.f32 %v4761, %v4762
        %v4764 = vrot.slane %v3633, 4
        %v4765 = vadd.f32 %v3633, %v4764
        %v4766 = vrot.slane %v4765, 2
        %v4767 = vadd.f32 %v4765, %v4766
        %v4768 = vrot.slane %v4767, 1
        %v4769 = vadd.f32 %v4767, %v4768
        %v4770 = vrot.slane %v3634, 4
        %v4771 = vadd.f32 %v3634, %v4770
        %v4772 = vrot.slane %v4771, 2
        %v4773 = vadd.f32 %v4771, %v4772
        %v4774 = vrot.slane %v4773, 1
        %v4775 = vadd.f32 %v4773, %v4774
        %v4776 = vrot.slane %v3635, 4
        %v4777 = vadd.f32 %v3635, %v4776
        %v4778 = vrot.slane %v4777, 2
        %v4779 = vadd.f32 %v4777, %v4778
        %v4780 = vrot.slane %v4779, 1
        %v4781 = vadd.f32 %v4779, %v4780
        %v4782 = vrot.slane %v3636, 4
        %v4783 = vadd.f32 %v3636, %v4782
        %v4784 = vrot.slane %v4783, 2
        %v4785 = vadd.f32 %v4783, %v4784
        %v4786 = vrot.slane %v4785, 1
        %v4787 = vadd.f32 %v4785, %v4786
        %v4788 = vrot.slane %v3637, 4
        %v4789 = vadd.f32 %v3637, %v4788
        %v4790 = vrot.slane %v4789, 2
        %v4791 = vadd.f32 %v4789, %v4790
        %v4792 = vrot.slane %v4791, 1
        %v4793 = vadd.f32 %v4791, %v4792
        %v4794 = vrot.slane %v3638, 4
        %v4795 = vadd.f32 %v3638, %v4794
        %v4796 = vrot.slane %v4795, 2
        %v4797 = vadd.f32 %v4795, %v4796
        %v4798 = vrot.slane %v4797, 1
        %v4799 = vadd.f32 %v4797, %v4798
        %v4800 = vrot.slane %v3639, 4
        %v4801 = vadd.f32 %v3639, %v4800
        %v4802 = vrot.slane %v4801, 2
        %v4803 = vadd.f32 %v4801, %v4802
        %v4804 = vrot.slane %v4803, 1
        %v4805 = vadd.f32 %v4803, %v4804
        %v4806 = vrot.slane %v3640, 4
        %v4807 = vadd.f32 %v3640, %v4806
        %v4808 = vrot.slane %v4807, 2
        %v4809 = vadd.f32 %v4807, %v4808
        %v4810 = vrot.slane %v4809, 1
        %v4811 = vadd.f32 %v4809, %v4810
        %v4812 = vrot.slane %v3641, 4
        %v4813 = vadd.f32 %v3641, %v4812
        %v4814 = vrot.slane %v4813, 2
        %v4815 = vadd.f32 %v4813, %v4814
        %v4816 = vrot.slane %v4815, 1
        %v4817 = vadd.f32 %v4815, %v4816
        %v4818 = vrot.slane %v3642, 4
        %v4819 = vadd.f32 %v3642, %v4818
        %v4820 = vrot.slane %v4819, 2
        %v4821 = vadd.f32 %v4819, %v4820
        %v4822 = vrot.slane %v4821, 1
        %v4823 = vadd.f32 %v4821, %v4822
        %v4824 = vrot.slane %v3643, 4
        %v4825 = vadd.f32 %v3643, %v4824
        %v4826 = vrot.slane %v4825, 2
        %v4827 = vadd.f32 %v4825, %v4826
        %v4828 = vrot.slane %v4827, 1
        %v4829 = vadd.f32 %v4827, %v4828
        %v4830 = vrot.slane %v3644, 4
        %v4831 = vadd.f32 %v3644, %v4830
        %v4832 = vrot.slane %v4831, 2
        %v4833 = vadd.f32 %v4831, %v4832
        %v4834 = vrot.slane %v4833, 1
        %v4835 = vadd.f32 %v4833, %v4834
        %v4836 = vrot.slane %v3645, 4
        %v4837 = vadd.f32 %v3645, %v4836
        %v4838 = vrot.slane %v4837, 2
        %v4839 = vadd.f32 %v4837, %v4838
        %v4840 = vrot.slane %v4839, 1
        %v4841 = vadd.f32 %v4839, %v4840
        %v4842 = vrot.slane %v3646, 4
        %v4843 = vadd.f32 %v3646, %v4842
        %v4844 = vrot.slane %v4843, 2
        %v4845 = vadd.f32 %v4843, %v4844
        %v4846 = vrot.slane %v4845, 1
        %v4847 = vadd.f32 %v4845, %v4846
        %v4848 = vrot.slane %v3647, 4
        %v4849 = vadd.f32 %v3647, %v4848
        %v4850 = vrot.slane %v4849, 2
        %v4851 = vadd.f32 %v4849, %v4850
        %v4852 = vrot.slane %v4851, 1
        %v4853 = vadd.f32 %v4851, %v4852
        %v4854 = vrot.slane %v3648, 4
        %v4855 = vadd.f32 %v3648, %v4854
        %v4856 = vrot.slane %v4855, 2
        %v4857 = vadd.f32 %v4855, %v4856
        %v4858 = vrot.slane %v4857, 1
        %v4859 = vadd.f32 %v4857, %v4858
        %v4860 = vrot.slane %v3649, 4
        %v4861 = vadd.f32 %v3649, %v4860
        %v4862 = vrot.slane %v4861, 2
        %v4863 = vadd.f32 %v4861, %v4862
        %v4864 = vrot.slane %v4863, 1
        %v4865 = vadd.f32 %v4863, %v4864
        %v4866 = vrot.slane %v3650, 4
        %v4867 = vadd.f32 %v3650, %v4866
        %v4868 = vrot.slane %v4867, 2
        %v4869 = vadd.f32 %v4867, %v4868
        %v4870 = vrot.slane %v4869, 1
        %v4871 = vadd.f32 %v4869, %v4870
        %v4872 = vrot.slane %v3651, 4
        %v4873 = vadd.f32 %v3651, %v4872
        %v4874 = vrot.slane %v4873, 2
        %v4875 = vadd.f32 %v4873, %v4874
        %v4876 = vrot.slane %v4875, 1
        %v4877 = vadd.f32 %v4875, %v4876
        %v4878 = vrot.slane %v3652, 4
        %v4879 = vadd.f32 %v3652, %v4878
        %v4880 = vrot.slane %v4879, 2
        %v4881 = vadd.f32 %v4879, %v4880
        %v4882 = vrot.slane %v4881, 1
        %v4883 = vadd.f32 %v4881, %v4882
        %v4884 = vrot.slane %v3653, 4
        %v4885 = vadd.f32 %v3653, %v4884
        %v4886 = vrot.slane %v4885, 2
        %v4887 = vadd.f32 %v4885, %v4886
        %v4888 = vrot.slane %v4887, 1
        %v4889 = vadd.f32 %v4887, %v4888
        %v4890 = vrot.slane %v3654, 4
        %v4891 = vadd.f32 %v3654, %v4890
        %v4892 = vrot.slane %v4891, 2
        %v4893 = vadd.f32 %v4891, %v4892
        %v4894 = vrot.slane %v4893, 1
        %v4895 = vadd.f32 %v4893, %v4894
        %v4896 = vrot.slane %v3655, 4
        %v4897 = vadd.f32 %v3655, %v4896
        %v4898 = vrot.slane %v4897, 2
        %v4899 = vadd.f32 %v4897, %v4898
        %v4900 = vrot.slane %v4899, 1
        %v4901 = vadd.f32 %v4899, %v4900
        %v4902 = vrot.slane %v3656, 4
        %v4903 = vadd.f32 %v3656, %v4902
        %v4904 = vrot.slane %v4903, 2
        %v4905 = vadd.f32 %v4903, %v4904
        %v4906 = vrot.slane %v4905, 1
        %v4907 = vadd.f32 %v4905, %v4906
        %v4908 = vrot.slane %v3657, 4
        %v4909 = vadd.f32 %v3657, %v4908
        %v4910 = vrot.slane %v4909, 2
        %v4911 = vadd.f32 %v4909, %v4910
        %v4912 = vrot.slane %v4911, 1
        %v4913 = vadd.f32 %v4911, %v4912
        %v4914 = vrot.slane %v3658, 4
        %v4915 = vadd.f32 %v3658, %v4914
        %v4916 = vrot.slane %v4915, 2
        %v4917 = vadd.f32 %v4915, %v4916
        %v4918 = vrot.slane %v4917, 1
        %v4919 = vadd.f32 %v4917, %v4918
        %v4920 = vrot.slane %v3659, 4
        %v4921 = vadd.f32 %v3659, %v4920
        %v4922 = vrot.slane %v4921, 2
        %v4923 = vadd.f32 %v4921, %v4922
        %v4924 = vrot.slane %v4923, 1
        %v4925 = vadd.f32 %v4923, %v4924
        %v4926 = vrot.slane %v3660, 4
        %v4927 = vadd.f32 %v3660, %v4926
        %v4928 = vrot.slane %v4927, 2
        %v4929 = vadd.f32 %v4927, %v4928
        %v4930 = vrot.slane %v4929, 1
        %v4931 = vadd.f32 %v4929, %v4930
        %v4932 = vrot.slane %v3661, 4
        %v4933 = vadd.f32 %v3661, %v4932
        %v4934 = vrot.slane %v4933, 2
        %v4935 = vadd.f32 %v4933, %v4934
        %v4936 = vrot.slane %v4935, 1
        %v4937 = vadd.f32 %v4935, %v4936
        %v4938 = vrot.slane %v3662, 4
        %v4939 = vadd.f32 %v3662, %v4938
        %v4940 = vrot.slane %v4939, 2
        %v4941 = vadd.f32 %v4939, %v4940
        %v4942 = vrot.slane %v4941, 1
        %v4943 = vadd.f32 %v4941, %v4942
        %v4944 = vrot.slane %v3663, 4
        %v4945 = vadd.f32 %v3663, %v4944
        %v4946 = vrot.slane %v4945, 2
        %v4947 = vadd.f32 %v4945, %v4946
        %v4948 = vrot.slane %v4947, 1
        %v4949 = vadd.f32 %v4947, %v4948
        %v4950 = vrot.slane %v3664, 4
        %v4951 = vadd.f32 %v3664, %v4950
        %v4952 = vrot.slane %v4951, 2
        %v4953 = vadd.f32 %v4951, %v4952
        %v4954 = vrot.slane %v4953, 1
        %v4955 = vadd.f32 %v4953, %v4954
        %v4956 = vrot.slane %v3665, 4
        %v4957 = vadd.f32 %v3665, %v4956
        %v4958 = vrot.slane %v4957, 2
        %v4959 = vadd.f32 %v4957, %v4958
        %v4960 = vrot.slane %v4959, 1
        %v4961 = vadd.f32 %v4959, %v4960
        %v4962 = vrot.slane %v3666, 4
        %v4963 = vadd.f32 %v3666, %v4962
        %v4964 = vrot.slane %v4963, 2
        %v4965 = vadd.f32 %v4963, %v4964
        %v4966 = vrot.slane %v4965, 1
        %v4967 = vadd.f32 %v4965, %v4966
        %v4968 = vrot.slane %v3667, 4
        %v4969 = vadd.f32 %v3667, %v4968
        %v4970 = vrot.slane %v4969, 2
        %v4971 = vadd.f32 %v4969, %v4970
        %v4972 = vrot.slane %v4971, 1
        %v4973 = vadd.f32 %v4971, %v4972
        %v4974 = vrot.slane %v3668, 4
        %v4975 = vadd.f32 %v3668, %v4974
        %v4976 = vrot.slane %v4975, 2
        %v4977 = vadd.f32 %v4975, %v4976
        %v4978 = vrot.slane %v4977, 1
        %v4979 = vadd.f32 %v4977, %v4978
        %v4980 = vrot.slane %v3669, 4
        %v4981 = vadd.f32 %v3669, %v4980
        %v4982 = vrot.slane %v4981, 2
        %v4983 = vadd.f32 %v4981, %v4982
        %v4984 = vrot.slane %v4983, 1
        %v4985 = vadd.f32 %v4983, %v4984
        %v4986 = vrot.slane %v3670, 4
        %v4987 = vadd.f32 %v3670, %v4986
        %v4988 = vrot.slane %v4987, 2
        %v4989 = vadd.f32 %v4987, %v4988
        %v4990 = vrot.slane %v4989, 1
        %v4991 = vadd.f32 %v4989, %v4990
        %v4992 = vrot.slane %v3671, 4
        %v4993 = vadd.f32 %v3671, %v4992
        %v4994 = vrot.slane %v4993, 2
        %v4995 = vadd.f32 %v4993, %v4994
        %v4996 = vrot.slane %v4995, 1
        %v4997 = vadd.f32 %v4995, %v4996
        %v4998 = vrot.slane %v3672, 4
        %v4999 = vadd.f32 %v3672, %v4998
        %v5000 = vrot.slane %v4999, 2
        %v5001 = vadd.f32 %v4999, %v5000
        %v5002 = vrot.slane %v5001, 1
        %v5003 = vadd.f32 %v5001, %v5002
        %v5004 = vrot.slane %v3673, 4
        %v5005 = vadd.f32 %v3673, %v5004
        %v5006 = vrot.slane %v5005, 2
        %v5007 = vadd.f32 %v5005, %v5006
        %v5008 = vrot.slane %v5007, 1
        %v5009 = vadd.f32 %v5007, %v5008
        %v5010 = vrot.slane %v3674, 4
        %v5011 = vadd.f32 %v3674, %v5010
        %v5012 = vrot.slane %v5011, 2
        %v5013 = vadd.f32 %v5011, %v5012
        %v5014 = vrot.slane %v5013, 1
        %v5015 = vadd.f32 %v5013, %v5014
        %v5016 = vrot.slane %v3675, 4
        %v5017 = vadd.f32 %v3675, %v5016
        %v5018 = vrot.slane %v5017, 2
        %v5019 = vadd.f32 %v5017, %v5018
        %v5020 = vrot.slane %v5019, 1
        %v5021 = vadd.f32 %v5019, %v5020
        %v5022 = vrot.slane %v3676, 4
        %v5023 = vadd.f32 %v3676, %v5022
        %v5024 = vrot.slane %v5023, 2
        %v5025 = vadd.f32 %v5023, %v5024
        %v5026 = vrot.slane %v5025, 1
        %v5027 = vadd.f32 %v5025, %v5026
        %v5028 = vrot.slane %v3677, 4
        %v5029 = vadd.f32 %v3677, %v5028
        %v5030 = vrot.slane %v5029, 2
        %v5031 = vadd.f32 %v5029, %v5030
        %v5032 = vrot.slane %v5031, 1
        %v5033 = vadd.f32 %v5031, %v5032
        %v5034 = vrot.slane %v3678, 4
        %v5035 = vadd.f32 %v3678, %v5034
        %v5036 = vrot.slane %v5035, 2
        %v5037 = vadd.f32 %v5035, %v5036
        %v5038 = vrot.slane %v5037, 1
        %v5039 = vadd.f32 %v5037, %v5038
        %v5040 = vrot.slane %v3679, 4
        %v5041 = vadd.f32 %v3679, %v5040
        %v5042 = vrot.slane %v5041, 2
        %v5043 = vadd.f32 %v5041, %v5042
        %v5044 = vrot.slane %v5043, 1
        %v5045 = vadd.f32 %v5043, %v5044
        %v5046 = vrot.slane %v3680, 4
        %v5047 = vadd.f32 %v3680, %v5046
        %v5048 = vrot.slane %v5047, 2
        %v5049 = vadd.f32 %v5047, %v5048
        %v5050 = vrot.slane %v5049, 1
        %v5051 = vadd.f32 %v5049, %v5050
        %v5052 = vrot.slane %v3681, 4
        %v5053 = vadd.f32 %v3681, %v5052
        %v5054 = vrot.slane %v5053, 2
        %v5055 = vadd.f32 %v5053, %v5054
        %v5056 = vrot.slane %v5055, 1
        %v5057 = vadd.f32 %v5055, %v5056
        %v5058 = vrot.slane %v3682, 4
        %v5059 = vadd.f32 %v3682, %v5058
        %v5060 = vrot.slane %v5059, 2
        %v5061 = vadd.f32 %v5059, %v5060
        %v5062 = vrot.slane %v5061, 1
        %v5063 = vadd.f32 %v5061, %v5062
        %v5064 = vrot.slane %v3683, 4
        %v5065 = vadd.f32 %v3683, %v5064
        %v5066 = vrot.slane %v5065, 2
        %v5067 = vadd.f32 %v5065, %v5066
        %v5068 = vrot.slane %v5067, 1
        %v5069 = vadd.f32 %v5067, %v5068
        %v5070 = vrot.slane %v3684, 4
        %v5071 = vadd.f32 %v3684, %v5070
        %v5072 = vrot.slane %v5071, 2
        %v5073 = vadd.f32 %v5071, %v5072
        %v5074 = vrot.slane %v5073, 1
        %v5075 = vadd.f32 %v5073, %v5074
        %v5076 = vrot.slane %v3685, 4
        %v5077 = vadd.f32 %v3685, %v5076
        %v5078 = vrot.slane %v5077, 2
        %v5079 = vadd.f32 %v5077, %v5078
        %v5080 = vrot.slane %v5079, 1
        %v5081 = vadd.f32 %v5079, %v5080
        %v5082 = vrot.slane %v3686, 4
        %v5083 = vadd.f32 %v3686, %v5082
        %v5084 = vrot.slane %v5083, 2
        %v5085 = vadd.f32 %v5083, %v5084
        %v5086 = vrot.slane %v5085, 1
        %v5087 = vadd.f32 %v5085, %v5086
        %v5088 = vrot.slane %v3687, 4
        %v5089 = vadd.f32 %v3687, %v5088
        %v5090 = vrot.slane %v5089, 2
        %v5091 = vadd.f32 %v5089, %v5090
        %v5092 = vrot.slane %v5091, 1
        %v5093 = vadd.f32 %v5091, %v5092
        %v5094 = vrot.slane %v3688, 4
        %v5095 = vadd.f32 %v3688, %v5094
        %v5096 = vrot.slane %v5095, 2
        %v5097 = vadd.f32 %v5095, %v5096
        %v5098 = vrot.slane %v5097, 1
        %v5099 = vadd.f32 %v5097, %v5098
        %v5100 = vrot.slane %v3689, 4
        %v5101 = vadd.f32 %v3689, %v5100
        %v5102 = vrot.slane %v5101, 2
        %v5103 = vadd.f32 %v5101, %v5102
        %v5104 = vrot.slane %v5103, 1
        %v5105 = vadd.f32 %v5103, %v5104
        %v5106 = vrot.slane %v3690, 4
        %v5107 = vadd.f32 %v3690, %v5106
        %v5108 = vrot.slane %v5107, 2
        %v5109 = vadd.f32 %v5107, %v5108
        %v5110 = vrot.slane %v5109, 1
        %v5111 = vadd.f32 %v5109, %v5110
        %v5112 = vrot.slane %v3691, 4
        %v5113 = vadd.f32 %v3691, %v5112
        %v5114 = vrot.slane %v5113, 2
        %v5115 = vadd.f32 %v5113, %v5114
        %v5116 = vrot.slane %v5115, 1
        %v5117 = vadd.f32 %v5115, %v5116
        %v5118 = vrot.slane %v3692, 4
        %v5119 = vadd.f32 %v3692, %v5118
        %v5120 = vrot.slane %v5119, 2
        %v5121 = vadd.f32 %v5119, %v5120
        %v5122 = vrot.slane %v5121, 1
        %v5123 = vadd.f32 %v5121, %v5122
        %v5124 = vrot.slane %v3693, 4
        %v5125 = vadd.f32 %v3693, %v5124
        %v5126 = vrot.slane %v5125, 2
        %v5127 = vadd.f32 %v5125, %v5126
        %v5128 = vrot.slane %v5127, 1
        %v5129 = vadd.f32 %v5127, %v5128
        %v5130 = vrot.slane %v3694, 4
        %v5131 = vadd.f32 %v3694, %v5130
        %v5132 = vrot.slane %v5131, 2
        %v5133 = vadd.f32 %v5131, %v5132
        %v5134 = vrot.slane %v5133, 1
        %v5135 = vadd.f32 %v5133, %v5134
        %v5136 = vrot.slane %v3695, 4
        %v5137 = vadd.f32 %v3695, %v5136
        %v5138 = vrot.slane %v5137, 2
        %v5139 = vadd.f32 %v5137, %v5138
        %v5140 = vrot.slane %v5139, 1
        %v5141 = vadd.f32 %v5139, %v5140
        %v5142 = vrot.slane %v3696, 4
        %v5143 = vadd.f32 %v3696, %v5142
        %v5144 = vrot.slane %v5143, 2
        %v5145 = vadd.f32 %v5143, %v5144
        %v5146 = vrot.slane %v5145, 1
        %v5147 = vadd.f32 %v5145, %v5146
        %v5148 = vrot.slane %v3697, 4
        %v5149 = vadd.f32 %v3697, %v5148
        %v5150 = vrot.slane %v5149, 2
        %v5151 = vadd.f32 %v5149, %v5150
        %v5152 = vrot.slane %v5151, 1
        %v5153 = vadd.f32 %v5151, %v5152
        %v5154 = vrot.slane %v3698, 4
        %v5155 = vadd.f32 %v3698, %v5154
        %v5156 = vrot.slane %v5155, 2
        %v5157 = vadd.f32 %v5155, %v5156
        %v5158 = vrot.slane %v5157, 1
        %v5159 = vadd.f32 %v5157, %v5158
        %v5160 = vrot.slane %v3699, 4
        %v5161 = vadd.f32 %v3699, %v5160
        %v5162 = vrot.slane %v5161, 2
        %v5163 = vadd.f32 %v5161, %v5162
        %v5164 = vrot.slane %v5163, 1
        %v5165 = vadd.f32 %v5163, %v5164
        %v5166 = vrot.slane %v3700, 4
        %v5167 = vadd.f32 %v3700, %v5166
        %v5168 = vrot.slane %v5167, 2
        %v5169 = vadd.f32 %v5167, %v5168
        %v5170 = vrot.slane %v5169, 1
        %v5171 = vadd.f32 %v5169, %v5170
        %v5172 = vrot.slane %v3701, 4
        %v5173 = vadd.f32 %v3701, %v5172
        %v5174 = vrot.slane %v5173, 2
        %v5175 = vadd.f32 %v5173, %v5174
        %v5176 = vrot.slane %v5175, 1
        %v5177 = vadd.f32 %v5175, %v5176
        %v5178 = vrot.slane %v3702, 4
        %v5179 = vadd.f32 %v3702, %v5178
        %v5180 = vrot.slane %v5179, 2
        %v5181 = vadd.f32 %v5179, %v5180
        %v5182 = vrot.slane %v5181, 1
        %v5183 = vadd.f32 %v5181, %v5182
        %v5184 = vrot.slane %v3703, 4
        %v5185 = vadd.f32 %v3703, %v5184
        %v5186 = vrot.slane %v5185, 2
        %v5187 = vadd.f32 %v5185, %v5186
        %v5188 = vrot.slane %v5187, 1
        %v5189 = vadd.f32 %v5187, %v5188
        %v5190 = vrot.slane %v3704, 4
        %v5191 = vadd.f32 %v3704, %v5190
        %v5192 = vrot.slane %v5191, 2
        %v5193 = vadd.f32 %v5191, %v5192
        %v5194 = vrot.slane %v5193, 1
        %v5195 = vadd.f32 %v5193, %v5194
        %v5196 = vrot.slane %v3705, 4
        %v5197 = vadd.f32 %v3705, %v5196
        %v5198 = vrot.slane %v5197, 2
        %v5199 = vadd.f32 %v5197, %v5198
        %v5200 = vrot.slane %v5199, 1
        %v5201 = vadd.f32 %v5199, %v5200
        %v5202 = vrot.slane %v3706, 4
        %v5203 = vadd.f32 %v3706, %v5202
        %v5204 = vrot.slane %v5203, 2
        %v5205 = vadd.f32 %v5203, %v5204
        %v5206 = vrot.slane %v5205, 1
        %v5207 = vadd.f32 %v5205, %v5206
        %v5208 = vrot.slane %v3707, 4
        %v5209 = vadd.f32 %v3707, %v5208
        %v5210 = vrot.slane %v5209, 2
        %v5211 = vadd.f32 %v5209, %v5210
        %v5212 = vrot.slane %v5211, 1
        %v5213 = vadd.f32 %v5211, %v5212
        %v5214 = vrot.slane %v3708, 4
        %v5215 = vadd.f32 %v3708, %v5214
        %v5216 = vrot.slane %v5215, 2
        %v5217 = vadd.f32 %v5215, %v5216
        %v5218 = vrot.slane %v5217, 1
        %v5219 = vadd.f32 %v5217, %v5218
        %v5220 = vrot.slane %v3709, 4
        %v5221 = vadd.f32 %v3709, %v5220
        %v5222 = vrot.slane %v5221, 2
        %v5223 = vadd.f32 %v5221, %v5222
        %v5224 = vrot.slane %v5223, 1
        %v5225 = vadd.f32 %v5223, %v5224
        %v5226 = vrot.slane %v3710, 4
        %v5227 = vadd.f32 %v3710, %v5226
        %v5228 = vrot.slane %v5227, 2
        %v5229 = vadd.f32 %v5227, %v5228
        %v5230 = vrot.slane %v5229, 1
        %v5231 = vadd.f32 %v5229, %v5230
        %v5232 = vrot.slane %v3711, 4
        %v5233 = vadd.f32 %v3711, %v5232
        %v5234 = vrot.slane %v5233, 2
        %v5235 = vadd.f32 %v5233, %v5234
        %v5236 = vrot.slane %v5235, 1
        %v5237 = vadd.f32 %v5235, %v5236
        %v5238 = vrot.slane %v3712, 4
        %v5239 = vadd.f32 %v3712, %v5238
        %v5240 = vrot.slane %v5239, 2
        %v5241 = vadd.f32 %v5239, %v5240
        %v5242 = vrot.slane %v5241, 1
        %v5243 = vadd.f32 %v5241, %v5242
        %v5244 = vrot.slane %v3713, 4
        %v5245 = vadd.f32 %v3713, %v5244
        %v5246 = vrot.slane %v5245, 2
        %v5247 = vadd.f32 %v5245, %v5246
        %v5248 = vrot.slane %v5247, 1
        %v5249 = vadd.f32 %v5247, %v5248
        %v5250 = vld [vmem:[#allocation2] sm:$0xff]
        %v5251 = vld [vmem:[#allocation2 + $0x8] sm:$0xff]
        %vm5508 = vcmask 1041409
        %v5509 = vsel %vm5508, %v3815, %v3719
        %vm5510 = vcmask 1042434
        %v5511 = vsel %vm5510, %v3911, %v5509
        %vm5512 = vcmask 1043459
        %v5513 = vsel %vm5512, %v4007, %v5511
        %vm5514 = vcmask 1044484
        %v5515 = vsel %vm5514, %v4103, %v5513
        %vm5516 = vcmask 1045509
        %v5517 = vsel %vm5516, %v4199, %v5515
        %vm5518 = vcmask 1046534
        %v5519 = vsel %vm5518, %v4295, %v5517
        %vm5520 = vcmask 1047559
        %v5521 = vsel %vm5520, %v4391, %v5519
        %v5522 = vsel %vm5508, %v3821, %v3725
        %v5523 = vsel %vm5510, %v3917, %v5522
        %v5524 = vsel %vm5512, %v4013, %v5523
        %v5525 = vsel %vm5514, %v4109, %v5524
        %v5526 = vsel %vm5516, %v4205, %v5525
        %v5527 = vsel %vm5518, %v4301, %v5526
        %v5528 = vsel %vm5520, %v4397, %v5527
        %v5529 = vsel %vm5508, %v3827, %v3731
        %v5530 = vsel %vm5510, %v3923, %v5529
        %v5531 = vsel %vm5512, %v4019, %v5530
        %v5532 = vsel %vm5514, %v4115, %v5531
        %v5533 = vsel %vm5516, %v4211, %v5532
        %v5534 = vsel %vm5518, %v4307, %v5533
        %v5535 = vsel %vm5520, %v4403, %v5534
        %v5536 = vsel %vm5508, %v3833, %v3737
        %v5537 = vsel %vm5510, %v3929, %v5536
        %v5538 = vsel %vm5512, %v4025, %v5537
        %v5539 = vsel %vm5514, %v4121, %v5538
        %v5540 = vsel %vm5516, %v4217, %v5539
        %v5541 = vsel %vm5518, %v4313, %v5540
        %v5542 = vsel %vm5520, %v4409, %v5541
        %v5543 = vsel %vm5508, %v3839, %v3743
        %v5544 = vsel %vm5510, %v3935, %v5543
        %v5545 = vsel %vm5512, %v4031, %v5544
        %v5546 = vsel %vm5514, %v4127, %v5545
        %v5547 = vsel %vm5516, %v4223, %v5546
        %v5548 = vsel %vm5518, %v4319, %v5547
        %v5549 = vsel %vm5520, %v4415, %v5548
        %v5550 = vsel %vm5508, %v3845, %v3749
        %v5551 = vsel %vm5510, %v3941, %v5550
        %v5552 = vsel %vm5512, %v4037, %v5551
        %v5553 = vsel %vm5514, %v4133, %v5552
        %v5554 = vsel %vm5516, %v4229, %v5553
        %v5555 = vsel %vm5518, %v4325, %v5554
        %v5556 = vsel %vm5520, %v4421, %v5555
        %v5557 = vsel %vm5508, %v3851, %v3755
        %v5558 = vsel %vm5510, %v3947, %v5557
        %v5559 = vsel %vm5512, %v4043, %v5558
        %v5560 = vsel %vm5514, %v4139, %v5559
        %v5561 = vsel %vm5516, %v4235, %v5560
        %v5562 = vsel %vm5518, %v4331, %v5561
        %v5563 = vsel %vm5520, %v4427, %v5562
        %v5564 = vsel %vm5508, %v3857, %v3761
        %v5565 = vsel %vm5510, %v3953, %v5564
        %v5566 = vsel %vm5512, %v4049, %v5565
        %v5567 = vsel %vm5514, %v4145, %v5566
        %v5568 = vsel %vm5516, %v4241, %v5567
        %v5569 = vsel %vm5518, %v4337, %v5568
        %v5570 = vsel %vm5520, %v4433, %v5569
        %v5571 = vsel %vm5508, %v3863, %v3767
        %v5572 = vsel %vm5510, %v3959, %v5571
        %v5573 = vsel %vm5512, %v4055, %v5572
        %v5574 = vsel %vm5514, %v4151, %v5573
        %v5575 = vsel %vm5516, %v4247, %v5574
        %v5576 = vsel %vm5518, %v4343, %v5575
        %v5577 = vsel %vm5520, %v4439, %v5576
        %v5578 = vsel %vm5508, %v3869, %v3773
        %v5579 = vsel %vm5510, %v3965, %v5578
        %v5580 = vsel %vm5512, %v4061, %v5579
        %v5581 = vsel %vm5514, %v4157, %v5580
        %v5582 = vsel %vm5516, %v4253, %v5581
        %v5583 = vsel %vm5518, %v4349, %v5582
        %v5584 = vsel %vm5520, %v4445, %v5583
        %v5585 = vsel %vm5508, %v3875, %v3779
        %v5586 = vsel %vm5510, %v3971, %v5585
        %v5587 = vsel %vm5512, %v4067, %v5586
        %v5588 = vsel %vm5514, %v4163, %v5587
        %v5589 = vsel %vm5516, %v4259, %v5588
        %v5590 = vsel %vm5518, %v4355, %v5589
        %v5591 = vsel %vm5520, %v4451, %v5590
        %v5592 = vsel %vm5508, %v3881, %v3785
        %v5593 = vsel %vm5510, %v3977, %v5592
        %v5594 = vsel %vm5512, %v4073, %v5593
        %v5595 = vsel %vm5514, %v4169, %v5594
        %v5596 = vsel %vm5516, %v4265, %v5595
        %v5597 = vsel %vm5518, %v4361, %v5596
        %v5598 = vsel %vm5520, %v4457, %v5597
        %v5599 = vsel %vm5508, %v3887, %v3791
        %v5600 = vsel %vm5510, %v3983, %v5599
        %v5601 = vsel %vm5512, %v4079, %v5600
        %v5602 = vsel %vm5514, %v4175, %v5601
        %v5603 = vsel %vm5516, %v4271, %v5602
        %v5604 = vsel %vm5518, %v4367, %v5603
        %v5605 = vsel %vm5520, %v4463, %v5604
        %v5606 = vsel %vm5508, %v3893, %v3797
        %v5607 = vsel %vm5510, %v3989, %v5606
        %v5608 = vsel %vm5512, %v4085, %v5607
        %v5609 = vsel %vm5514, %v4181, %v5608
        %v5610 = vsel %vm5516, %v4277, %v5609
        %v5611 = vsel %vm5518, %v4373, %v5610
        %v5612 = vsel %vm5520, %v4469, %v5611
        %v5613 = vsel %vm5508, %v3899, %v3803
        %v5614 = vsel %vm5510, %v3995, %v5613
        %v5615 = vsel %vm5512, %v4091, %v5614
        %v5616 = vsel %vm5514, %v4187, %v5615
        %v5617 = vsel %vm5516, %v4283, %v5616
        %v5618 = vsel %vm5518, %v4379, %v5617
        %v5619 = vsel %vm5520, %v4475, %v5618
        %v5620 = vsel %vm5508, %v3905, %v3809
        %v5621 = vsel %vm5510, %v4001, %v5620
        %v5622 = vsel %vm5512, %v4097, %v5621
        %v5623 = vsel %vm5514, %v4193, %v5622
        %v5624 = vsel %vm5516, %v4289, %v5623
        %v5625 = vsel %vm5518, %v4385, %v5624
        %v5626 = vsel %vm5520, %v4481, %v5625
        %v5627 = vsel %vm5508, %v4583, %v4487
        %v5628 = vsel %vm5510, %v4679, %v5627
        %v5629 = vsel %vm5512, %v4775, %v5628
        %v5630 = vsel %vm5514, %v4871, %v5629
        %v5631 = vsel %vm5516, %v4967, %v5630
        %v5632 = vsel %vm5518, %v5063, %v5631
        %v5633 = vsel %vm5520, %v5159, %v5632
        %v5634 = vsel %vm5508, %v4589, %v4493
        %v5635 = vsel %vm5510, %v4685, %v5634
        %v5636 = vsel %vm5512, %v4781, %v5635
        %v5637 = vsel %vm5514, %v4877, %v5636
        %v5638 = vsel %vm5516, %v4973, %v5637
        %v5639 = vsel %vm5518, %v5069, %v5638
        %v5640 = vsel %vm5520, %v5165, %v5639
        %v5641 = vsel %vm5508, %v4595, %v4499
        %v5642 = vsel %vm5510, %v4691, %v5641
        %v5643 = vsel %vm5512, %v4787, %v5642
        %v5644 = vsel %vm5514, %v4883, %v5643
        %v5645 = vsel %vm5516, %v4979, %v5644
        %v5646 = vsel %vm5518, %v5075, %v5645
        %v5647 = vsel %vm5520, %v5171, %v5646
        %v5648 = vsel %vm5508, %v4601, %v4505
        %v5649 = vsel %vm5510, %v4697, %v5648
        %v5650 = vsel %vm5512, %v4793, %v5649
        %v5651 = vsel %vm5514, %v4889, %v5650
        %v5652 = vsel %vm5516, %v4985, %v5651
        %v5653 = vsel %vm5518, %v5081, %v5652
        %v5654 = vsel %vm5520, %v5177, %v5653
        %v5655 = vsel %vm5508, %v4607, %v4511
        %v5656 = vsel %vm5510, %v4703, %v5655
        %v5657 = vsel %vm5512, %v4799, %v5656
        %v5658 = vsel %vm5514, %v4895, %v5657
        %v5659 = vsel %vm5516, %v4991, %v5658
        %v5660 = vsel %vm5518, %v5087, %v5659
        %v5661 = vsel %vm5520, %v5183, %v5660
        %v5662 = vsel %vm5508, %v4613, %v4517
        %v5663 = vsel %vm5510, %v4709, %v5662
        %v5664 = vsel %vm5512, %v4805, %v5663
        %v5665 = vsel %vm5514, %v4901, %v5664
        %v5666 = vsel %vm5516, %v4997, %v5665
        %v5667 = vsel %vm5518, %v5093, %v5666
        %v5668 = vsel %vm5520, %v5189, %v5667
        %v5669 = vsel %vm5508, %v4619, %v4523
        %v5670 = vsel %vm5510, %v4715, %v5669
        %v5671 = vsel %vm5512, %v4811, %v5670
        %v5672 = vsel %vm5514, %v4907, %v5671
        %v5673 = vsel %vm5516, %v5003, %v5672
        %v5674 = vsel %vm5518, %v5099, %v5673
        %v5675 = vsel %vm5520, %v5195, %v5674
        %v5676 = vsel %vm5508, %v4625, %v4529
        %v5677 = vsel %vm5510, %v4721, %v5676
        %v5678 = vsel %vm5512, %v4817, %v5677
        %v5679 = vsel %vm5514, %v4913, %v5678
        %v5680 = vsel %vm5516, %v5009, %v5679
        %v5681 = vsel %vm5518, %v5105, %v5680
        %v5682 = vsel %vm5520, %v5201, %v5681
        %v5683 = vsel %vm5508, %v4631, %v4535
        %v5684 = vsel %vm5510, %v4727, %v5683
        %v5685 = vsel %vm5512, %v4823, %v5684
        %v5686 = vsel %vm5514, %v4919, %v5685
        %v5687 = vsel %vm5516, %v5015, %v5686
        %v5688 = vsel %vm5518, %v5111, %v5687
        %v5689 = vsel %vm5520, %v5207, %v5688
        %v5690 = vsel %vm5508, %v4637, %v4541
        %v5691 = vsel %vm5510, %v4733, %v5690
        %v5692 = vsel %vm5512, %v4829, %v5691
        %v5693 = vsel %vm5514, %v4925, %v5692
        %v5694 = vsel %vm5516, %v5021, %v5693
        %v5695 = vsel %vm5518, %v5117, %v5694
        %v5696 = vsel %vm5520, %v5213, %v5695
        %v5697 = vsel %vm5508, %v4643, %v4547
        %v5698 = vsel %vm5510, %v4739, %v5697
        %v5699 = vsel %vm5512, %v4835, %v5698
        %v5700 = vsel %vm5514, %v4931, %v5699
        %v5701 = vsel %vm5516, %v5027, %v5700
        %v5702 = vsel %vm5518, %v5123, %v5701
        %v5703 = vsel %vm5520, %v5219, %v5702
        %v5704 = vsel %vm5508, %v4649, %v4553
        %v5705 = vsel %vm5510, %v4745, %v5704
        %v5706 = vsel %vm5512, %v4841, %v5705
        %v5707 = vsel %vm5514, %v4937, %v5706
        %v5708 = vsel %vm5516, %v5033, %v5707
        %v5709 = vsel %vm5518, %v5129, %v5708
        %v5710 = vsel %vm5520, %v5225, %v5709
        %v5711 = vsel %vm5508, %v4655, %v4559
        %v5712 = vsel %vm5510, %v4751, %v5711
        %v5713 = vsel %vm5512, %v4847, %v5712
        %v5714 = vsel %vm5514, %v4943, %v5713
        %v5715 = vsel %vm5516, %v5039, %v5714
        %v5716 = vsel %vm5518, %v5135, %v5715
        %v5717 = vsel %vm5520, %v5231, %v5716
        %v5718 = vsel %vm5508, %v4661, %v4565
        %v5719 = vsel %vm5510, %v4757, %v5718
        %v5720 = vsel %vm5512, %v4853, %v5719
        %v5721 = vsel %vm5514, %v4949, %v5720
        %v5722 = vsel %vm5516, %v5045, %v5721
        %v5723 = vsel %vm5518, %v5141, %v5722
        %v5724 = vsel %vm5520, %v5237, %v5723
        %v5725 = vsel %vm5508, %v4667, %v4571
        %v5726 = vsel %vm5510, %v4763, %v5725
        %v5727 = vsel %vm5512, %v4859, %v5726
        %v5728 = vsel %vm5514, %v4955, %v5727
        %v5729 = vsel %vm5516, %v5051, %v5728
        %v5730 = vsel %vm5518, %v5147, %v5729
        %v5731 = vsel %vm5520, %v5243, %v5730
        %v5732 = vsel %vm5508, %v4673, %v4577
        %v5733 = vsel %vm5510, %v4769, %v5732
        %v5734 = vsel %vm5512, %v4865, %v5733
        %v5735 = vsel %vm5514, %v4961, %v5734
        %v5736 = vsel %vm5516, %v5057, %v5735
        %v5737 = vsel %vm5518, %v5153, %v5736
        %v5738 = vsel %vm5520, %v5249, %v5737
        %v5771 = vadd.f32 %v5521, %v5528
        %v5772 = vadd.f32 %v5771, %v5535
        %v5773 = vadd.f32 %v5772, %v5542
        %v5774 = vadd.f32 %v5773, %v5549
        %v5775 = vadd.f32 %v5774, %v5556
        %v5776 = vadd.f32 %v5775, %v5563
        %v5777 = vadd.f32 %v5776, %v5570
        %v5778 = vadd.f32 %v5777, %v5577
        %v5779 = vadd.f32 %v5778, %v5584
        %v5780 = vadd.f32 %v5779, %v5591
        %v5781 = vadd.f32 %v5780, %v5598
        %v5782 = vadd.f32 %v5781, %v5605
        %v5783 = vadd.f32 %v5782, %v5612
        %v5784 = vadd.f32 %v5783, %v5619
        %v5785 = vadd.f32 %v5784, %v5626
        %5786 = vadd.xlane.f32.xlu0 %v5785
        %v5787 = vpop.xlane.xlu0 %5786
        %v5788 = vadd.f32 %v5633, %v5640
        %v5789 = vadd.f32 %v5788, %v5647
        %v5790 = vadd.f32 %v5789, %v5654
        %v5791 = vadd.f32 %v5790, %v5661
        %v5792 = vadd.f32 %v5791, %v5668
        %v5793 = vadd.f32 %v5792, %v5675
        %v5794 = vadd.f32 %v5793, %v5682
        %v5795 = vadd.f32 %v5794, %v5689
        %v5796 = vadd.f32 %v5795, %v5696
        %v5797 = vadd.f32 %v5796, %v5703
        %v5798 = vadd.f32 %v5797, %v5710
        %v5799 = vadd.f32 %v5798, %v5717
        %v5800 = vadd.f32 %v5799, %v5724
        %v5801 = vadd.f32 %v5800, %v5731
        %v5802 = vadd.f32 %v5801, %v5738
        %5803 = vadd.xlane.f32.xlu0 %v5802
        %v5804 = vpop.xlane.xlu0 %5803
        %v5805 = vadd.f32 %v5250, %v5787
        %v5806 = vadd.f32 %v5251, %v5804
        %vm5807 = vcmask 7168
        %5808 = vst.msk [vmem:[#allocation2] sm:$0xff] %vm5807, %v5805
        %5809 = vst.msk [vmem:[#allocation2 + $0x8] sm:$0xff] %vm5807, %v5806
        %p5810 = scmp.eq.s32.totalorder %s25, 1
        // Predicated region
        $region99: #{forward_pallas.1} parent=85 // pred_check
          %p5811 = pneg %p5810
        $region100: #{forward_pallas.1} parent=85 // pred_check_branch
          %5813 = sbr.rel (%p5811) target = $region102
        $region101: #{forward_pallas.1} parent=85 // pred_region
          %v5814 = vld [vmem:[#allocation2] sm:$0xff]
          %v5815 = vld [vmem:[#allocation2 + $0x8] sm:$0xff]
          %v5816 = vld [vmem:[%s4] sm:$0xff]
          %v5817 = vld [vmem:[%s4 + $0x8] sm:$0xff]
          %v5818 = vadd.f32 %v5814, %v5816
          %v5819 = vadd.f32 %v5815, %v5817
          %v5820 = vmax.f32 %v5818, 0.0
          %v5821 = vmax.f32 %v5819, 0.0
          %v5822 = vld [vmem:[%s5] sm:$0xff]
          %v5823 = vld [vmem:[%s5 + $0x8] sm:$0xff]
          %v5824 = vmul.f32 %v5820, %v5822
          %v5825 = vmul.f32 %v5821, %v5823
          %v5826 = vsel %vm5807, %v5824, 0.0
          %v5827 = vsel %vm5807, %v5825, 0.0
          %v5828 = vadd.f32 %v5826, %v5827
          %v5829 = vrot.slane %v5828, 4
          %v5830 = vadd.f32 %v5828, %v5829
          %v5831 = vrot.slane %v5830, 2
          %v5832 = vadd.f32 %v5830, %v5831
          %v5833 = vrot.slane %v5832, 1
          %v5834 = vadd.f32 %v5832, %v5833
          %v5835 = vld [vmem:[#allocation3] sm:$0x1]
          %v5836 = vadd.f32 %v5834, %v5835
          %v5837 = vsub.f32 0.0, %v5836
          %v5838 = vmul.f32 %v5837, 1.442695
          %v5839 = vpow.pop %v5838
          %v5840 = vadd.f32 %v5839, 1.0
          %v5841 = vrcp.pop %v5840
          %v5842 = vmul.f32 1.0, %v5841
          %vm5843 = vcmask 0
          %5844 = vst.msk [vmem:[%s862] sm:$0x1] %vm5843, %v5842
        $region102: #{forward_pallas.1} parent=85 // pred_fallthru
          _
        %p5845 = scmp.lt.s32.totalorder %s24, 1
        %s5846 = scalar_select %p5845, %s24, 1
        %s5847 = scalar_lea.vmem %s7, %s5846
        // Predicated region
        $region103: #{forward_pallas.1} parent=85 // pred_check
          %p5848 = pneg %p209
        $region104: #{forward_pallas.1} parent=85 // pred_check_branch
          %5850 = sbr.rel (%p5848) target = $region106
        $region105: #{forward_pallas.1} parent=85 // pred_region
          _
        $region106: #{forward_pallas.1} parent=85 // pred_fallthru
          _
      $region86: #{forward_pallas.1} parent=5 // pred_fallthru
        _
      %p5851 = scmp.le.s32.totalorder 2, %s15
      // Predicated region
      $region107: #{forward_pallas.1} parent=5 // pred_check
        %p5852 = pneg %p5851
      $region108: #{forward_pallas.1} parent=5 // pred_check_branch
        %5854 = sbr.rel (%p5852) target = $region110
      $region109: #{forward_pallas.1} parent=5 // pred_region
        %s5855 = ssub.s32 %s15, 2
        // Predicated region
        $region111: #{forward_pallas.1} parent=109 // pred_check
          %p5856 = pneg %p215
        $region112: #{forward_pallas.1} parent=109 // pred_check_branch
          %5858 = sbr.rel (%p5856) target = $region114
        $region113: #{forward_pallas.1} parent=109 // pred_region
          %p5859 = scmp.lt.s32.totalorder %s26, 1
          %s5860 = scalar_select %p5859, %s26, 1
          %s5861 = scalar_lea.vmem %s7, %s5860
        $region114: #{forward_pallas.1} parent=109 // pred_fallthru
          _
      $region110: #{forward_pallas.1} parent=5 // pred_fallthru
        _
    $region6: #{forward_pallas.1} parent=1 // loop_footer
      %s19 = sadd.s32 1, %s15
    $region7: #{forward_pallas.1} parent=1 // loop_footer_branch
      %14 = sbr.rel target = $region3
    $region8: #{forward_pallas.1} parent=1 // loop_exit
      _

</llo_original>
